<compile_context>
chip_gen: v7x
topology: tpu7x:2x2x1
jax: 0.10.0
libtpu: 0.0.40
codegen_flags: <defaults>
</compile_context>

<pallas_src>
import math
from functools import partial

import jax
import jax.numpy as jnp
from jax.experimental import pallas as pl
from jax.experimental.pallas import tpu as pltpu


# ----------------------------------------------------------------------------
# Tile selection helper
# ----------------------------------------------------------------------------
def _pick_tile(dim, pref, align):
    """Largest tile <= pref that divides `dim` and is a multiple of `align`
    (TPU (8,128) alignment), falling back to the full dimension."""
    if dim <= pref:
        return dim
    t = (pref // align) * align
    while t >= align:
        if dim % t == 0:
            return t
        t -= align
    return dim


# ----------------------------------------------------------------------------
# Pallas kernels
# ----------------------------------------------------------------------------
def _linear_kernel(x_ref, w_ref, b_ref, *rest, activation, has_residual):
    """Tiled y = x @ W + b  (+ relu) (+ residual), K-axis accumulation."""
    if has_residual:
        r_ref, o_ref, acc_ref = rest
    else:
        o_ref, acc_ref = rest

    k = pl.program_id(2)

    @pl.when(k == 0)
    def _():
        acc_ref[...] = jnp.zeros_like(acc_ref)

    acc_ref[...] += jnp.dot(x_ref[...], w_ref[...],
                            preferred_element_type=jnp.float32)

    @pl.when(k == pl.num_programs(2) - 1)
    def _():
        acc = acc_ref[...] + b_ref[...]
        if activation == "relu":
            acc = jnp.maximum(acc, 0.0)
        if has_residual:
            acc = acc + r_ref[...].astype(jnp.float32)
        o_ref[...] = acc.astype(o_ref.dtype)


def linear(x, w, b, residual=None, activation=None,
           m_tile=256, n_tile=512, k_tile=512):
    """x: (M, K), w: (K, N), b: (N,)/(1,N), optional residual: (M, N)."""
    M, K = x.shape
    N = w.shape[1]
    b2 = jnp.asarray(b, jnp.float32).reshape(1, N)

    tm = _pick_tile(M, m_tile, 8)
    tn = _pick_tile(N, n_tile, 128)
    tk = _pick_tile(K, k_tile, 128)
    grid = (M // tm, N // tn, K // tk)

    in_specs = [
        pl.BlockSpec((tm, tk), lambda i, j, k: (i, k)),
        pl.BlockSpec((tk, tn), lambda i, j, k: (k, j)),
        pl.BlockSpec((1, tn), lambda i, j, k: (0, j)),
    ]
    args = [x, w, b2]
    if residual is not None:
        in_specs.append(pl.BlockSpec((tm, tn), lambda i, j, k: (i, j)))
        args.append(residual)

    return pl.pallas_call(
        partial(_linear_kernel, activation=activation,
                has_residual=residual is not None),
        out_shape=jax.ShapeDtypeStruct((M, N), x.dtype),
        grid=grid,
        in_specs=in_specs,
        out_specs=pl.BlockSpec((tm, tn), lambda i, j, k: (i, j)),
        scratch_shapes=[pltpu.VMEM((tm, tn), jnp.float32)],
        compiler_params=pltpu.CompilerParams(
            dimension_semantics=("parallel", "parallel", "arbitrary")),
    )(*args)


def _ln_linear_kernel(x_ref, g_ref, bln_ref, w_ref, b_ref, o_ref, xn_ref, *,
                      activation):
    """Fused LayerNorm(x) @ W + b (+ relu).

    LN is computed once per row-tile (at j == 0) into a VMEM scratch and
    reused across every N tile; the N axis only re-runs the matmul."""
    j = pl.program_id(1)

    @pl.when(j == 0)
    def _():
        x = x_ref[...].astype(jnp.float32)
        mean = jnp.mean(x, axis=-1, keepdims=True)
        var = jnp.mean(jnp.square(x - mean), axis=-1, keepdims=True)
        xn = (x - mean) * jax.lax.rsqrt(var + 1e-5)      # eps = 1e-5 (torch default)
        xn_ref[...] = xn * g_ref[...] + bln_ref[...]

    acc = jnp.dot(xn_ref[...].astype(w_ref.dtype), w_ref[...],
                  preferred_element_type=jnp.float32)
    acc = acc + b_ref[...]
    if activation == "relu":
        acc = jnp.maximum(acc, 0.0)
    o_ref[...] = acc.astype(o_ref.dtype)


def ln_linear(x, g, bln, w, b, activation=None, m_tile=256, n_tile=512):
    """Fused layer-norm + projection.  x: (M, K), w: (K, N), b: (N,)/(1,N)."""
    M, K = x.shape
    N = w.shape[1]
    g2 = jnp.asarray(g, jnp.float32).reshape(1, K)
    bln2 = jnp.asarray(bln, jnp.float32).reshape(1, K)
    b2 = jnp.asarray(b, jnp.float32).reshape(1, N)

    tm = _pick_tile(M, m_tile, 8)
    tn = _pick_tile(N, n_tile, 128)
    grid = (M // tm, N // tn)

    return pl.pallas_call(
        partial(_ln_linear_kernel, activation=activation),
        out_shape=jax.ShapeDtypeStruct((M, N), x.dtype),
        grid=grid,
        in_specs=[
            pl.BlockSpec((tm, K), lambda i, j: (i, 0)),
            pl.BlockSpec((1, K), lambda i, j: (0, 0)),
            pl.BlockSpec((1, K), lambda i, j: (0, 0)),
            pl.BlockSpec((K, tn), lambda i, j: (0, j)),
            pl.BlockSpec((1, tn), lambda i, j: (0, j)),
        ],
        out_specs=pl.BlockSpec((tm, tn), lambda i, j: (i, j)),
        scratch_shapes=[pltpu.VMEM((tm, K), jnp.float32)],
        compiler_params=pltpu.CompilerParams(
            dimension_semantics=("parallel", "arbitrary")),
    )(x, g2, bln2, w, b2)


def _attention_kernel(q_ref, k_ref, v_ref, *rest, causal, past_len, has_mask):
    """One (batch, head-group) slice per grid step, all heads batched."""
    if has_mask:
        m_ref, o_ref = rest
    else:
        (o_ref,) = rest

    q = q_ref[0].astype(jnp.float32)   # (Hb, Tq, Dh)  -- q already pre-scaled
    k = k_ref[0].astype(jnp.float32)   # (Hb, Tk, Dh)
    v = v_ref[0].astype(jnp.float32)   # (Hb, Tk, Dh)

    # scores: (Hb, Tq, Tk)
    s = jax.lax.dot_general(q, k, (((2,), (2,)), ((0,), (0,))),
                            preferred_element_type=jnp.float32)
    if has_mask:
        s = s + m_ref[0][None, :, :]                      # (1, 1, Tk) broadcast
    if causal:                                            # only traced when T > 1
        tq, tk = s.shape[1], s.shape[2]
        qpos = past_len + jax.lax.broadcasted_iota(jnp.int32, (tq, tk), 0)
        kpos = jax.lax.broadcasted_iota(jnp.int32, (tq, tk), 1)
        s = jnp.where((kpos <= qpos)[None, :, :], s, jnp.finfo(jnp.float32).min)

    s = s - jnp.max(s, axis=-1, keepdims=True)
    p = jnp.exp(s)
    p = p * pl.reciprocal(jnp.sum(p, axis=-1, keepdims=True), approx=True)

    o = jax.lax.dot_general(p, v, (((2,), (1,)), ((0,), (0,))),
                            preferred_element_type=jnp.float32)
    o_ref[0] = o.astype(o_ref.dtype)


def attention(q, k, v, mask=None, causal=False, past_len=0):
    """q: (B, H, Tq, Dh), k/v: (B, H, Tk, Dh), mask: (B, 1, Tk) additive or None."""
    B, H, Tq, Dh = q.shape
    Tk = k.shape[2]
    Hb = 8 if H % 8 == 0 else H          # heads per grid step (amortize launch)
    grid = (B, H // Hb)

    in_specs = [
        pl.BlockSpec((1, Hb, Tq, Dh), lambda b, h: (b, h, 0, 0)),
        pl.BlockSpec((1, Hb, Tk, Dh), lambda b, h: (b, h, 0, 0)),
        pl.BlockSpec((1, Hb, Tk, Dh), lambda b, h: (b, h, 0, 0)),
    ]
    args = [q, k, v]
    if mask is not None:
        in_specs.append(pl.BlockSpec((1, 1, Tk), lambda b, h: (b, 0, 0)))
        args.append(mask)

    return pl.pallas_call(
        partial(_attention_kernel, causal=causal, past_len=past_len,
                has_mask=mask is not None),
        out_shape=jax.ShapeDtypeStruct((B, H, Tq, Dh), q.dtype),
        grid=grid,
        in_specs=in_specs,
        out_specs=pl.BlockSpec((1, Hb, Tq, Dh), lambda b, h: (b, h, 0, 0)),
        compiler_params=pltpu.CompilerParams(
            dimension_semantics=("parallel", "parallel")),
    )(*args)


# ----------------------------------------------------------------------------
# Parameter construction (deterministic, synthetic) + offline prep
# ----------------------------------------------------------------------------
def init_params(key, cfg):
    d, ffn, V, L = cfg["d_model"], cfg["ffn_dim"], cfg["vocab_size"], cfg["num_layers"]
    keys = iter(jax.random.split(key, 64))

    def dense(shape):
        return jax.random.normal(next(keys), shape, jnp.float32) * 0.02

    params = {
        "embed_tokens": dense((V, d)),
        "final_ln_w": jnp.ones((d,), jnp.float32),
        "final_ln_b": jnp.zeros((d,), jnp.float32),
        "final_logits_bias": jnp.zeros((1, V), jnp.float32),  # buffer of zeros
    }
    params["lm_head_w"] = params["embed_tokens"].T            # tied weight (d, V)

    layers = []
    for _ in range(L):
        lp = {}
        for name in ["q", "k", "v", "o", "cq", "ck", "cv", "co"]:
            lp[name + "_w"] = dense((d, d))
            lp[name + "_b"] = dense((d,))
        lp["fc1_w"] = dense((d, ffn))
        lp["fc1_b"] = dense((ffn,))
        lp["fc2_w"] = dense((ffn, d))
        lp["fc2_b"] = dense((d,))
        for ln in ["sa_ln", "ca_ln", "f_ln"]:
            lp[ln + "_w"] = jnp.ones((d,), jnp.float32)
            lp[ln + "_b"] = jnp.zeros((d,), jnp.float32)
        layers.append(lp)
    params["layers"] = layers
    return params


def prepare_params(params, cfg):
    """One-time prep: fuse q/k/v into a single (d, 3d) matmul and fold the
    1/sqrt(head_dim) scaling into the q weights/biases (self + cross)."""
    d, H = cfg["d_model"], cfg["num_heads"]
    scaling = (d // H) ** -0.5
    new_layers = []
    for lp in params["layers"]:
        nl = dict(lp)
        nl["qkv_w"] = jnp.concatenate(
            [lp["q_w"] * scaling, lp["k_w"], lp["v_w"]], axis=1)
        nl["qkv_b"] = jnp.concatenate(
            [lp["q_b"] * scaling, lp["k_b"], lp["v_b"]], axis=0)
        nl["cq_w"] = lp["cq_w"] * scaling
        nl["cq_b"] = lp["cq_b"] * scaling
        new_layers.append(nl)
    out = dict(params)
    out["layers"] = new_layers
    return out


def sinusoidal_positions(n_pos, dim):
    # Pegasus SinusoidalPositionalEmbedding: [:, :dim//2]=sin, [:, dim//2:]=cos
    half = dim // 2
    freq = 1.0 / (10000.0 ** (2.0 * jnp.arange(half, dtype=jnp.float32) / dim))
    pos = jnp.arange(n_pos, dtype=jnp.float32)[:, None] * freq[None, :]
    return jnp.concatenate([jnp.sin(pos), jnp.cos(pos)], axis=1)


# ----------------------------------------------------------------------------
# Forward pass:  decoder(input_ids, enc_mask, enc_hidden, past_kv) -> lm_head + bias
# ----------------------------------------------------------------------------
def pegasus_decoder_with_lm_head(input_ids, attention_mask, encoder_hidden_states,
                                 list_pkv, params, cfg):
    # Regroup flat past key values exactly like the torch module does.
    past_key_values = tuple(tuple(list_pkv[i:i + 4]) for i in range(0, len(list_pkv), 4))

    B, T = input_ids.shape
    d, H = cfg["d_model"], cfg["num_heads"]
    hd = d // H
    past_len = past_key_values[0][0].shape[2]
    embed_scale = math.sqrt(d) if cfg["scale_embedding"] else 1.0
    neg = jnp.finfo(jnp.float32).min

    # Token + sinusoidal position embeddings (gather stays in plain-JAX glue).
    x = jnp.take(params["embed_tokens"], input_ids, axis=0) * embed_scale
    pos_table = sinusoidal_positions(cfg["max_position_embeddings"], d)
    x = x + jax.lax.dynamic_slice_in_dim(pos_table, past_len, T, axis=0)[None, :, :]

    # Encoder padding mask, additive, shared across heads & layers: (B, 1, enc_len).
    enc_mask = jnp.where(attention_mask > 0, 0.0, neg).astype(jnp.float32)[:, None, :]

    # Causal masking is only needed when T > 1 (it is built in-kernel from iota).
    causal = T > 1

    h2d = x.reshape(B * T, d)
    presents = []

    for lp, pkv in zip(params["layers"], past_key_values):
        past_k, past_v, cross_k, cross_v = pkv

        # --- self attention: fused pre-LN + QKV projection (q pre-scaled) ---
        qkv = ln_linear(h2d, lp["sa_ln_w"], lp["sa_ln_b"], lp["qkv_w"], lp["qkv_b"])
        q, k, v = jnp.split(qkv, 3, axis=-1)
        qh = q.reshape(B, T, H, hd).transpose(0, 2, 1, 3)       # (B, H, T, hd)
        kh = k.reshape(B, T, H, hd).transpose(0, 2, 1, 3)
        vh = v.reshape(B, T, H, hd).transpose(0, 2, 1, 3)
        # TODO(synk): a production decode loop would keep a preallocated
        # (B, H, max_len, hd) cache updated in place (input_output_aliases);
        # the module's contract returns the concatenated cache, so concat here.
        k_cat = jnp.concatenate([past_k, kh], axis=2)            # (B, H, total, hd)
        v_cat = jnp.concatenate([past_v, vh], axis=2)
        attn = attention(qh, k_cat, v_cat, mask=None, causal=causal, past_len=past_len)
        attn2d = attn.transpose(0, 2, 1, 3).reshape(B * T, d)
        h2d = linear(attn2d, lp["o_w"], lp["o_b"], residual=h2d)  # o-proj + residual

        # --- cross attention: cached encoder K/V reused (HF skips recompute) ---
        q = ln_linear(h2d, lp["ca_ln_w"], lp["ca_ln_b"], lp["cq_w"], lp["cq_b"])
        qh = q.reshape(B, T, H, hd).transpose(0, 2, 1, 3)
        attn = attention(qh, cross_k, cross_v, mask=enc_mask, causal=False)
        attn2d = attn.transpose(0, 2, 1, 3).reshape(B * T, d)
        h2d = linear(attn2d, lp["co_w"], lp["co_b"], residual=h2d)

        # --- feed forward: fused LN + fc1 + relu, then fc2 + residual ---
        h1 = ln_linear(h2d, lp["f_ln_w"], lp["f_ln_b"], lp["fc1_w"], lp["fc1_b"],
                       activation=cfg["activation_function"])
        h2d = linear(h1, lp["fc2_w"], lp["fc2_b"], residual=h2d)

        presents.append((k_cat, v_cat, cross_k, cross_v))

    # Final decoder layer norm fused with lm_head; final_logits_bias fused as the
    # matmul bias (lm_head itself has no bias). Vocab axis tiled lane-dense; the
    # VMEM-cached normalized activations are reused across every vocab tile.
    logits = ln_linear(h2d, params["final_ln_w"], params["final_ln_b"],
                       params["lm_head_w"], params["final_logits_bias"],
                       n_tile=1024)
    logits = logits.reshape(B, T, cfg["vocab_size"])
    return logits, tuple(presents)


# ----------------------------------------------------------------------------
if __name__ == "__main__":
    cfg = dict(
        vocab_size=96,
        d_model=32,
        num_heads=4,
        ffn_dim=64,
        num_layers=2,
        max_position_embeddings=64,
        scale_embedding=True,
        activation_function="relu",  # matches google/pegasus-* checkpoints
    )

    key = jax.random.PRNGKey(0)
    pkey, dkey = jax.random.split(key)
    params = prepare_params(init_params(pkey, cfg), cfg)

    B, T, past_len, enc_len = 2, 1, 4, 8
    H = cfg["num_heads"]
    hd = cfg["d_model"] // H

    ks = jax.random.split(dkey, 3 + 4 * cfg["num_layers"])
    input_ids = jax.random.randint(ks[0], (B, T), 0, cfg["vocab_size"])
    attention_mask = jnp.ones((B, enc_len), jnp.float32)  # encoder attention mask
    encoder_hidden_states = jax.random.normal(ks[1], (B, enc_len, cfg["d_model"]), jnp.float32)

    # Flat past_key_values list: per layer (self_k, self_v, cross_k, cross_v)
    list_pkv = []
    for layer_idx in range(cfg["num_layers"]):
        base = 3 + 4 * layer_idx
        list_pkv.append(jax.random.normal(ks[base + 0], (B, H, past_len, hd), jnp.float32))
        list_pkv.append(jax.random.normal(ks[base + 1], (B, H, past_len, hd), jnp.float32))
        list_pkv.append(jax.random.normal(ks[base + 2], (B, H, enc_len, hd), jnp.float32))
        list_pkv.append(jax.random.normal(ks[base + 3], (B, H, enc_len, hd), jnp.float32))

    # jit the whole forward so the plain-JAX glue between pallas_calls is fused
    # and the sinusoidal position table is constant-folded (cfg stays static).
    fwd = jax.jit(lambda ids, am, ehs, pkv, p:
                  pegasus_decoder_with_lm_head(ids, am, ehs, pkv, p, cfg))

    logits, presents = fwd(input_ids, attention_mask, encoder_hidden_states,
                           tuple(list_pkv), params)

    jax.block_until_ready(logits)
    jax.block_until_ready(presents)

    assert logits.shape == (B, T, cfg["vocab_size"])
    assert logits.dtype == jnp.float32
    assert len(presents) == cfg["num_layers"] and len(presents[0]) == 4
    assert presents[0][0].shape == (B, H, past_len + T, hd)   # updated self-attn cache
    assert presents[0][2].shape == (B, H, enc_len, hd)        # passed-through cross cache
    assert bool(jnp.all(jnp.isfinite(logits)))

    print("KERNEL_OK")
</pallas_src>

<mosaic_0001>
module attributes {stable_mosaic.version = 11 : i64} {
  func.func @_attention_kernel(%arg0: i32, %arg1: i32, %arg2: memref<1x4x1x8xf32, #tpu.memory_space<vmem>>, %arg3: memref<1x4x5x8xf32, #tpu.memory_space<vmem>>, %arg4: memref<1x4x5x8xf32, #tpu.memory_space<vmem>>, %arg5: memref<1x4x1x8xf32, #tpu.memory_space<vmem>>) attributes {dimension_semantics = [#tpu.dimension_semantics<parallel>, #tpu.dimension_semantics<parallel>], iteration_bounds = array<i64: 2, 1>, scalar_prefetch = 0 : i64, scratch_operands = 0 : i64, tpu.core_type = #tpu.core_type<tc>, window_params = [{transform_indices = @transform_0, window_bounds = array<i64: 1, 4, 1, 8>}, {transform_indices = @transform_1, window_bounds = array<i64: 1, 4, 5, 8>}, {transform_indices = @transform_2, window_bounds = array<i64: 1, 4, 5, 8>}, {transform_indices = @transform_3, window_bounds = array<i64: 1, 4, 1, 8>}]} {
    %c0 = arith.constant 0 : index
    %c0_0 = arith.constant 0 : index
    %c0_1 = arith.constant 0 : index
    %c0_2 = arith.constant 0 : index
    %0 = vector.load %arg2[%c0, %c0_0, %c0_1, %c0_2] : memref<1x4x1x8xf32, #tpu.memory_space<vmem>>, vector<1x4x1x8xf32>
    %1 = vector.shape_cast %0 : vector<1x4x1x8xf32> to vector<4x1x8xf32>
    %c0_3 = arith.constant 0 : index
    %c0_4 = arith.constant 0 : index
    %c0_5 = arith.constant 0 : index
    %c0_6 = arith.constant 0 : index
    %2 = vector.load %arg3[%c0_3, %c0_4, %c0_5, %c0_6] : memref<1x4x5x8xf32, #tpu.memory_space<vmem>>, vector<1x4x5x8xf32>
    %3 = vector.shape_cast %2 : vector<1x4x5x8xf32> to vector<4x5x8xf32>
    %c0_7 = arith.constant 0 : index
    %c0_8 = arith.constant 0 : index
    %c0_9 = arith.constant 0 : index
    %c0_10 = arith.constant 0 : index
    %4 = vector.load %arg4[%c0_7, %c0_8, %c0_9, %c0_10] : memref<1x4x5x8xf32, #tpu.memory_space<vmem>>, vector<1x4x5x8xf32>
    %5 = vector.shape_cast %4 : vector<1x4x5x8xf32> to vector<4x5x8xf32>
    %cst = arith.constant dense<0.000000e+00> : vector<4x1x5xf32>
    %6 = tpu.matmul %1, %3, %cst {dimension_numbers = #tpu.dot_dimension_numbers<[2], [2], [1], [1], [0, 0, 0, 1, 1, 1], [0], [0]>} : vector<4x1x8xf32>, vector<4x5x8xf32>, vector<4x1x5xf32> -> vector<4x1x5xf32>
    %cst_11 = arith.constant dense<0xFF800000> : vector<4x1xf32>
    %7 = vector.multi_reduction <maximumf>, %6, %cst_11 [2] : vector<4x1x5xf32> to vector<4x1xf32>
    %8 = vector.shape_cast %7 : vector<4x1xf32> to vector<4x1x1xf32>
    %9 = vector.broadcast %8 : vector<4x1x1xf32> to vector<4x1x5xf32>
    %10 = arith.subf %6, %9 : vector<4x1x5xf32>
    %11 = math.exp %10 : vector<4x1x5xf32>
    %cst_12 = arith.constant dense<0.000000e+00> : vector<4x1xf32>
    %12 = vector.multi_reduction <add>, %11, %cst_12 [2] : vector<4x1x5xf32> to vector<4x1xf32>
    %13 = vector.shape_cast %12 : vector<4x1xf32> to vector<4x1x1xf32>
    %14 = tpu.reciprocal %13 {approx = true} : vector<4x1x1xf32> -> vector<4x1x1xf32>
    %15 = vector.broadcast %14 : vector<4x1x1xf32> to vector<4x1x5xf32>
    %16 = arith.mulf %11, %15 : vector<4x1x5xf32>
    %cst_13 = arith.constant dense<0.000000e+00> : vector<4x1x8xf32>
    %17 = tpu.matmul %16, %5, %cst_13 {dimension_numbers = #tpu.dot_dimension_numbers<[2], [1], [1], [2], [0, 0, 0, 1, 1, 2], [0], [0]>} : vector<4x1x5xf32>, vector<4x5x8xf32>, vector<4x1x8xf32> -> vector<4x1x8xf32>
    %c0_14 = arith.constant 0 : index
    %c0_15 = arith.constant 0 : index
    %c0_16 = arith.constant 0 : index
    %c0_17 = arith.constant 0 : index
    %18 = vector.load %arg5[%c0_14, %c0_15, %c0_16, %c0_17] : memref<1x4x1x8xf32, #tpu.memory_space<vmem>>, vector<1x4x1x8xf32>
    %19 = vector.shape_cast %18 : vector<1x4x1x8xf32> to vector<4x1x8xf32>
    %20 = vector.shape_cast %17 : vector<4x1x8xf32> to vector<1x4x1x8xf32>
    tpu.vector_store %arg5[%c0_14, %c0_15, %c0_16, %c0_17], %20 {strides = array<i32>} : memref<1x4x1x8xf32, #tpu.memory_space<vmem>>, vector<1x4x1x8xf32>,
    return
  }
  func.func @transform_0(%arg0: i32, %arg1: i32) -> (i32, i32, i32, i32) {
    %c0_i32 = arith.constant 0 : i32
    %c0_i32_0 = arith.constant 0 : i32
    %c0_i32_1 = arith.constant 0 : i32
    return %arg0, %arg1, %c0_i32, %c0_i32_0 : i32, i32, i32, i32
  }
  func.func @transform_1(%arg0: i32, %arg1: i32) -> (i32, i32, i32, i32) {
    %c0_i32 = arith.constant 0 : i32
    %c0_i32_0 = arith.constant 0 : i32
    %c0_i32_1 = arith.constant 0 : i32
    return %arg0, %arg1, %c0_i32, %c0_i32_0 : i32, i32, i32, i32
  }
  func.func @transform_2(%arg0: i32, %arg1: i32) -> (i32, i32, i32, i32) {
    %c0_i32 = arith.constant 0 : i32
    %c0_i32_0 = arith.constant 0 : i32
    %c0_i32_1 = arith.constant 0 : i32
    return %arg0, %arg1, %c0_i32, %c0_i32_0 : i32, i32, i32, i32
  }
  func.func @transform_3(%arg0: i32, %arg1: i32) -> (i32, i32, i32, i32) {
    %c0_i32 = arith.constant 0 : i32
    %c0_i32_0 = arith.constant 0 : i32
    %c0_i32_1 = arith.constant 0 : i32
    return %arg0, %arg1, %c0_i32, %c0_i32_0 : i32, i32, i32, i32
  }
}

module attributes {stable_mosaic.version = 11 : i64} {
  func.func @_ln_linear_kernel(%arg0: i32, %arg1: i32, %arg2: memref<2x32xf32, #tpu.memory_space<vmem>>, %arg3: memref<1x32xf32, #tpu.memory_space<vmem>>, %arg4: memref<1x32xf32, #tpu.memory_space<vmem>>, %arg5: memref<32x96xf32, #tpu.memory_space<vmem>>, %arg6: memref<1x96xf32, #tpu.memory_space<vmem>>, %arg7: memref<2x96xf32, #tpu.memory_space<vmem>>, %arg8: memref<2x32xf32, #tpu.memory_space<vmem>>) attributes {dimension_semantics = [#tpu.dimension_semantics<parallel>, #tpu.dimension_semantics<arbitrary>], iteration_bounds = array<i64: 1, 1>, scalar_prefetch = 0 : i64, scratch_operands = 1 : i64, tpu.core_type = #tpu.core_type<tc>, window_params = [{transform_indices = @transform_0, window_bounds = array<i64: 2, 32>}, {pipeline_mode = #tpu.pipeline_mode<synchronous>, transform_indices = @transform_1, window_bounds = array<i64: 1, 32>}, {pipeline_mode = #tpu.pipeline_mode<synchronous>, transform_indices = @transform_2, window_bounds = array<i64: 1, 32>}, {transform_indices = @transform_3, window_bounds = array<i64: 32, 96>}, {transform_indices = @transform_4, window_bounds = array<i64: 1, 96>}, {transform_indices = @transform_5, window_bounds = array<i64: 2, 96>}]} {
    %c0_i32 = arith.constant 0 : i32
    %0 = arith.cmpi eq, %arg1, %c0_i32 : i32
    %1 = arith.extui %0 : i1 to i32
    %c0_i32_0 = arith.constant 0 : i32
    %2 = arith.cmpi ne, %1, %c0_i32_0 : i32
    scf.if %2 {
      %c0_8 = arith.constant 0 : index
      %c0_9 = arith.constant 0 : index
      %10 = vector.load %arg2[%c0_8, %c0_9] : memref<2x32xf32, #tpu.memory_space<vmem>>, vector<2x32xf32>
      %cst_10 = arith.constant dense<0.000000e+00> : vector<2xf32>
      %11 = vector.multi_reduction <add>, %10, %cst_10 [1] : vector<2x32xf32> to vector<2xf32>
      %12 = vector.shape_cast %11 : vector<2xf32> to vector<2x1xf32>
      %cst_11 = arith.constant 3.200000e+01 : f32
      %13 = vector.broadcast %cst_11 : f32 to vector<2x1xf32>
      %14 = arith.divf %12, %13 : vector<2x1xf32>
      %15 = vector.broadcast %14 : vector<2x1xf32> to vector<2x32xf32>
      %16 = arith.subf %10, %15 : vector<2x32xf32>
      %17 = arith.mulf %16, %16 : vector<2x32xf32>
      %cst_12 = arith.constant dense<0.000000e+00> : vector<2xf32>
      %18 = vector.multi_reduction <add>, %17, %cst_12 [1] : vector<2x32xf32> to vector<2xf32>
      %19 = vector.shape_cast %18 : vector<2xf32> to vector<2x1xf32>
      %cst_13 = arith.constant 3.200000e+01 : f32
      %20 = vector.broadcast %cst_13 : f32 to vector<2x1xf32>
      %21 = arith.divf %19, %20 : vector<2x1xf32>
      %22 = vector.broadcast %14 : vector<2x1xf32> to vector<2x32xf32>
      %23 = arith.subf %10, %22 : vector<2x32xf32>
      %cst_14 = arith.constant 9.99999974E-6 : f32
      %24 = vector.broadcast %cst_14 : f32 to vector<2x1xf32>
      %25 = arith.addf %21, %24 : vector<2x1xf32>
      %26 = math.rsqrt %25 : vector<2x1xf32>
      %27 = vector.broadcast %26 : vector<2x1xf32> to vector<2x32xf32>
      %28 = arith.mulf %23, %27 : vector<2x32xf32>
      %c0_15 = arith.constant 0 : index
      %c0_16 = arith.constant 0 : index
      %29 = vector.load %arg3[%c0_15, %c0_16] : memref<1x32xf32, #tpu.memory_space<vmem>>, vector<1x32xf32>
      %30 = vector.broadcast %29 : vector<1x32xf32> to vector<2x32xf32>
      %31 = arith.mulf %28, %30 : vector<2x32xf32>
      %c0_17 = arith.constant 0 : index
      %c0_18 = arith.constant 0 : index
      %32 = vector.load %arg4[%c0_17, %c0_18] : memref<1x32xf32, #tpu.memory_space<vmem>>, vector<1x32xf32>
      %33 = vector.broadcast %32 : vector<1x32xf32> to vector<2x32xf32>
      %34 = arith.addf %31, %33 : vector<2x32xf32>
      %c0_19 = arith.constant 0 : index
      %c0_20 = arith.constant 0 : index
      %35 = vector.load %arg8[%c0_19, %c0_20] : memref<2x32xf32, #tpu.memory_space<vmem>>, vector<2x32xf32>
      tpu.vector_store %arg8[%c0_19, %c0_20], %34 {strides = array<i32>} : memref<2x32xf32, #tpu.memory_space<vmem>>, vector<2x32xf32>,
    } else {
    }
    %c0 = arith.constant 0 : index
    %c0_1 = arith.constant 0 : index
    %3 = vector.load %arg8[%c0, %c0_1] : memref<2x32xf32, #tpu.memory_space<vmem>>, vector<2x32xf32>
    %c0_2 = arith.constant 0 : index
    %c0_3 = arith.constant 0 : index
    %4 = vector.load %arg5[%c0_2, %c0_3] : memref<32x96xf32, #tpu.memory_space<vmem>>, vector<32x96xf32>
    %cst = arith.constant dense<0.000000e+00> : vector<2x96xf32>
    %5 = tpu.matmul %3, %4, %cst {dimension_numbers = #tpu.dot_dimension_numbers<[1], [0], [0], [1], [0, 0, 1, 1], [], []>} : vector<2x32xf32>, vector<32x96xf32>, vector<2x96xf32> -> vector<2x96xf32>
    %c0_4 = arith.constant 0 : index
    %c0_5 = arith.constant 0 : index
    %6 = vector.load %arg6[%c0_4, %c0_5] : memref<1x96xf32, #tpu.memory_space<vmem>>, vector<1x96xf32>
    %7 = vector.broadcast %6 : vector<1x96xf32> to vector<2x96xf32>
    %8 = arith.addf %5, %7 : vector<2x96xf32>
    %c0_6 = arith.constant 0 : index
    %c0_7 = arith.constant 0 : index
    %9 = vector.load %arg7[%c0_6, %c0_7] : memref<2x96xf32, #tpu.memory_space<vmem>>, vector<2x96xf32>
    tpu.vector_store %arg7[%c0_6, %c0_7], %8 {strides = array<i32>} : memref<2x96xf32, #tpu.memory_space<vmem>>, vector<2x96xf32>,
    return
  }
  func.func @transform_0(%arg0: i32, %arg1: i32) -> (i32, i32) {
    %c0_i32 = arith.constant 0 : i32
    %c0_i32_0 = arith.constant 0 : i32
    return %arg0, %c0_i32 : i32, i32
  }
  func.func @transform_1(%arg0: i32, %arg1: i32) -> (i32, i32) {
    %c0_i32 = arith.constant 0 : i32
    %c0_i32_0 = arith.constant 0 : i32
    %c0_i32_1 = arith.constant 0 : i32
    return %c0_i32, %c0_i32_0 : i32, i32
  }
  func.func @transform_2(%arg0: i32, %arg1: i32) -> (i32, i32) {
    %c0_i32 = arith.constant 0 : i32
    %c0_i32_0 = arith.constant 0 : i32
    %c0_i32_1 = arith.constant 0 : i32
    return %c0_i32, %c0_i32_0 : i32, i32
  }
  func.func @transform_3(%arg0: i32, %arg1: i32) -> (i32, i32) {
    %c0_i32 = arith.constant 0 : i32
    %c0_i32_0 = arith.constant 0 : i32
    return %c0_i32, %arg1 : i32, i32
  }
  func.func @transform_4(%arg0: i32, %arg1: i32) -> (i32, i32) {
    %c0_i32 = arith.constant 0 : i32
    %c0_i32_0 = arith.constant 0 : i32
    return %c0_i32, %arg1 : i32, i32
  }
  func.func @transform_5(%arg0: i32, %arg1: i32) -> (i32, i32) {
    %c0_i32 = arith.constant 0 : i32
    return %arg0, %arg1 : i32, i32
  }
}

module attributes {stable_mosaic.version = 11 : i64} {
  func.func @_ln_linear_kernel(%arg0: i32, %arg1: i32, %arg2: memref<2x32xf32, #tpu.memory_space<vmem>>, %arg3: memref<1x32xf32, #tpu.memory_space<vmem>>, %arg4: memref<1x32xf32, #tpu.memory_space<vmem>>, %arg5: memref<32x32xf32, #tpu.memory_space<vmem>>, %arg6: memref<1x32xf32, #tpu.memory_space<vmem>>, %arg7: memref<2x32xf32, #tpu.memory_space<vmem>>, %arg8: memref<2x32xf32, #tpu.memory_space<vmem>>) attributes {dimension_semantics = [#tpu.dimension_semantics<parallel>, #tpu.dimension_semantics<arbitrary>], iteration_bounds = array<i64: 1, 1>, scalar_prefetch = 0 : i64, scratch_operands = 1 : i64, tpu.core_type = #tpu.core_type<tc>, window_params = [{transform_indices = @transform_0, window_bounds = array<i64: 2, 32>}, {pipeline_mode = #tpu.pipeline_mode<synchronous>, transform_indices = @transform_1, window_bounds = array<i64: 1, 32>}, {pipeline_mode = #tpu.pipeline_mode<synchronous>, transform_indices = @transform_2, window_bounds = array<i64: 1, 32>}, {transform_indices = @transform_3, window_bounds = array<i64: 32, 32>}, {transform_indices = @transform_4, window_bounds = array<i64: 1, 32>}, {transform_indices = @transform_5, window_bounds = array<i64: 2, 32>}]} {
    %c0_i32 = arith.constant 0 : i32
    %0 = arith.cmpi eq, %arg1, %c0_i32 : i32
    %1 = arith.extui %0 : i1 to i32
    %c0_i32_0 = arith.constant 0 : i32
    %2 = arith.cmpi ne, %1, %c0_i32_0 : i32
    scf.if %2 {
      %c0_8 = arith.constant 0 : index
      %c0_9 = arith.constant 0 : index
      %10 = vector.load %arg2[%c0_8, %c0_9] : memref<2x32xf32, #tpu.memory_space<vmem>>, vector<2x32xf32>
      %cst_10 = arith.constant dense<0.000000e+00> : vector<2xf32>
      %11 = vector.multi_reduction <add>, %10, %cst_10 [1] : vector<2x32xf32> to vector<2xf32>
      %12 = vector.shape_cast %11 : vector<2xf32> to vector<2x1xf32>
      %cst_11 = arith.constant 3.200000e+01 : f32
      %13 = vector.broadcast %cst_11 : f32 to vector<2x1xf32>
      %14 = arith.divf %12, %13 : vector<2x1xf32>
      %15 = vector.broadcast %14 : vector<2x1xf32> to vector<2x32xf32>
      %16 = arith.subf %10, %15 : vector<2x32xf32>
      %17 = arith.mulf %16, %16 : vector<2x32xf32>
      %cst_12 = arith.constant dense<0.000000e+00> : vector<2xf32>
      %18 = vector.multi_reduction <add>, %17, %cst_12 [1] : vector<2x32xf32> to vector<2xf32>
      %19 = vector.shape_cast %18 : vector<2xf32> to vector<2x1xf32>
      %cst_13 = arith.constant 3.200000e+01 : f32
      %20 = vector.broadcast %cst_13 : f32 to vector<2x1xf32>
      %21 = arith.divf %19, %20 : vector<2x1xf32>
      %22 = vector.broadcast %14 : vector<2x1xf32> to vector<2x32xf32>
      %23 = arith.subf %10, %22 : vector<2x32xf32>
      %cst_14 = arith.constant 9.99999974E-6 : f32
      %24 = vector.broadcast %cst_14 : f32 to vector<2x1xf32>
      %25 = arith.addf %21, %24 : vector<2x1xf32>
      %26 = math.rsqrt %25 : vector<2x1xf32>
      %27 = vector.broadcast %26 : vector<2x1xf32> to vector<2x32xf32>
      %28 = arith.mulf %23, %27 : vector<2x32xf32>
      %c0_15 = arith.constant 0 : index
      %c0_16 = arith.constant 0 : index
      %29 = vector.load %arg3[%c0_15, %c0_16] : memref<1x32xf32, #tpu.memory_space<vmem>>, vector<1x32xf32>
      %30 = vector.broadcast %29 : vector<1x32xf32> to vector<2x32xf32>
      %31 = arith.mulf %28, %30 : vector<2x32xf32>
      %c0_17 = arith.constant 0 : index
      %c0_18 = arith.constant 0 : index
      %32 = vector.load %arg4[%c0_17, %c0_18] : memref<1x32xf32, #tpu.memory_space<vmem>>, vector<1x32xf32>
      %33 = vector.broadcast %32 : vector<1x32xf32> to vector<2x32xf32>
      %34 = arith.addf %31, %33 : vector<2x32xf32>
      %c0_19 = arith.constant 0 : index
      %c0_20 = arith.constant 0 : index
      %35 = vector.load %arg8[%c0_19, %c0_20] : memref<2x32xf32, #tpu.memory_space<vmem>>, vector<2x32xf32>
      tpu.vector_store %arg8[%c0_19, %c0_20], %34 {strides = array<i32>} : memref<2x32xf32, #tpu.memory_space<vmem>>, vector<2x32xf32>,
    } else {
    }
    %c0 = arith.constant 0 : index
    %c0_1 = arith.constant 0 : index
    %3 = vector.load %arg8[%c0, %c0_1] : memref<2x32xf32, #tpu.memory_space<vmem>>, vector<2x32xf32>
    %c0_2 = arith.constant 0 : index
    %c0_3 = arith.constant 0 : index
    %4 = vector.load %arg5[%c0_2, %c0_3] : memref<32x32xf32, #tpu.memory_space<vmem>>, vector<32x32xf32>
    %cst = arith.constant dense<0.000000e+00> : vector<2x32xf32>
    %5 = tpu.matmul %3, %4, %cst {dimension_numbers = #tpu.dot_dimension_numbers<[1], [0], [0], [1], [0, 0, 1, 1], [], []>} : vector<2x32xf32>, vector<32x32xf32>, vector<2x32xf32> -> vector<2x32xf32>
    %c0_4 = arith.constant 0 : index
    %c0_5 = arith.constant 0 : index
    %6 = vector.load %arg6[%c0_4, %c0_5] : memref<1x32xf32, #tpu.memory_space<vmem>>, vector<1x32xf32>
    %7 = vector.broadcast %6 : vector<1x32xf32> to vector<2x32xf32>
    %8 = arith.addf %5, %7 : vector<2x32xf32>
    %c0_6 = arith.constant 0 : index
    %c0_7 = arith.constant 0 : index
    %9 = vector.load %arg7[%c0_6, %c0_7] : memref<2x32xf32, #tpu.memory_space<vmem>>, vector<2x32xf32>
    tpu.vector_store %arg7[%c0_6, %c0_7], %8 {strides = array<i32>} : memref<2x32xf32, #tpu.memory_space<vmem>>, vector<2x32xf32>,
    return
  }
  func.func @transform_0(%arg0: i32, %arg1: i32) -> (i32, i32) {
    %c0_i32 = arith.constant 0 : i32
    %c0_i32_0 = arith.constant 0 : i32
    return %arg0, %c0_i32 : i32, i32
  }
  func.func @transform_1(%arg0: i32, %arg1: i32) -> (i32, i32) {
    %c0_i32 = arith.constant 0 : i32
    %c0_i32_0 = arith.constant 0 : i32
    %c0_i32_1 = arith.constant 0 : i32
    return %c0_i32, %c0_i32_0 : i32, i32
  }
  func.func @transform_2(%arg0: i32, %arg1: i32) -> (i32, i32) {
    %c0_i32 = arith.constant 0 : i32
    %c0_i32_0 = arith.constant 0 : i32
    %c0_i32_1 = arith.constant 0 : i32
    return %c0_i32, %c0_i32_0 : i32, i32
  }
  func.func @transform_3(%arg0: i32, %arg1: i32) -> (i32, i32) {
    %c0_i32 = arith.constant 0 : i32
    %c0_i32_0 = arith.constant 0 : i32
    return %c0_i32, %arg1 : i32, i32
  }
  func.func @transform_4(%arg0: i32, %arg1: i32) -> (i32, i32) {
    %c0_i32 = arith.constant 0 : i32
    %c0_i32_0 = arith.constant 0 : i32
    return %c0_i32, %arg1 : i32, i32
  }
  func.func @transform_5(%arg0: i32, %arg1: i32) -> (i32, i32) {
    %c0_i32 = arith.constant 0 : i32
    return %arg0, %arg1 : i32, i32
  }
}

module attributes {stable_mosaic.version = 11 : i64} {
  func.func @_linear_kernel(%arg0: i32, %arg1: i32, %arg2: i32, %arg3: memref<2x32xf32, #tpu.memory_space<vmem>>, %arg4: memref<32x32xf32, #tpu.memory_space<vmem>>, %arg5: memref<1x32xf32, #tpu.memory_space<vmem>>, %arg6: memref<2x32xf32, #tpu.memory_space<vmem>>, %arg7: memref<2x32xf32, #tpu.memory_space<vmem>>, %arg8: memref<2x32xf32, #tpu.memory_space<vmem>>) attributes {dimension_semantics = [#tpu.dimension_semantics<parallel>, #tpu.dimension_semantics<parallel>, #tpu.dimension_semantics<arbitrary>], iteration_bounds = array<i64: 1, 1, 1>, scalar_prefetch = 0 : i64, scratch_operands = 1 : i64, tpu.core_type = #tpu.core_type<tc>, window_params = [{transform_indices = @transform_0, window_bounds = array<i64: 2, 32>}, {transform_indices = @transform_1, window_bounds = array<i64: 32, 32>}, {transform_indices = @transform_2, window_bounds = array<i64: 1, 32>}, {transform_indices = @transform_3, window_bounds = array<i64: 2, 32>}, {transform_indices = @transform_4, window_bounds = array<i64: 2, 32>}]} {
    %c0_i32 = arith.constant 0 : i32
    %0 = arith.cmpi eq, %arg2, %c0_i32 : i32
    %1 = arith.extui %0 : i1 to i32
    %c0_i32_0 = arith.constant 0 : i32
    %2 = arith.cmpi ne, %1, %c0_i32_0 : i32
    scf.if %2 {
      %cst_10 = arith.constant 0.000000e+00 : f32
      %12 = vector.broadcast %cst_10 : f32 to vector<2x32xf32>
      %c0_11 = arith.constant 0 : index
      %c0_12 = arith.constant 0 : index
      %13 = vector.load %arg8[%c0_11, %c0_12] : memref<2x32xf32, #tpu.memory_space<vmem>>, vector<2x32xf32>
      tpu.vector_store %arg8[%c0_11, %c0_12], %12 {strides = array<i32>} : memref<2x32xf32, #tpu.memory_space<vmem>>, vector<2x32xf32>,
    } else {
    }
    %c0 = arith.constant 0 : index
    %c0_1 = arith.constant 0 : index
    %3 = vector.load %arg8[%c0, %c0_1] : memref<2x32xf32, #tpu.memory_space<vmem>>, vector<2x32xf32>
    %c0_2 = arith.constant 0 : index
    %c0_3 = arith.constant 0 : index
    %4 = vector.load %arg3[%c0_2, %c0_3] : memref<2x32xf32, #tpu.memory_space<vmem>>, vector<2x32xf32>
    %c0_4 = arith.constant 0 : index
    %c0_5 = arith.constant 0 : index
    %5 = vector.load %arg4[%c0_4, %c0_5] : memref<32x32xf32, #tpu.memory_space<vmem>>, vector<32x32xf32>
    %cst = arith.constant dense<0.000000e+00> : vector<2x32xf32>
    %6 = tpu.matmul %4, %5, %cst {dimension_numbers = #tpu.dot_dimension_numbers<[1], [0], [0], [1], [0, 0, 1, 1], [], []>} : vector<2x32xf32>, vector<32x32xf32>, vector<2x32xf32> -> vector<2x32xf32>
    %7 = arith.addf %3, %6 : vector<2x32xf32>
    %c0_6 = arith.constant 0 : index
    %c0_7 = arith.constant 0 : index
    %8 = vector.load %arg8[%c0_6, %c0_7] : memref<2x32xf32, #tpu.memory_space<vmem>>, vector<2x32xf32>
    tpu.vector_store %arg8[%c0_6, %c0_7], %7 {strides = array<i32>} : memref<2x32xf32, #tpu.memory_space<vmem>>, vector<2x32xf32>,
    %c0_i32_8 = arith.constant 0 : i32
    %9 = arith.cmpi eq, %arg2, %c0_i32_8 : i32
    %10 = arith.extui %9 : i1 to i32
    %c0_i32_9 = arith.constant 0 : i32
    %11 = arith.cmpi ne, %10, %c0_i32_9 : i32
    scf.if %11 {
      %c0_10 = arith.constant 0 : index
      %c0_11 = arith.constant 0 : index
      %12 = vector.load %arg8[%c0_10, %c0_11] : memref<2x32xf32, #tpu.memory_space<vmem>>, vector<2x32xf32>
      %c0_12 = arith.constant 0 : index
      %c0_13 = arith.constant 0 : index
      %13 = vector.load %arg5[%c0_12, %c0_13] : memref<1x32xf32, #tpu.memory_space<vmem>>, vector<1x32xf32>
      %14 = vector.broadcast %13 : vector<1x32xf32> to vector<2x32xf32>
      %15 = arith.addf %12, %14 : vector<2x32xf32>
      %c0_14 = arith.constant 0 : index
      %c0_15 = arith.constant 0 : index
      %16 = vector.load %arg6[%c0_14, %c0_15] : memref<2x32xf32, #tpu.memory_space<vmem>>, vector<2x32xf32>
      %17 = arith.addf %15, %16 : vector<2x32xf32>
      %c0_16 = arith.constant 0 : index
      %c0_17 = arith.constant 0 : index
      %18 = vector.load %arg7[%c0_16, %c0_17] : memref<2x32xf32, #tpu.memory_space<vmem>>, vector<2x32xf32>
      tpu.vector_store %arg7[%c0_16, %c0_17], %17 {strides = array<i32>} : memref<2x32xf32, #tpu.memory_space<vmem>>, vector<2x32xf32>,
    } else {
    }
    return
  }
  func.func @transform_0(%arg0: i32, %arg1: i32, %arg2: i32) -> (i32, i32) {
    %c0_i32 = arith.constant 0 : i32
    return %arg0, %arg2 : i32, i32
  }
  func.func @transform_1(%arg0: i32, %arg1: i32, %arg2: i32) -> (i32, i32) {
    %c0_i32 = arith.constant 0 : i32
    return %arg2, %arg1 : i32, i32
  }
  func.func @transform_2(%arg0: i32, %arg1: i32, %arg2: i32) -> (i32, i32) {
    %c0_i32 = arith.constant 0 : i32
    %c0_i32_0 = arith.constant 0 : i32
    return %c0_i32, %arg1 : i32, i32
  }
  func.func @transform_3(%arg0: i32, %arg1: i32, %arg2: i32) -> (i32, i32) {
    %c0_i32 = arith.constant 0 : i32
    return %arg0, %arg1 : i32, i32
  }
  func.func @transform_4(%arg0: i32, %arg1: i32, %arg2: i32) -> (i32, i32) {
    %c0_i32 = arith.constant 0 : i32
    return %arg0, %arg1 : i32, i32
  }
}

module attributes {stable_mosaic.version = 11 : i64} {
  func.func @_attention_kernel(%arg0: i32, %arg1: i32, %arg2: memref<1x4x1x8xf32, #tpu.memory_space<vmem>>, %arg3: memref<1x4x8x8xf32, #tpu.memory_space<vmem>>, %arg4: memref<1x4x8x8xf32, #tpu.memory_space<vmem>>, %arg5: memref<1x1x8xf32, #tpu.memory_space<vmem>>, %arg6: memref<1x4x1x8xf32, #tpu.memory_space<vmem>>) attributes {dimension_semantics = [#tpu.dimension_semantics<parallel>, #tpu.dimension_semantics<parallel>], iteration_bounds = array<i64: 2, 1>, scalar_prefetch = 0 : i64, scratch_operands = 0 : i64, tpu.core_type = #tpu.core_type<tc>, window_params = [{transform_indices = @transform_0, window_bounds = array<i64: 1, 4, 1, 8>}, {transform_indices = @transform_1, window_bounds = array<i64: 1, 4, 8, 8>}, {transform_indices = @transform_2, window_bounds = array<i64: 1, 4, 8, 8>}, {transform_indices = @transform_3, window_bounds = array<i64: 1, 1, 8>}, {transform_indices = @transform_4, window_bounds = array<i64: 1, 4, 1, 8>}]} {
    %c0 = arith.constant 0 : index
    %c0_0 = arith.constant 0 : index
    %c0_1 = arith.constant 0 : index
    %c0_2 = arith.constant 0 : index
    %0 = vector.load %arg2[%c0, %c0_0, %c0_1, %c0_2] : memref<1x4x1x8xf32, #tpu.memory_space<vmem>>, vector<1x4x1x8xf32>
    %1 = vector.shape_cast %0 : vector<1x4x1x8xf32> to vector<4x1x8xf32>
    %c0_3 = arith.constant 0 : index
    %c0_4 = arith.constant 0 : index
    %c0_5 = arith.constant 0 : index
    %c0_6 = arith.constant 0 : index
    %2 = vector.load %arg3[%c0_3, %c0_4, %c0_5, %c0_6] : memref<1x4x8x8xf32, #tpu.memory_space<vmem>>, vector<1x4x8x8xf32>
    %3 = vector.shape_cast %2 : vector<1x4x8x8xf32> to vector<4x8x8xf32>
    %c0_7 = arith.constant 0 : index
    %c0_8 = arith.constant 0 : index
    %c0_9 = arith.constant 0 : index
    %c0_10 = arith.constant 0 : index
    %4 = vector.load %arg4[%c0_7, %c0_8, %c0_9, %c0_10] : memref<1x4x8x8xf32, #tpu.memory_space<vmem>>, vector<1x4x8x8xf32>
    %5 = vector.shape_cast %4 : vector<1x4x8x8xf32> to vector<4x8x8xf32>
    %cst = arith.constant dense<0.000000e+00> : vector<4x1x8xf32>
    %6 = tpu.matmul %1, %3, %cst {dimension_numbers = #tpu.dot_dimension_numbers<[2], [2], [1], [1], [0, 0, 0, 1, 1, 1], [0], [0]>} : vector<4x1x8xf32>, vector<4x8x8xf32>, vector<4x1x8xf32> -> vector<4x1x8xf32>
    %c0_11 = arith.constant 0 : index
    %c0_12 = arith.constant 0 : index
    %c0_13 = arith.constant 0 : index
    %7 = vector.load %arg5[%c0_11, %c0_12, %c0_13] : memref<1x1x8xf32, #tpu.memory_space<vmem>>, vector<1x1x8xf32>
    %8 = vector.shape_cast %7 : vector<1x1x8xf32> to vector<1x8xf32>
    %9 = vector.shape_cast %8 : vector<1x8xf32> to vector<1x1x8xf32>
    %10 = vector.broadcast %9 : vector<1x1x8xf32> to vector<4x1x8xf32>
    %11 = arith.addf %6, %10 : vector<4x1x8xf32>
    %cst_14 = arith.constant dense<0xFF800000> : vector<4x1xf32>
    %12 = vector.multi_reduction <maximumf>, %11, %cst_14 [2] : vector<4x1x8xf32> to vector<4x1xf32>
    %13 = vector.shape_cast %12 : vector<4x1xf32> to vector<4x1x1xf32>
    %14 = vector.broadcast %13 : vector<4x1x1xf32> to vector<4x1x8xf32>
    %15 = arith.subf %11, %14 : vector<4x1x8xf32>
    %16 = math.exp %15 : vector<4x1x8xf32>
    %cst_15 = arith.constant dense<0.000000e+00> : vector<4x1xf32>
    %17 = vector.multi_reduction <add>, %16, %cst_15 [2] : vector<4x1x8xf32> to vector<4x1xf32>
    %18 = vector.shape_cast %17 : vector<4x1xf32> to vector<4x1x1xf32>
    %19 = tpu.reciprocal %18 {approx = true} : vector<4x1x1xf32> -> vector<4x1x1xf32>
    %20 = vector.broadcast %19 : vector<4x1x1xf32> to vector<4x1x8xf32>
    %21 = arith.mulf %16, %20 : vector<4x1x8xf32>
    %cst_16 = arith.constant dense<0.000000e+00> : vector<4x1x8xf32>
    %22 = tpu.matmul %21, %5, %cst_16 {dimension_numbers = #tpu.dot_dimension_numbers<[2], [1], [1], [2], [0, 0, 0, 1, 1, 2], [0], [0]>} : vector<4x1x8xf32>, vector<4x8x8xf32>, vector<4x1x8xf32> -> vector<4x1x8xf32>
    %c0_17 = arith.constant 0 : index
    %c0_18 = arith.constant 0 : index
    %c0_19 = arith.constant 0 : index
    %c0_20 = arith.constant 0 : index
    %23 = vector.load %arg6[%c0_17, %c0_18, %c0_19, %c0_20] : memref<1x4x1x8xf32, #tpu.memory_space<vmem>>, vector<1x4x1x8xf32>
    %24 = vector.shape_cast %23 : vector<1x4x1x8xf32> to vector<4x1x8xf32>
    %25 = vector.shape_cast %22 : vector<4x1x8xf32> to vector<1x4x1x8xf32>
    tpu.vector_store %arg6[%c0_17, %c0_18, %c0_19, %c0_20], %25 {strides = array<i32>} : memref<1x4x1x8xf32, #tpu.memory_space<vmem>>, vector<1x4x1x8xf32>,
    return
  }
  func.func @transform_0(%arg0: i32, %arg1: i32) -> (i32, i32, i32, i32) {
    %c0_i32 = arith.constant 0 : i32
    %c0_i32_0 = arith.constant 0 : i32
    %c0_i32_1 = arith.constant 0 : i32
    return %arg0, %arg1, %c0_i32, %c0_i32_0 : i32, i32, i32, i32
  }
  func.func @transform_1(%arg0: i32, %arg1: i32) -> (i32, i32, i32, i32) {
    %c0_i32 = arith.constant 0 : i32
    %c0_i32_0 = arith.constant 0 : i32
    %c0_i32_1 = arith.constant 0 : i32
    return %arg0, %arg1, %c0_i32, %c0_i32_0 : i32, i32, i32, i32
  }
  func.func @transform_2(%arg0: i32, %arg1: i32) -> (i32, i32, i32, i32) {
    %c0_i32 = arith.constant 0 : i32
    %c0_i32_0 = arith.constant 0 : i32
    %c0_i32_1 = arith.constant 0 : i32
    return %arg0, %arg1, %c0_i32, %c0_i32_0 : i32, i32, i32, i32
  }
  func.func @transform_3(%arg0: i32, %arg1: i32) -> (i32, i32, i32) {
    %c0_i32 = arith.constant 0 : i32
    %c0_i32_0 = arith.constant 0 : i32
    %c0_i32_1 = arith.constant 0 : i32
    return %arg0, %c0_i32, %c0_i32_0 : i32, i32, i32
  }
  func.func @transform_4(%arg0: i32, %arg1: i32) -> (i32, i32, i32, i32) {
    %c0_i32 = arith.constant 0 : i32
    %c0_i32_0 = arith.constant 0 : i32
    %c0_i32_1 = arith.constant 0 : i32
    return %arg0, %arg1, %c0_i32, %c0_i32_0 : i32, i32, i32, i32
  }
}

module attributes {stable_mosaic.version = 11 : i64} {
  func.func @_ln_linear_kernel(%arg0: i32, %arg1: i32, %arg2: memref<2x32xf32, #tpu.memory_space<vmem>>, %arg3: memref<1x32xf32, #tpu.memory_space<vmem>>, %arg4: memref<1x32xf32, #tpu.memory_space<vmem>>, %arg5: memref<32x64xf32, #tpu.memory_space<vmem>>, %arg6: memref<1x64xf32, #tpu.memory_space<vmem>>, %arg7: memref<2x64xf32, #tpu.memory_space<vmem>>, %arg8: memref<2x32xf32, #tpu.memory_space<vmem>>) attributes {dimension_semantics = [#tpu.dimension_semantics<parallel>, #tpu.dimension_semantics<arbitrary>], iteration_bounds = array<i64: 1, 1>, scalar_prefetch = 0 : i64, scratch_operands = 1 : i64, tpu.core_type = #tpu.core_type<tc>, window_params = [{transform_indices = @transform_0, window_bounds = array<i64: 2, 32>}, {pipeline_mode = #tpu.pipeline_mode<synchronous>, transform_indices = @transform_1, window_bounds = array<i64: 1, 32>}, {pipeline_mode = #tpu.pipeline_mode<synchronous>, transform_indices = @transform_2, window_bounds = array<i64: 1, 32>}, {transform_indices = @transform_3, window_bounds = array<i64: 32, 64>}, {transform_indices = @transform_4, window_bounds = array<i64: 1, 64>}, {transform_indices = @transform_5, window_bounds = array<i64: 2, 64>}]} {
    %c0_i32 = arith.constant 0 : i32
    %0 = arith.cmpi eq, %arg1, %c0_i32 : i32
    %1 = arith.extui %0 : i1 to i32
    %c0_i32_0 = arith.constant 0 : i32
    %2 = arith.cmpi ne, %1, %c0_i32_0 : i32
    scf.if %2 {
      %c0_9 = arith.constant 0 : index
      %c0_10 = arith.constant 0 : index
      %12 = vector.load %arg2[%c0_9, %c0_10] : memref<2x32xf32, #tpu.memory_space<vmem>>, vector<2x32xf32>
      %cst_11 = arith.constant dense<0.000000e+00> : vector<2xf32>
      %13 = vector.multi_reduction <add>, %12, %cst_11 [1] : vector<2x32xf32> to vector<2xf32>
      %14 = vector.shape_cast %13 : vector<2xf32> to vector<2x1xf32>
      %cst_12 = arith.constant 3.200000e+01 : f32
      %15 = vector.broadcast %cst_12 : f32 to vector<2x1xf32>
      %16 = arith.divf %14, %15 : vector<2x1xf32>
      %17 = vector.broadcast %16 : vector<2x1xf32> to vector<2x32xf32>
      %18 = arith.subf %12, %17 : vector<2x32xf32>
      %19 = arith.mulf %18, %18 : vector<2x32xf32>
      %cst_13 = arith.constant dense<0.000000e+00> : vector<2xf32>
      %20 = vector.multi_reduction <add>, %19, %cst_13 [1] : vector<2x32xf32> to vector<2xf32>
      %21 = vector.shape_cast %20 : vector<2xf32> to vector<2x1xf32>
      %cst_14 = arith.constant 3.200000e+01 : f32
      %22 = vector.broadcast %cst_14 : f32 to vector<2x1xf32>
      %23 = arith.divf %21, %22 : vector<2x1xf32>
      %24 = vector.broadcast %16 : vector<2x1xf32> to vector<2x32xf32>
      %25 = arith.subf %12, %24 : vector<2x32xf32>
      %cst_15 = arith.constant 9.99999974E-6 : f32
      %26 = vector.broadcast %cst_15 : f32 to vector<2x1xf32>
      %27 = arith.addf %23, %26 : vector<2x1xf32>
      %28 = math.rsqrt %27 : vector<2x1xf32>
      %29 = vector.broadcast %28 : vector<2x1xf32> to vector<2x32xf32>
      %30 = arith.mulf %25, %29 : vector<2x32xf32>
      %c0_16 = arith.constant 0 : index
      %c0_17 = arith.constant 0 : index
      %31 = vector.load %arg3[%c0_16, %c0_17] : memref<1x32xf32, #tpu.memory_space<vmem>>, vector<1x32xf32>
      %32 = vector.broadcast %31 : vector<1x32xf32> to vector<2x32xf32>
      %33 = arith.mulf %30, %32 : vector<2x32xf32>
      %c0_18 = arith.constant 0 : index
      %c0_19 = arith.constant 0 : index
      %34 = vector.load %arg4[%c0_18, %c0_19] : memref<1x32xf32, #tpu.memory_space<vmem>>, vector<1x32xf32>
      %35 = vector.broadcast %34 : vector<1x32xf32> to vector<2x32xf32>
      %36 = arith.addf %33, %35 : vector<2x32xf32>
      %c0_20 = arith.constant 0 : index
      %c0_21 = arith.constant 0 : index
      %37 = vector.load %arg8[%c0_20, %c0_21] : memref<2x32xf32, #tpu.memory_space<vmem>>, vector<2x32xf32>
      tpu.vector_store %arg8[%c0_20, %c0_21], %36 {strides = array<i32>} : memref<2x32xf32, #tpu.memory_space<vmem>>, vector<2x32xf32>,
    } else {
    }
    %c0 = arith.constant 0 : index
    %c0_1 = arith.constant 0 : index
    %3 = vector.load %arg8[%c0, %c0_1] : memref<2x32xf32, #tpu.memory_space<vmem>>, vector<2x32xf32>
    %c0_2 = arith.constant 0 : index
    %c0_3 = arith.constant 0 : index
    %4 = vector.load %arg5[%c0_2, %c0_3] : memref<32x64xf32, #tpu.memory_space<vmem>>, vector<32x64xf32>
    %cst = arith.constant dense<0.000000e+00> : vector<2x64xf32>
    %5 = tpu.matmul %3, %4, %cst {dimension_numbers = #tpu.dot_dimension_numbers<[1], [0], [0], [1], [0, 0, 1, 1], [], []>} : vector<2x32xf32>, vector<32x64xf32>, vector<2x64xf32> -> vector<2x64xf32>
    %c0_4 = arith.constant 0 : index
    %c0_5 = arith.constant 0 : index
    %6 = vector.load %arg6[%c0_4, %c0_5] : memref<1x64xf32, #tpu.memory_space<vmem>>, vector<1x64xf32>
    %7 = vector.broadcast %6 : vector<1x64xf32> to vector<2x64xf32>
    %8 = arith.addf %5, %7 : vector<2x64xf32>
    %cst_6 = arith.constant 0.000000e+00 : f32
    %9 = vector.broadcast %cst_6 : f32 to vector<2x64xf32>
    %10 = arith.maximumf %8, %9 : vector<2x64xf32>
    %c0_7 = arith.constant 0 : index
    %c0_8 = arith.constant 0 : index
    %11 = vector.load %arg7[%c0_7, %c0_8] : memref<2x64xf32, #tpu.memory_space<vmem>>, vector<2x64xf32>
    tpu.vector_store %arg7[%c0_7, %c0_8], %10 {strides = array<i32>} : memref<2x64xf32, #tpu.memory_space<vmem>>, vector<2x64xf32>,
    return
  }
  func.func @transform_0(%arg0: i32, %arg1: i32) -> (i32, i32) {
    %c0_i32 = arith.constant 0 : i32
    %c0_i32_0 = arith.constant 0 : i32
    return %arg0, %c0_i32 : i32, i32
  }
  func.func @transform_1(%arg0: i32, %arg1: i32) -> (i32, i32) {
    %c0_i32 = arith.constant 0 : i32
    %c0_i32_0 = arith.constant 0 : i32
    %c0_i32_1 = arith.constant 0 : i32
    return %c0_i32, %c0_i32_0 : i32, i32
  }
  func.func @transform_2(%arg0: i32, %arg1: i32) -> (i32, i32) {
    %c0_i32 = arith.constant 0 : i32
    %c0_i32_0 = arith.constant 0 : i32
    %c0_i32_1 = arith.constant 0 : i32
    return %c0_i32, %c0_i32_0 : i32, i32
  }
  func.func @transform_3(%arg0: i32, %arg1: i32) -> (i32, i32) {
    %c0_i32 = arith.constant 0 : i32
    %c0_i32_0 = arith.constant 0 : i32
    return %c0_i32, %arg1 : i32, i32
  }
  func.func @transform_4(%arg0: i32, %arg1: i32) -> (i32, i32) {
    %c0_i32 = arith.constant 0 : i32
    %c0_i32_0 = arith.constant 0 : i32
    return %c0_i32, %arg1 : i32, i32
  }
  func.func @transform_5(%arg0: i32, %arg1: i32) -> (i32, i32) {
    %c0_i32 = arith.constant 0 : i32
    return %arg0, %arg1 : i32, i32
  }
}

module attributes {stable_mosaic.version = 11 : i64} {
  func.func @_linear_kernel(%arg0: i32, %arg1: i32, %arg2: i32, %arg3: memref<2x64xf32, #tpu.memory_space<vmem>>, %arg4: memref<64x32xf32, #tpu.memory_space<vmem>>, %arg5: memref<1x32xf32, #tpu.memory_space<vmem>>, %arg6: memref<2x32xf32, #tpu.memory_space<vmem>>, %arg7: memref<2x32xf32, #tpu.memory_space<vmem>>, %arg8: memref<2x32xf32, #tpu.memory_space<vmem>>) attributes {dimension_semantics = [#tpu.dimension_semantics<parallel>, #tpu.dimension_semantics<parallel>, #tpu.dimension_semantics<arbitrary>], iteration_bounds = array<i64: 1, 1, 1>, scalar_prefetch = 0 : i64, scratch_operands = 1 : i64, tpu.core_type = #tpu.core_type<tc>, window_params = [{transform_indices = @transform_0, window_bounds = array<i64: 2, 64>}, {transform_indices = @transform_1, window_bounds = array<i64: 64, 32>}, {transform_indices = @transform_2, window_bounds = array<i64: 1, 32>}, {transform_indices = @transform_3, window_bounds = array<i64: 2, 32>}, {transform_indices = @transform_4, window_bounds = array<i64: 2, 32>}]} {
    %c0_i32 = arith.constant 0 : i32
    %0 = arith.cmpi eq, %arg2, %c0_i32 : i32
    %1 = arith.extui %0 : i1 to i32
    %c0_i32_0 = arith.constant 0 : i32
    %2 = arith.cmpi ne, %1, %c0_i32_0 : i32
    scf.if %2 {
      %cst_10 = arith.constant 0.000000e+00 : f32
      %12 = vector.broadcast %cst_10 : f32 to vector<2x32xf32>
      %c0_11 = arith.constant 0 : index
      %c0_12 = arith.constant 0 : index
      %13 = vector.load %arg8[%c0_11, %c0_12] : memref<2x32xf32, #tpu.memory_space<vmem>>, vector<2x32xf32>
      tpu.vector_store %arg8[%c0_11, %c0_12], %12 {strides = array<i32>} : memref<2x32xf32, #tpu.memory_space<vmem>>, vector<2x32xf32>,
    } else {
    }
    %c0 = arith.constant 0 : index
    %c0_1 = arith.constant 0 : index
    %3 = vector.load %arg8[%c0, %c0_1] : memref<2x32xf32, #tpu.memory_space<vmem>>, vector<2x32xf32>
    %c0_2 = arith.constant 0 : index
    %c0_3 = arith.constant 0 : index
    %4 = vector.load %arg3[%c0_2, %c0_3] : memref<2x64xf32, #tpu.memory_space<vmem>>, vector<2x64xf32>
    %c0_4 = arith.constant 0 : index
    %c0_5 = arith.constant 0 : index
    %5 = vector.load %arg4[%c0_4, %c0_5] : memref<64x32xf32, #tpu.memory_space<vmem>>, vector<64x32xf32>
    %cst = arith.constant dense<0.000000e+00> : vector<2x32xf32>
    %6 = tpu.matmul %4, %5, %cst {dimension_numbers = #tpu.dot_dimension_numbers<[1], [0], [0], [1], [0, 0, 1, 1], [], []>} : vector<2x64xf32>, vector<64x32xf32>, vector<2x32xf32> -> vector<2x32xf32>
    %7 = arith.addf %3, %6 : vector<2x32xf32>
    %c0_6 = arith.constant 0 : index
    %c0_7 = arith.constant 0 : index
    %8 = vector.load %arg8[%c0_6, %c0_7] : memref<2x32xf32, #tpu.memory_space<vmem>>, vector<2x32xf32>
    tpu.vector_store %arg8[%c0_6, %c0_7], %7 {strides = array<i32>} : memref<2x32xf32, #tpu.memory_space<vmem>>, vector<2x32xf32>,
    %c0_i32_8 = arith.constant 0 : i32
    %9 = arith.cmpi eq, %arg2, %c0_i32_8 : i32
    %10 = arith.extui %9 : i1 to i32
    %c0_i32_9 = arith.constant 0 : i32
    %11 = arith.cmpi ne, %10, %c0_i32_9 : i32
    scf.if %11 {
      %c0_10 = arith.constant 0 : index
      %c0_11 = arith.constant 0 : index
      %12 = vector.load %arg8[%c0_10, %c0_11] : memref<2x32xf32, #tpu.memory_space<vmem>>, vector<2x32xf32>
      %c0_12 = arith.constant 0 : index
      %c0_13 = arith.constant 0 : index
      %13 = vector.load %arg5[%c0_12, %c0_13] : memref<1x32xf32, #tpu.memory_space<vmem>>, vector<1x32xf32>
      %14 = vector.broadcast %13 : vector<1x32xf32> to vector<2x32xf32>
      %15 = arith.addf %12, %14 : vector<2x32xf32>
      %c0_14 = arith.constant 0 : index
      %c0_15 = arith.constant 0 : index
      %16 = vector.load %arg6[%c0_14, %c0_15] : memref<2x32xf32, #tpu.memory_space<vmem>>, vector<2x32xf32>
      %17 = arith.addf %15, %16 : vector<2x32xf32>
      %c0_16 = arith.constant 0 : index
      %c0_17 = arith.constant 0 : index
      %18 = vector.load %arg7[%c0_16, %c0_17] : memref<2x32xf32, #tpu.memory_space<vmem>>, vector<2x32xf32>
      tpu.vector_store %arg7[%c0_16, %c0_17], %17 {strides = array<i32>} : memref<2x32xf32, #tpu.memory_space<vmem>>, vector<2x32xf32>,
    } else {
    }
    return
  }
  func.func @transform_0(%arg0: i32, %arg1: i32, %arg2: i32) -> (i32, i32) {
    %c0_i32 = arith.constant 0 : i32
    return %arg0, %arg2 : i32, i32
  }
  func.func @transform_1(%arg0: i32, %arg1: i32, %arg2: i32) -> (i32, i32) {
    %c0_i32 = arith.constant 0 : i32
    return %arg2, %arg1 : i32, i32
  }
  func.func @transform_2(%arg0: i32, %arg1: i32, %arg2: i32) -> (i32, i32) {
    %c0_i32 = arith.constant 0 : i32
    %c0_i32_0 = arith.constant 0 : i32
    return %c0_i32, %arg1 : i32, i32
  }
  func.func @transform_3(%arg0: i32, %arg1: i32, %arg2: i32) -> (i32, i32) {
    %c0_i32 = arith.constant 0 : i32
    return %arg0, %arg1 : i32, i32
  }
  func.func @transform_4(%arg0: i32, %arg1: i32, %arg2: i32) -> (i32, i32) {
    %c0_i32 = arith.constant 0 : i32
    return %arg0, %arg1 : i32, i32
  }
}

module attributes {stable_mosaic.version = 11 : i64} {
  func.func @_ln_linear_kernel(%arg0: i32, %arg1: i32, %arg2: memref<2x32xf32, #tpu.memory_space<vmem>>, %arg3: memref<1x32xf32, #tpu.memory_space<vmem>>, %arg4: memref<1x32xf32, #tpu.memory_space<vmem>>, %arg5: memref<32x96xf32, #tpu.memory_space<vmem>>, %arg6: memref<1x96xf32, #tpu.memory_space<vmem>>, %arg7: memref<2x96xf32, #tpu.memory_space<vmem>>, %arg8: memref<2x32xf32, #tpu.memory_space<vmem>>) attributes {dimension_semantics = [#tpu.dimension_semantics<parallel>, #tpu.dimension_semantics<arbitrary>], iteration_bounds = array<i64: 1, 1>, scalar_prefetch = 0 : i64, scratch_operands = 1 : i64, tpu.core_type = #tpu.core_type<tc>, window_params = [{transform_indices = @transform_0, window_bounds = array<i64: 2, 32>}, {pipeline_mode = #tpu.pipeline_mode<synchronous>, transform_indices = @transform_1, window_bounds = array<i64: 1, 32>}, {pipeline_mode = #tpu.pipeline_mode<synchronous>, transform_indices = @transform_2, window_bounds = array<i64: 1, 32>}, {transform_indices = @transform_3, window_bounds = array<i64: 32, 96>}, {transform_indices = @transform_4, window_bounds = array<i64: 1, 96>}, {transform_indices = @transform_5, window_bounds = array<i64: 2, 96>}]} {
    %c0_i32 = arith.constant 0 : i32
    %0 = arith.cmpi eq, %arg1, %c0_i32 : i32
    %1 = arith.extui %0 : i1 to i32
    %c0_i32_0 = arith.constant 0 : i32
    %2 = arith.cmpi ne, %1, %c0_i32_0 : i32
    scf.if %2 {
      %c0_8 = arith.constant 0 : index
      %c0_9 = arith.constant 0 : index
      %10 = vector.load %arg2[%c0_8, %c0_9] : memref<2x32xf32, #tpu.memory_space<vmem>>, vector<2x32xf32>
      %cst_10 = arith.constant dense<0.000000e+00> : vector<2xf32>
      %11 = vector.multi_reduction <add>, %10, %cst_10 [1] : vector<2x32xf32> to vector<2xf32>
      %12 = vector.shape_cast %11 : vector<2xf32> to vector<2x1xf32>
      %cst_11 = arith.constant 3.200000e+01 : f32
      %13 = vector.broadcast %cst_11 : f32 to vector<2x1xf32>
      %14 = arith.divf %12, %13 : vector<2x1xf32>
      %15 = vector.broadcast %14 : vector<2x1xf32> to vector<2x32xf32>
      %16 = arith.subf %10, %15 : vector<2x32xf32>
      %17 = arith.mulf %16, %16 : vector<2x32xf32>
      %cst_12 = arith.constant dense<0.000000e+00> : vector<2xf32>
      %18 = vector.multi_reduction <add>, %17, %cst_12 [1] : vector<2x32xf32> to vector<2xf32>
      %19 = vector.shape_cast %18 : vector<2xf32> to vector<2x1xf32>
      %cst_13 = arith.constant 3.200000e+01 : f32
      %20 = vector.broadcast %cst_13 : f32 to vector<2x1xf32>
      %21 = arith.divf %19, %20 : vector<2x1xf32>
      %22 = vector.broadcast %14 : vector<2x1xf32> to vector<2x32xf32>
      %23 = arith.subf %10, %22 : vector<2x32xf32>
      %cst_14 = arith.constant 9.99999974E-6 : f32
      %24 = vector.broadcast %cst_14 : f32 to vector<2x1xf32>
      %25 = arith.addf %21, %24 : vector<2x1xf32>
      %26 = math.rsqrt %25 : vector<2x1xf32>
      %27 = vector.broadcast %26 : vector<2x1xf32> to vector<2x32xf32>
      %28 = arith.mulf %23, %27 : vector<2x32xf32>
      %c0_15 = arith.constant 0 : index
      %c0_16 = arith.constant 0 : index
      %29 = vector.load %arg3[%c0_15, %c0_16] : memref<1x32xf32, #tpu.memory_space<vmem>>, vector<1x32xf32>
      %30 = vector.broadcast %29 : vector<1x32xf32> to vector<2x32xf32>
      %31 = arith.mulf %28, %30 : vector<2x32xf32>
      %c0_17 = arith.constant 0 : index
      %c0_18 = arith.constant 0 : index
      %32 = vector.load %arg4[%c0_17, %c0_18] : memref<1x32xf32, #tpu.memory_space<vmem>>, vector<1x32xf32>
      %33 = vector.broadcast %32 : vector<1x32xf32> to vector<2x32xf32>
      %34 = arith.addf %31, %33 : vector<2x32xf32>
      %c0_19 = arith.constant 0 : index
      %c0_20 = arith.constant 0 : index
      %35 = vector.load %arg8[%c0_19, %c0_20] : memref<2x32xf32, #tpu.memory_space<vmem>>, vector<2x32xf32>
      tpu.vector_store %arg8[%c0_19, %c0_20], %34 {strides = array<i32>} : memref<2x32xf32, #tpu.memory_space<vmem>>, vector<2x32xf32>,
    } else {
    }
    %c0 = arith.constant 0 : index
    %c0_1 = arith.constant 0 : index
    %3 = vector.load %arg8[%c0, %c0_1] : memref<2x32xf32, #tpu.memory_space<vmem>>, vector<2x32xf32>
    %c0_2 = arith.constant 0 : index
    %c0_3 = arith.constant 0 : index
    %4 = vector.load %arg5[%c0_2, %c0_3] : memref<32x96xf32, #tpu.memory_space<vmem>>, vector<32x96xf32>
    %cst = arith.constant dense<0.000000e+00> : vector<2x96xf32>
    %5 = tpu.matmul %3, %4, %cst {dimension_numbers = #tpu.dot_dimension_numbers<[1], [0], [0], [1], [0, 0, 1, 1], [], []>} : vector<2x32xf32>, vector<32x96xf32>, vector<2x96xf32> -> vector<2x96xf32>
    %c0_4 = arith.constant 0 : index
    %c0_5 = arith.constant 0 : index
    %6 = vector.load %arg6[%c0_4, %c0_5] : memref<1x96xf32, #tpu.memory_space<vmem>>, vector<1x96xf32>
    %7 = vector.broadcast %6 : vector<1x96xf32> to vector<2x96xf32>
    %8 = arith.addf %5, %7 : vector<2x96xf32>
    %c0_6 = arith.constant 0 : index
    %c0_7 = arith.constant 0 : index
    %9 = vector.load %arg7[%c0_6, %c0_7] : memref<2x96xf32, #tpu.memory_space<vmem>>, vector<2x96xf32>
    tpu.vector_store %arg7[%c0_6, %c0_7], %8 {strides = array<i32>} : memref<2x96xf32, #tpu.memory_space<vmem>>, vector<2x96xf32>,
    return
  }
  func.func @transform_0(%arg0: i32, %arg1: i32) -> (i32, i32) {
    %c0_i32 = arith.constant 0 : i32
    %c0_i32_0 = arith.constant 0 : i32
    return %arg0, %c0_i32 : i32, i32
  }
  func.func @transform_1(%arg0: i32, %arg1: i32) -> (i32, i32) {
    %c0_i32 = arith.constant 0 : i32
    %c0_i32_0 = arith.constant 0 : i32
    %c0_i32_1 = arith.constant 0 : i32
    return %c0_i32, %c0_i32_0 : i32, i32
  }
  func.func @transform_2(%arg0: i32, %arg1: i32) -> (i32, i32) {
    %c0_i32 = arith.constant 0 : i32
    %c0_i32_0 = arith.constant 0 : i32
    %c0_i32_1 = arith.constant 0 : i32
    return %c0_i32, %c0_i32_0 : i32, i32
  }
  func.func @transform_3(%arg0: i32, %arg1: i32) -> (i32, i32) {
    %c0_i32 = arith.constant 0 : i32
    %c0_i32_0 = arith.constant 0 : i32
    return %c0_i32, %arg1 : i32, i32
  }
  func.func @transform_4(%arg0: i32, %arg1: i32) -> (i32, i32) {
    %c0_i32 = arith.constant 0 : i32
    %c0_i32_0 = arith.constant 0 : i32
    return %c0_i32, %arg1 : i32, i32
  }
  func.func @transform_5(%arg0: i32, %arg1: i32) -> (i32, i32) {
    %c0_i32 = arith.constant 0 : i32
    return %arg0, %arg1 : i32, i32
  }
}

</mosaic_0001>

<llo_original>
// kernel: _lambda_.17
$region0: #{_lambda_.17}
  #allocation0 [shape = 'u32[]', space=smem, size = 0x4, offset = 0x4, fixed_abs, tag = 'smem constant byte address 0x4 - core index']
  #allocation1 [shape = 'u32[144,128]{1,0:T(1,128)}', space=vmem, size = 0x12000, scoped, tag = 'internal scratch']
  #allocation2 [shape = 'f32[2,32]{1,0:T(2,128)}', space=vmem, size = 0x400, scoped, tag = 'scratch operand']
  %s0 = inlined_call_operand.vmem [shape: f32[2,32], index: 0, kind: input, shape index: {}]
  %s1 = inlined_call_operand.vmem [shape: f32[1,32], index: 1, kind: input, shape index: {}]
  %s2 = inlined_call_operand.vmem [shape: f32[1,32], index: 2, kind: input, shape index: {}]
  %s3 = inlined_call_operand.vmem [shape: f32[32,96], index: 3, kind: input, shape index: {}]
  %s4 = inlined_call_operand.vmem [shape: f32[1,96], index: 4, kind: input, shape index: {}]
  %s5 = inlined_call_operand.vmem [shape: f32[2,96], index: 5, kind: output, shape index: {}]
  %s6 = sld [smem:[#allocation0]]
  $region34: #{_lambda_.17} parent=0
    _
  %s8 = ssub.s32 1, %s6
  %s9 = scalar_select 0, %s8, %s6
  // Predicated region
  $region2: #{_lambda_.17} parent=0 // pred_check
    _
  $region3: #{_lambda_.17} parent=0 // pred_check_branch
    %11 = sbr.rel (0) target = $region5
  $region4: #{_lambda_.17} parent=0 // pred_region
    _
  $region5: #{_lambda_.17} parent=0 // pred_fallthru
    _
  // Predicated region
  $region6: #{_lambda_.17} parent=0 // pred_check
    _
  $region7: #{_lambda_.17} parent=0 // pred_check_branch
    %13 = sbr.rel (0) target = $region9
  $region8: #{_lambda_.17} parent=0 // pred_region
    _
  $region9: #{_lambda_.17} parent=0 // pred_fallthru
    _
  // Predicated region
  $region10: #{_lambda_.17} parent=0 // pred_check
    _
  $region11: #{_lambda_.17} parent=0 // pred_check_branch
    %15 = sbr.rel (0) target = $region13
  $region12: #{_lambda_.17} parent=0 // pred_region
    _
  $region13: #{_lambda_.17} parent=0 // pred_fallthru
    _
  // Predicated region
  $region14: #{_lambda_.17} parent=0 // pred_check
    _
  $region15: #{_lambda_.17} parent=0 // pred_check_branch
    %17 = sbr.rel (0) target = $region17
  $region16: #{_lambda_.17} parent=0 // pred_region
    _
  $region17: #{_lambda_.17} parent=0 // pred_fallthru
    _
  // Predicated region
  $region18: #{_lambda_.17} parent=0 // pred_check
    _
  $region19: #{_lambda_.17} parent=0 // pred_check_branch
    %19 = sbr.rel (0) target = $region21
  $region20: #{_lambda_.17} parent=0 // pred_region
    _
  $region21: #{_lambda_.17} parent=0 // pred_fallthru
    _
  %p20 = scmp.eq.s32.totalorder 0, 0
  // Predicated region
  $region22: #{_lambda_.17} parent=0 // pred_check
    %p21 = pneg %p20
  $region23: #{_lambda_.17} parent=0 // pred_check_branch
    %23 = sbr.rel (%p21) target = $region25
  $region24: #{_lambda_.17} parent=0 // pred_region
    %v24 = vld [vmem:[%s0] sm:$0x3]
    %vm25 = vcmask 254976
    %v26 = vsel %vm25, %v24, 0.0
    %27 = vadd.xlane.f32.xlu0 %v26
    %v28 = vpop.xlane.xlu0 %27
    %v29 = vrcp.pop 32.0
    %v30 = vmul.f32 %v28, %v29
    %v31 = vsub.f32 %v24, %v30
    %v32 = vmul.f32 %v31, %v31
    %v33 = vsel %vm25, %v32, 0.0
    %34 = vadd.xlane.f32.xlu0 %v33
    %v35 = vpop.xlane.xlu0 %34
    %v36 = vmul.f32 %v35, %v29
    %v37 = vadd.f32 %v36, 1e-05
    %v38 = vrsqrt.pop %v37
    %v39 = vmul.f32 %v31, %v38
    %v40 = vld [vmem:[%s1] sm:$0x1]
    %v42 = vlaneseq
    %v43 = vshrl.u32 %v42, 7
    %v44 = vsub.s32 0, %v43
    %v45 = vrot.slane %v40, %v44
    %v47 = vmul.f32 %v39, %v45
    %v48 = vld [vmem:[%s2] sm:$0x1]
    %v50 = vlaneseq
    %v51 = vshrl.u32 %v50, 7
    %v52 = vsub.s32 0, %v51
    %v53 = vrot.slane %v48, %v52
    %v55 = vadd.f32 %v47, %v53
    %56 = vst.msk [vmem:[#allocation2] sm:$0x3] %vm25, %v55
  $region25: #{_lambda_.17} parent=0 // pred_fallthru
    _
  %v57 = vld [vmem:[#allocation2] sm:$0x3]
  %v58 = vld [vmem:[%s3] sm:$0xff]
  %v59 = vld [vmem:[%s3 + $0x8] sm:$0xff]
  %v60 = vld [vmem:[%s3 + $0x10] sm:$0xff]
  %v61 = vld [vmem:[%s3 + $0x18] sm:$0xff]
  %v62 = vld [vmem:[%s4] sm:$0x1]
  %v64 = vlaneseq
  %v65 = vshrl.u32 %v64, 7
  %v66 = vsub.s32 0, %v65
  %v67 = vrot.slane %v62, %v66
  %vm69 = vcmask 261120
  %v71 = vsel %vm69, %v57, 0
  %73 = vmatprep.subr.mxu0 0.0
  %74 = vmatpush1.msra.mxu0 %v58
  %75 = vmatprep.subr.mxu0 0.0
  %76 = vmatpush1.msra.mxu0 %v59
  %77 = vmatprep.subr.mxu0 0.0
  %78 = vmatpush1.msra.mxu0 %v60
  %79 = vmatprep.subr.mxu0 0.0
  %80 = vmatpush1.msra.mxu0 %v61
  %81 = vmatprep.subr.mxu0 0.0
  %82 = vmatpush1.msra.mxu0 0.0
  %83 = vmatprep.subr.mxu0 0.0
  %84 = vmatpush1.msra.mxu0 0.0
  %85 = vmatprep.subr.mxu0 0.0
  %86 = vmatpush1.msra.mxu0 0.0
  %87 = vmatprep.subr.mxu0 0.0
  %88 = vmatpush1.msra.mxu0 0.0
  %89 = vmatprep.subr.mxu0 0.0
  %90 = vmatpush1.msra.mxu0 0.0
  %91 = vmatprep.subr.mxu0 0.0
  %92 = vmatpush1.msra.mxu0 0.0
  %93 = vmatprep.subr.mxu0 0.0
  %94 = vmatpush1.msra.mxu0 0.0
  %95 = vmatprep.subr.mxu0 0.0
  %96 = vmatpush1.msra.mxu0 0.0
  %97 = vmatprep.subr.mxu0 0.0
  %98 = vmatpush1.msra.mxu0 0.0
  %99 = vmatprep.subr.mxu0 0.0
  %100 = vmatpush1.msra.mxu0 0.0
  %101 = vmatprep.subr.mxu0 0.0
  %102 = vmatpush1.msra.mxu0 0.0
  %103 = vmatprep.subr.mxu0 0.0
  %104 = vmatpush1.msra.mxu0 0.0
  %105 = vmatprep.subr.mxu0 0.0
  %106 = vmatpush1.msra.mxu0 0.0
  %107 = vmatprep.subr.mxu0 0.0
  %108 = vmatpush1.msra.mxu0 0.0
  %109 = vmatprep.subr.mxu0 0.0
  %110 = vmatpush1.msra.mxu0 0.0
  %111 = vmatprep.subr.mxu0 0.0
  %112 = vmatpush1.msra.mxu0 0.0
  %113 = vmatprep.subr.mxu0 0.0
  %114 = vmatpush1.msra.mxu0 0.0
  %115 = vmatprep.subr.mxu0 0.0
  %116 = vmatpush1.msra.mxu0 0.0
  %117 = vmatprep.subr.mxu0 0.0
  %118 = vmatpush1.msra.mxu0 0.0
  %119 = vmatprep.subr.mxu0 0.0
  %120 = vmatpush1.msra.mxu0 0.0
  %121 = vmatprep.subr.mxu0 0.0
  %122 = vmatpush1.msra.mxu0 0.0
  %123 = vmatprep.subr.mxu0 0.0
  %124 = vmatpush1.msra.mxu0 0.0
  %125 = vmatprep.subr.mxu0 0.0
  %126 = vmatpush1.msra.mxu0 0.0
  %127 = vmatprep.subr.mxu0 0.0
  %128 = vmatpush1.msra.mxu0 0.0
  %129 = vmatprep.subr.mxu0 0.0
  %130 = vmatpush1.msra.mxu0 0.0
  %131 = vmatprep.subr.mxu0 0.0
  %132 = vmatpush1.msra.mxu0 0.0
  %133 = vmatprep.subr.mxu0 0.0
  %134 = vmatpush1.msra.mxu0 0.0
  %135 = vmatprep.subr.mxu0 0.0
  %136 = vmatpush1.msra.mxu0 0.0
  %137 = vmatprep.mubr.f32.mxu0 0.0
  %138 = vmatmul.mubr.f32.gmra.mrb[0].mxu0 %v71
  %v139 = vpop.f32.mrb[0].mxu0
  %v140 = vadd.f32 %v67, %v139
  %v141 = vpop.f32.mrb[0].mxu0
  %142 = vdwg.mxu0
  %vm143 = vcmask 779264
  %144 = vst.msk [vmem:[%s5] sm:$0x3] %vm143, %v140
  // Predicated region
  $region26: #{_lambda_.17} parent=0 // pred_check
    _
  $region27: #{_lambda_.17} parent=0 // pred_check_branch
    %146 = sbr.rel (0) target = $region29
  $region28: #{_lambda_.17} parent=0 // pred_region
    _
  $region29: #{_lambda_.17} parent=0 // pred_fallthru
    _
  // Predicated region
  $region30: #{_lambda_.17} parent=0 // pred_check
    _
  $region31: #{_lambda_.17} parent=0 // pred_check_branch
    %148 = sbr.rel (0) target = $region33
  $region32: #{_lambda_.17} parent=0 // pred_region
    _
  $region33: #{_lambda_.17} parent=0 // pred_fallthru
    _

// kernel: _lambda_.19
$region0: #{_lambda_.19}
  #allocation0 [shape = 'u32[]', space=smem, size = 0x4, offset = 0x4, fixed_abs, tag = 'smem constant byte address 0x4 - core index']
  #allocation1 [shape = 'u32[144,128]{1,0:T(1,128)}', space=vmem, size = 0x12000, scoped, tag = 'internal scratch']
  #allocation2 [shape = 'f32[2,32]{1,0:T(2,128)}', space=vmem, size = 0x400, scoped, tag = 'scratch operand']
  %s0 = inlined_call_operand.vmem [shape: f32[2,32], index: 0, kind: input, shape index: {}]
  %s1 = inlined_call_operand.vmem [shape: f32[32,32], index: 1, kind: input, shape index: {}]
  %s2 = inlined_call_operand.vmem [shape: f32[1,32], index: 2, kind: input, shape index: {}]
  %s3 = inlined_call_operand.vmem [shape: f32[2,32], index: 3, kind: input, shape index: {}]
  %s4 = inlined_call_operand.vmem [shape: f32[2,32], index: 4, kind: output, shape index: {}]
  %s5 = sld [smem:[#allocation0]]
  $region34: #{_lambda_.19} parent=0
    _
  %s7 = ssub.s32 1, %s5
  %s8 = scalar_select 0, %s7, %s5
  // Predicated region
  $region2: #{_lambda_.19} parent=0 // pred_check
    _
  $region3: #{_lambda_.19} parent=0 // pred_check_branch
    %10 = sbr.rel (0) target = $region5
  $region4: #{_lambda_.19} parent=0 // pred_region
    _
  $region5: #{_lambda_.19} parent=0 // pred_fallthru
    _
  // Predicated region
  $region6: #{_lambda_.19} parent=0 // pred_check
    _
  $region7: #{_lambda_.19} parent=0 // pred_check_branch
    %12 = sbr.rel (0) target = $region9
  $region8: #{_lambda_.19} parent=0 // pred_region
    _
  $region9: #{_lambda_.19} parent=0 // pred_fallthru
    _
  // Predicated region
  $region10: #{_lambda_.19} parent=0 // pred_check
    _
  $region11: #{_lambda_.19} parent=0 // pred_check_branch
    %14 = sbr.rel (0) target = $region13
  $region12: #{_lambda_.19} parent=0 // pred_region
    _
  $region13: #{_lambda_.19} parent=0 // pred_fallthru
    _
  // Predicated region
  $region14: #{_lambda_.19} parent=0 // pred_check
    _
  $region15: #{_lambda_.19} parent=0 // pred_check_branch
    %16 = sbr.rel (0) target = $region17
  $region16: #{_lambda_.19} parent=0 // pred_region
    _
  $region17: #{_lambda_.19} parent=0 // pred_fallthru
    _
  %p17 = scmp.eq.s32.totalorder 0, 0
  // Predicated region
  $region18: #{_lambda_.19} parent=0 // pred_check
    %p18 = pneg %p17
  $region19: #{_lambda_.19} parent=0 // pred_check_branch
    %20 = sbr.rel (%p18) target = $region21
  $region20: #{_lambda_.19} parent=0 // pred_region
    %vm21 = vcmask 254976
    %22 = vst.msk [vmem:[#allocation2] sm:$0x3] %vm21, 0.0
  $region21: #{_lambda_.19} parent=0 // pred_fallthru
    _
  %v23 = vld [vmem:[#allocation2] sm:$0x3]
  %v24 = vld [vmem:[%s0] sm:$0x3]
  %v25 = vld [vmem:[%s1] sm:$0xff]
  %v26 = vld [vmem:[%s1 + $0x8] sm:$0xff]
  %v27 = vld [vmem:[%s1 + $0x10] sm:$0xff]
  %v28 = vld [vmem:[%s1 + $0x18] sm:$0xff]
  %vm29 = vcmask 261120
  %v31 = vsel %vm29, %v24, 0
  %33 = vmatprep.subr.mxu0 0.0
  %34 = vmatpush1.msra.mxu0 %v25
  %35 = vmatprep.subr.mxu0 0.0
  %36 = vmatpush1.msra.mxu0 %v26
  %37 = vmatprep.subr.mxu0 0.0
  %38 = vmatpush1.msra.mxu0 %v27
  %39 = vmatprep.subr.mxu0 0.0
  %40 = vmatpush1.msra.mxu0 %v28
  %41 = vmatprep.subr.mxu0 0.0
  %42 = vmatpush1.msra.mxu0 0.0
  %43 = vmatprep.subr.mxu0 0.0
  %44 = vmatpush1.msra.mxu0 0.0
  %45 = vmatprep.subr.mxu0 0.0
  %46 = vmatpush1.msra.mxu0 0.0
  %47 = vmatprep.subr.mxu0 0.0
  %48 = vmatpush1.msra.mxu0 0.0
  %49 = vmatprep.subr.mxu0 0.0
  %50 = vmatpush1.msra.mxu0 0.0
  %51 = vmatprep.subr.mxu0 0.0
  %52 = vmatpush1.msra.mxu0 0.0
  %53 = vmatprep.subr.mxu0 0.0
  %54 = vmatpush1.msra.mxu0 0.0
  %55 = vmatprep.subr.mxu0 0.0
  %56 = vmatpush1.msra.mxu0 0.0
  %57 = vmatprep.subr.mxu0 0.0
  %58 = vmatpush1.msra.mxu0 0.0
  %59 = vmatprep.subr.mxu0 0.0
  %60 = vmatpush1.msra.mxu0 0.0
  %61 = vmatprep.subr.mxu0 0.0
  %62 = vmatpush1.msra.mxu0 0.0
  %63 = vmatprep.subr.mxu0 0.0
  %64 = vmatpush1.msra.mxu0 0.0
  %65 = vmatprep.subr.mxu0 0.0
  %66 = vmatpush1.msra.mxu0 0.0
  %67 = vmatprep.subr.mxu0 0.0
  %68 = vmatpush1.msra.mxu0 0.0
  %69 = vmatprep.subr.mxu0 0.0
  %70 = vmatpush1.msra.mxu0 0.0
  %71 = vmatprep.subr.mxu0 0.0
  %72 = vmatpush1.msra.mxu0 0.0
  %73 = vmatprep.subr.mxu0 0.0
  %74 = vmatpush1.msra.mxu0 0.0
  %75 = vmatprep.subr.mxu0 0.0
  %76 = vmatpush1.msra.mxu0 0.0
  %77 = vmatprep.subr.mxu0 0.0
  %78 = vmatpush1.msra.mxu0 0.0
  %79 = vmatprep.subr.mxu0 0.0
  %80 = vmatpush1.msra.mxu0 0.0
  %81 = vmatprep.subr.mxu0 0.0
  %82 = vmatpush1.msra.mxu0 0.0
  %83 = vmatprep.subr.mxu0 0.0
  %84 = vmatpush1.msra.mxu0 0.0
  %85 = vmatprep.subr.mxu0 0.0
  %86 = vmatpush1.msra.mxu0 0.0
  %87 = vmatprep.subr.mxu0 0.0
  %88 = vmatpush1.msra.mxu0 0.0
  %89 = vmatprep.subr.mxu0 0.0
  %90 = vmatpush1.msra.mxu0 0.0
  %91 = vmatprep.subr.mxu0 0.0
  %92 = vmatpush1.msra.mxu0 0.0
  %93 = vmatprep.subr.mxu0 0.0
  %94 = vmatpush1.msra.mxu0 0.0
  %95 = vmatprep.subr.mxu0 0.0
  %96 = vmatpush1.msra.mxu0 0.0
  %97 = vmatprep.mubr.f32.mxu0 0.0
  %98 = vmatmul.mubr.f32.gmra.mrb[0].mxu0 %v31
  %v99 = vpop.f32.mrb[0].mxu0
  %v100 = vadd.f32 0.0, %v99
  %v101 = vpop.f32.mrb[0].mxu0
  %102 = vdwg.mxu0
  %v103 = vadd.f32 %v23, %v100
  %vm104 = vcmask 254976
  %105 = vst.msk [vmem:[#allocation2] sm:$0x3] %vm104, %v103
  // Predicated region
  $region22: #{_lambda_.19} parent=0 // pred_check
    %p106 = pneg %p17
  $region23: #{_lambda_.19} parent=0 // pred_check_branch
    %108 = sbr.rel (%p106) target = $region25
  $region24: #{_lambda_.19} parent=0 // pred_region
    %v109 = vld [vmem:[#allocation2] sm:$0x3]
    %v110 = vld [vmem:[%s2] sm:$0x1]
    %v112 = vlaneseq
    %v113 = vshrl.u32 %v112, 7
    %v114 = vsub.s32 0, %v113
    %v115 = vrot.slane %v110, %v114
    %v117 = vadd.f32 %v109, %v115
    %v118 = vld [vmem:[%s3] sm:$0x3]
    %v119 = vadd.f32 %v117, %v118
    %120 = vst.msk [vmem:[%s4] sm:$0x3] %vm104, %v119
  $region25: #{_lambda_.19} parent=0 // pred_fallthru
    _
  // Predicated region
  $region26: #{_lambda_.19} parent=0 // pred_check
    _
  $region27: #{_lambda_.19} parent=0 // pred_check_branch
    %122 = sbr.rel (0) target = $region29
  $region28: #{_lambda_.19} parent=0 // pred_region
    _
  $region29: #{_lambda_.19} parent=0 // pred_fallthru
    _
  // Predicated region
  $region30: #{_lambda_.19} parent=0 // pred_check
    _
  $region31: #{_lambda_.19} parent=0 // pred_check_branch
    %124 = sbr.rel (0) target = $region33
  $region32: #{_lambda_.19} parent=0 // pred_region
    _
  $region33: #{_lambda_.19} parent=0 // pred_fallthru
    _

// kernel: _lambda_.20
$region0: #{_lambda_.20}
  #allocation0 [shape = 'u32[]', space=smem, size = 0x4, offset = 0x4, fixed_abs, tag = 'smem constant byte address 0x4 - core index']
  #allocation1 [shape = 'u32[144,128]{1,0:T(1,128)}', space=vmem, size = 0x12000, scoped, tag = 'internal scratch']
  #allocation2 [shape = 'f32[2,32]{1,0:T(2,128)}', space=vmem, size = 0x400, scoped, tag = 'scratch operand']
  %s0 = inlined_call_operand.vmem [shape: f32[2,32], index: 0, kind: input, shape index: {}]
  %s1 = inlined_call_operand.vmem [shape: f32[1,32], index: 1, kind: input, shape index: {}]
  %s2 = inlined_call_operand.vmem [shape: f32[1,32], index: 2, kind: input, shape index: {}]
  %s3 = inlined_call_operand.vmem [shape: f32[32,32], index: 3, kind: input, shape index: {}]
  %s4 = inlined_call_operand.vmem [shape: f32[1,32], index: 4, kind: input, shape index: {}]
  %s5 = inlined_call_operand.vmem [shape: f32[2,32], index: 5, kind: output, shape index: {}]
  %s6 = sld [smem:[#allocation0]]
  $region34: #{_lambda_.20} parent=0
    _
  %s8 = ssub.s32 1, %s6
  %s9 = scalar_select 0, %s8, %s6
  // Predicated region
  $region2: #{_lambda_.20} parent=0 // pred_check
    _
  $region3: #{_lambda_.20} parent=0 // pred_check_branch
    %11 = sbr.rel (0) target = $region5
  $region4: #{_lambda_.20} parent=0 // pred_region
    _
  $region5: #{_lambda_.20} parent=0 // pred_fallthru
    _
  // Predicated region
  $region6: #{_lambda_.20} parent=0 // pred_check
    _
  $region7: #{_lambda_.20} parent=0 // pred_check_branch
    %13 = sbr.rel (0) target = $region9
  $region8: #{_lambda_.20} parent=0 // pred_region
    _
  $region9: #{_lambda_.20} parent=0 // pred_fallthru
    _
  // Predicated region
  $region10: #{_lambda_.20} parent=0 // pred_check
    _
  $region11: #{_lambda_.20} parent=0 // pred_check_branch
    %15 = sbr.rel (0) target = $region13
  $region12: #{_lambda_.20} parent=0 // pred_region
    _
  $region13: #{_lambda_.20} parent=0 // pred_fallthru
    _
  // Predicated region
  $region14: #{_lambda_.20} parent=0 // pred_check
    _
  $region15: #{_lambda_.20} parent=0 // pred_check_branch
    %17 = sbr.rel (0) target = $region17
  $region16: #{_lambda_.20} parent=0 // pred_region
    _
  $region17: #{_lambda_.20} parent=0 // pred_fallthru
    _
  // Predicated region
  $region18: #{_lambda_.20} parent=0 // pred_check
    _
  $region19: #{_lambda_.20} parent=0 // pred_check_branch
    %19 = sbr.rel (0) target = $region21
  $region20: #{_lambda_.20} parent=0 // pred_region
    _
  $region21: #{_lambda_.20} parent=0 // pred_fallthru
    _
  %p20 = scmp.eq.s32.totalorder 0, 0
  // Predicated region
  $region22: #{_lambda_.20} parent=0 // pred_check
    %p21 = pneg %p20
  $region23: #{_lambda_.20} parent=0 // pred_check_branch
    %23 = sbr.rel (%p21) target = $region25
  $region24: #{_lambda_.20} parent=0 // pred_region
    %v24 = vld [vmem:[%s0] sm:$0x3]
    %vm25 = vcmask 254976
    %v26 = vsel %vm25, %v24, 0.0
    %27 = vadd.xlane.f32.xlu0 %v26
    %v28 = vpop.xlane.xlu0 %27
    %v29 = vrcp.pop 32.0
    %v30 = vmul.f32 %v28, %v29
    %v31 = vsub.f32 %v24, %v30
    %v32 = vmul.f32 %v31, %v31
    %v33 = vsel %vm25, %v32, 0.0
    %34 = vadd.xlane.f32.xlu0 %v33
    %v35 = vpop.xlane.xlu0 %34
    %v36 = vmul.f32 %v35, %v29
    %v37 = vadd.f32 %v36, 1e-05
    %v38 = vrsqrt.pop %v37
    %v39 = vmul.f32 %v31, %v38
    %v40 = vld [vmem:[%s1] sm:$0x1]
    %v42 = vlaneseq
    %v43 = vshrl.u32 %v42, 7
    %v44 = vsub.s32 0, %v43
    %v45 = vrot.slane %v40, %v44
    %v47 = vmul.f32 %v39, %v45
    %v48 = vld [vmem:[%s2] sm:$0x1]
    %v50 = vlaneseq
    %v51 = vshrl.u32 %v50, 7
    %v52 = vsub.s32 0, %v51
    %v53 = vrot.slane %v48, %v52
    %v55 = vadd.f32 %v47, %v53
    %56 = vst.msk [vmem:[#allocation2] sm:$0x3] %vm25, %v55
  $region25: #{_lambda_.20} parent=0 // pred_fallthru
    _
  %v57 = vld [vmem:[#allocation2] sm:$0x3]
  %v58 = vld [vmem:[%s3] sm:$0xff]
  %v59 = vld [vmem:[%s3 + $0x8] sm:$0xff]
  %v60 = vld [vmem:[%s3 + $0x10] sm:$0xff]
  %v61 = vld [vmem:[%s3 + $0x18] sm:$0xff]
  %v62 = vld [vmem:[%s4] sm:$0x1]
  %v64 = vlaneseq
  %v65 = vshrl.u32 %v64, 7
  %v66 = vsub.s32 0, %v65
  %v67 = vrot.slane %v62, %v66
  %vm69 = vcmask 261120
  %v71 = vsel %vm69, %v57, 0
  %73 = vmatprep.subr.mxu0 0.0
  %74 = vmatpush1.msra.mxu0 %v58
  %75 = vmatprep.subr.mxu0 0.0
  %76 = vmatpush1.msra.mxu0 %v59
  %77 = vmatprep.subr.mxu0 0.0
  %78 = vmatpush1.msra.mxu0 %v60
  %79 = vmatprep.subr.mxu0 0.0
  %80 = vmatpush1.msra.mxu0 %v61
  %81 = vmatprep.subr.mxu0 0.0
  %82 = vmatpush1.msra.mxu0 0.0
  %83 = vmatprep.subr.mxu0 0.0
  %84 = vmatpush1.msra.mxu0 0.0
  %85 = vmatprep.subr.mxu0 0.0
  %86 = vmatpush1.msra.mxu0 0.0
  %87 = vmatprep.subr.mxu0 0.0
  %88 = vmatpush1.msra.mxu0 0.0
  %89 = vmatprep.subr.mxu0 0.0
  %90 = vmatpush1.msra.mxu0 0.0
  %91 = vmatprep.subr.mxu0 0.0
  %92 = vmatpush1.msra.mxu0 0.0
  %93 = vmatprep.subr.mxu0 0.0
  %94 = vmatpush1.msra.mxu0 0.0
  %95 = vmatprep.subr.mxu0 0.0
  %96 = vmatpush1.msra.mxu0 0.0
  %97 = vmatprep.subr.mxu0 0.0
  %98 = vmatpush1.msra.mxu0 0.0
  %99 = vmatprep.subr.mxu0 0.0
  %100 = vmatpush1.msra.mxu0 0.0
  %101 = vmatprep.subr.mxu0 0.0
  %102 = vmatpush1.msra.mxu0 0.0
  %103 = vmatprep.subr.mxu0 0.0
  %104 = vmatpush1.msra.mxu0 0.0
  %105 = vmatprep.subr.mxu0 0.0
  %106 = vmatpush1.msra.mxu0 0.0
  %107 = vmatprep.subr.mxu0 0.0
  %108 = vmatpush1.msra.mxu0 0.0
  %109 = vmatprep.subr.mxu0 0.0
  %110 = vmatpush1.msra.mxu0 0.0
  %111 = vmatprep.subr.mxu0 0.0
  %112 = vmatpush1.msra.mxu0 0.0
  %113 = vmatprep.subr.mxu0 0.0
  %114 = vmatpush1.msra.mxu0 0.0
  %115 = vmatprep.subr.mxu0 0.0
  %116 = vmatpush1.msra.mxu0 0.0
  %117 = vmatprep.subr.mxu0 0.0
  %118 = vmatpush1.msra.mxu0 0.0
  %119 = vmatprep.subr.mxu0 0.0
  %120 = vmatpush1.msra.mxu0 0.0
  %121 = vmatprep.subr.mxu0 0.0
  %122 = vmatpush1.msra.mxu0 0.0
  %123 = vmatprep.subr.mxu0 0.0
  %124 = vmatpush1.msra.mxu0 0.0
  %125 = vmatprep.subr.mxu0 0.0
  %126 = vmatpush1.msra.mxu0 0.0
  %127 = vmatprep.subr.mxu0 0.0
  %128 = vmatpush1.msra.mxu0 0.0
  %129 = vmatprep.subr.mxu0 0.0
  %130 = vmatpush1.msra.mxu0 0.0
  %131 = vmatprep.subr.mxu0 0.0
  %132 = vmatpush1.msra.mxu0 0.0
  %133 = vmatprep.subr.mxu0 0.0
  %134 = vmatpush1.msra.mxu0 0.0
  %135 = vmatprep.subr.mxu0 0.0
  %136 = vmatpush1.msra.mxu0 0.0
  %137 = vmatprep.mubr.f32.mxu0 0.0
  %138 = vmatmul.mubr.f32.gmra.mrb[0].mxu0 %v71
  %v139 = vpop.f32.mrb[0].mxu0
  %v140 = vadd.f32 %v67, %v139
  %v141 = vpop.f32.mrb[0].mxu0
  %142 = vdwg.mxu0
  %vm143 = vcmask 254976
  %144 = vst.msk [vmem:[%s5] sm:$0x3] %vm143, %v140
  // Predicated region
  $region26: #{_lambda_.20} parent=0 // pred_check
    _
  $region27: #{_lambda_.20} parent=0 // pred_check_branch
    %146 = sbr.rel (0) target = $region29
  $region28: #{_lambda_.20} parent=0 // pred_region
    _
  $region29: #{_lambda_.20} parent=0 // pred_fallthru
    _
  // Predicated region
  $region30: #{_lambda_.20} parent=0 // pred_check
    _
  $region31: #{_lambda_.20} parent=0 // pred_check_branch
    %148 = sbr.rel (0) target = $region33
  $region32: #{_lambda_.20} parent=0 // pred_region
    _
  $region33: #{_lambda_.20} parent=0 // pred_fallthru
    _

// kernel: _lambda_.18
$region0: #{_lambda_.18}
  #allocation0 [shape = 'u32[]', space=smem, size = 0x4, offset = 0x4, fixed_abs, tag = 'smem constant byte address 0x4 - core index']
  #allocation1 [shape = 'u32[144,128]{1,0:T(1,128)}', space=vmem, size = 0x12000, scoped, tag = 'internal scratch']
  %s0 = inlined_call_operand.vmem [shape: f32[2,4,1,8], index: 0, kind: input, shape index: {}]
  %s1 = inlined_call_operand.vmem [shape: f32[2,4,5,8], index: 1, kind: input, shape index: {}]
  %s2 = inlined_call_operand.vmem [shape: f32[2,4,5,8], index: 2, kind: input, shape index: {}]
  %s3 = inlined_call_operand.vmem [shape: f32[2,4,1,8], index: 3, kind: output, shape index: {}]
  %s4 = sld [smem:[#allocation0]]
  $region45: #{_lambda_.18} parent=0
    _
  %s6 = ssub.s32 1, %s4
  %s7 = scalar_select 0, %s6, %s4
  loop: start=0, step=1, limit=4
  $region2: #{_lambda_.18} parent=0 // loop_pre_header
    _
  $region3: #{_lambda_.18} parent=0 // loop_header
    %s9 = sphi 0, %s13
    %p10 = scmp.ge.s32.totalorder %s9, 4
    %s16 = sphi 0, %s28
    %s17 = sphi 0, %s24
    %s18 = sphi 0, %s16
    %s19 = sphi 0, %s17
    %s20 = sphi 0, %s18
    %s21 = sphi 0, %s19
    %s33 = sphi 0, %s35
    %s36 = sphi 0, %s33
    %s37 = sphi 0, %s36
    %s53 = sphi 0, %s37
    %s61 = sphi 0, %s63
    %s64 = sphi 0, %s61
    %s65 = sphi 0, %s64
    %s81 = sphi 0, %s65
    %s89 = sphi 0, %s91
    %s92 = sphi 0, %s89
    %s93 = sphi 0, %s92
    %s109 = sphi 0, %s93
    %s117 = sphi 0, %s119
    %s120 = sphi 0, %s117
    %s121 = sphi 0, %s120
    %s137 = sphi 0, %s121
  $region4: #{_lambda_.18} parent=0 // loop_header_branch
    %12 = sbr.rel (%p10) target = $region8
  $region5: #{_lambda_.18} parent=0 // loop_body
    %s14 = ssub.s32 %s9, 1
    %s15 = ssub.s32 %s9, 2
    %s22 = sadd.s32 1, %s17
    %p23 = scmp.ge.s32.totalorder %s22, 1
    %s24 = scalar_select %p23, 0, %s22
    %s25 = sadd.s32 1, %s16
    %s26 = scalar_select %p23, %s25, %s16
    %p27 = scmp.ge.s32.totalorder %s26, 2
    %s28 = scalar_select %p27, 0, %s26
    %s29 = ssub.s32 %s16, %s28
    %s30 = ssub.s32 %s17, %s24
    %s31 = sor.u32 %s29, %s30
    %p32 = scmp.eq.s32.totalorder %s31, 0
    %s34 = sadd.s32 %s33, 1
    %s35 = scalar_select %p32, %s33, %s34
    %p38 = pneg %p32
    %p39 = scmp.eq.s32.totalorder %s9, 1
    %p40 = por %p38, %p39
    %p41 = scmp.ne.s32.totalorder %s33, %s36
    %p42 = scmp.eq.s32.totalorder %s9, 0
    %p43 = por %p41, %p42
    %p44 = scmp.ne.s32.totalorder %s33, %s36
    %p45 = scmp.eq.s32.totalorder %s14, 1
    %p46 = por %p44, %p45
    %p47 = scmp.ne.s32.totalorder %s36, %s37
    %p48 = scmp.eq.s32.totalorder %s14, 0
    %p49 = por %p47, %p48
    %p50 = scmp.ne.s32.totalorder %s36, %s37
    %p51 = scmp.eq.s32.totalorder %s15, 1
    %p52 = por %p50, %p51
    %p54 = scmp.ne.s32.totalorder %s37, %s53
    %p55 = scmp.eq.s32.totalorder %s15, 0
    %p56 = por %p54, %p55
    %s57 = ssub.s32 %s16, %s28
    %s58 = ssub.s32 %s17, %s24
    %s59 = sor.u32 %s57, %s58
    %p60 = scmp.eq.s32.totalorder %s59, 0
    %s62 = sadd.s32 %s61, 1
    %s63 = scalar_select %p60, %s61, %s62
    %p66 = pneg %p60
    %p67 = scmp.eq.s32.totalorder %s9, 1
    %p68 = por %p66, %p67
    %p69 = scmp.ne.s32.totalorder %s61, %s64
    %p70 = scmp.eq.s32.totalorder %s9, 0
    %p71 = por %p69, %p70
    %p72 = scmp.ne.s32.totalorder %s61, %s64
    %p73 = scmp.eq.s32.totalorder %s14, 1
    %p74 = por %p72, %p73
    %p75 = scmp.ne.s32.totalorder %s64, %s65
    %p76 = scmp.eq.s32.totalorder %s14, 0
    %p77 = por %p75, %p76
    %p78 = scmp.ne.s32.totalorder %s64, %s65
    %p79 = scmp.eq.s32.totalorder %s15, 1
    %p80 = por %p78, %p79
    %p82 = scmp.ne.s32.totalorder %s65, %s81
    %p83 = scmp.eq.s32.totalorder %s15, 0
    %p84 = por %p82, %p83
    %s85 = ssub.s32 %s16, %s28
    %s86 = ssub.s32 %s17, %s24
    %s87 = sor.u32 %s85, %s86
    %p88 = scmp.eq.s32.totalorder %s87, 0
    %s90 = sadd.s32 %s89, 1
    %s91 = scalar_select %p88, %s89, %s90
    %p94 = pneg %p88
    %p95 = scmp.eq.s32.totalorder %s9, 1
    %p96 = por %p94, %p95
    %p97 = scmp.ne.s32.totalorder %s89, %s92
    %p98 = scmp.eq.s32.totalorder %s9, 0
    %p99 = por %p97, %p98
    %p100 = scmp.ne.s32.totalorder %s89, %s92
    %p101 = scmp.eq.s32.totalorder %s14, 1
    %p102 = por %p100, %p101
    %p103 = scmp.ne.s32.totalorder %s92, %s93
    %p104 = scmp.eq.s32.totalorder %s14, 0
    %p105 = por %p103, %p104
    %p106 = scmp.ne.s32.totalorder %s92, %s93
    %p107 = scmp.eq.s32.totalorder %s15, 1
    %p108 = por %p106, %p107
    %p110 = scmp.ne.s32.totalorder %s93, %s109
    %p111 = scmp.eq.s32.totalorder %s15, 0
    %p112 = por %p110, %p111
    %s113 = ssub.s32 %s16, %s28
    %s114 = ssub.s32 %s17, %s24
    %s115 = sor.u32 %s113, %s114
    %p116 = scmp.eq.s32.totalorder %s115, 0
    %s118 = sadd.s32 %s117, 1
    %s119 = scalar_select %p116, %s117, %s118
    %p122 = pneg %p116
    %p123 = scmp.eq.s32.totalorder %s9, 1
    %p124 = por %p122, %p123
    %p125 = scmp.ne.s32.totalorder %s117, %s120
    %p126 = scmp.eq.s32.totalorder %s9, 0
    %p127 = por %p125, %p126
    %p128 = scmp.ne.s32.totalorder %s117, %s120
    %p129 = scmp.eq.s32.totalorder %s14, 1
    %p130 = por %p128, %p129
    %p131 = scmp.ne.s32.totalorder %s120, %s121
    %p132 = scmp.eq.s32.totalorder %s14, 0
    %p133 = por %p131, %p132
    %p134 = scmp.ne.s32.totalorder %s120, %s121
    %p135 = scmp.eq.s32.totalorder %s15, 1
    %p136 = por %p134, %p135
    %p138 = scmp.ne.s32.totalorder %s121, %s137
    %p139 = scmp.eq.s32.totalorder %s15, 0
    %p140 = por %p138, %p139
    %p141 = scmp.le.s32.totalorder 1, %s9
    %p142 = scmp.lt.s32.totalorder %s9, 3
    %p143 = pnand %p141, %p142
    %p144 = pneg %p143
    // Predicated region
    $region9: #{_lambda_.18} parent=5 // pred_check
      _
    $region10: #{_lambda_.18} parent=5 // pred_check_branch
      %146 = sbr.rel (%p143) target = $region12
    $region11: #{_lambda_.18} parent=5 // pred_region
      %s147 = ssub.s32 %s9, 1
    $region12: #{_lambda_.18} parent=5 // pred_fallthru
      _
    %p148 = scmp.lt.s32.totalorder %s9, 2
    // Predicated region
    $region13: #{_lambda_.18} parent=5 // pred_check
      %p149 = pneg %p148
    $region14: #{_lambda_.18} parent=5 // pred_check_branch
      %151 = sbr.rel (%p149) target = $region16
    $region15: #{_lambda_.18} parent=5 // pred_region
      // Predicated region
      $region17: #{_lambda_.18} parent=15 // pred_check
        %p152 = pneg %p43
      $region18: #{_lambda_.18} parent=15 // pred_check_branch
        %154 = sbr.rel (%p152) target = $region20
      $region19: #{_lambda_.18} parent=15 // pred_region
        %s155 = smul.u32 4, %s17
        %p156 = scmp.lt.s32.totalorder %s16, 1
        %s157 = scalar_select %p156, %s16, 1
        %p158 = scmp.lt.s32.totalorder %s155, 3
        %s159 = scalar_select %p158, %s155, 3
        %s160 = smul.addr %s157, 4
        %s161 = sadd.s32 %s159, %s160
        %s162 = scalar_lea.vmem %s0, %s161
        %s163 = smul.u32 4, %s17
      $region20: #{_lambda_.18} parent=15 // pred_fallthru
        _
      // Predicated region
      $region21: #{_lambda_.18} parent=15 // pred_check
        %p164 = pneg %p71
      $region22: #{_lambda_.18} parent=15 // pred_check_branch
        %166 = sbr.rel (%p164) target = $region24
      $region23: #{_lambda_.18} parent=15 // pred_region
        %s167 = smul.u32 4, %s17
        %p168 = scmp.lt.s32.totalorder %s16, 1
        %s169 = scalar_select %p168, %s16, 1
        %p170 = scmp.lt.s32.totalorder %s167, 3
        %s171 = scalar_select %p170, %s167, 3
        %s172 = smul.addr %s169, 4
        %s173 = sadd.s32 %s171, %s172
        %s174 = smul.addr %s173, 8
        %s175 = scalar_lea.vmem %s1, %s174
        %s176 = smul.u32 4, %s17
      $region24: #{_lambda_.18} parent=15 // pred_fallthru
        _
      // Predicated region
      $region25: #{_lambda_.18} parent=15 // pred_check
        %p177 = pneg %p99
      $region26: #{_lambda_.18} parent=15 // pred_check_branch
        %179 = sbr.rel (%p177) target = $region28
      $region27: #{_lambda_.18} parent=15 // pred_region
        %s180 = smul.u32 4, %s17
        %p181 = scmp.lt.s32.totalorder %s16, 1
        %s182 = scalar_select %p181, %s16, 1
        %p183 = scmp.lt.s32.totalorder %s180, 3
        %s184 = scalar_select %p183, %s180, 3
        %s185 = smul.addr %s182, 4
        %s186 = sadd.s32 %s184, %s185
        %s187 = smul.addr %s186, 8
        %s188 = scalar_lea.vmem %s2, %s187
        %s189 = smul.u32 4, %s17
      $region28: #{_lambda_.18} parent=15 // pred_fallthru
        _
    $region16: #{_lambda_.18} parent=5 // pred_fallthru
      _
    %p190 = scmp.le.s32.totalorder 1, %s9
    %p191 = scmp.lt.s32.totalorder %s9, 3
    %p192 = pnand %p190, %p191
    %p193 = pneg %p192
    // Predicated region
    $region29: #{_lambda_.18} parent=5 // pred_check
      _
    $region30: #{_lambda_.18} parent=5 // pred_check_branch
      %195 = sbr.rel (%p192) target = $region32
    $region31: #{_lambda_.18} parent=5 // pred_region
      %s196 = ssub.s32 %s9, 1
      %s197 = smul.u32 4, %s19
      %p198 = scmp.lt.s32.totalorder %s18, 1
      %s199 = scalar_select %p198, %s18, 1
      %p200 = scmp.lt.s32.totalorder %s197, 3
      %s201 = scalar_select %p200, %s197, 3
      %s202 = smul.addr %s199, 4
      %s203 = sadd.s32 %s201, %s202
      %s204 = scalar_lea.vmem %s0, %s203
      %p205 = pneg %p49
      %p206 = pneg %p46
      %s207 = smul.u32 4, %s19
      %p208 = scmp.lt.s32.totalorder %s18, 1
      %s209 = scalar_select %p208, %s18, 1
      %p210 = scmp.lt.s32.totalorder %s207, 3
      %s211 = scalar_select %p210, %s207, 3
      %s212 = smul.addr %s209, 4
      %s213 = sadd.s32 %s211, %s212
      %s214 = smul.addr %s213, 8
      %s215 = scalar_lea.vmem %s1, %s214
      %p216 = pneg %p77
      %p217 = pneg %p74
      %s218 = smul.u32 4, %s19
      %p219 = scmp.lt.s32.totalorder %s18, 1
      %s220 = scalar_select %p219, %s18, 1
      %p221 = scmp.lt.s32.totalorder %s218, 3
      %s222 = scalar_select %p221, %s218, 3
      %s223 = smul.addr %s220, 4
      %s224 = sadd.s32 %s222, %s223
      %s225 = smul.addr %s224, 8
      %s226 = scalar_lea.vmem %s2, %s225
      %p227 = pneg %p105
      %p228 = pneg %p102
      %p229 = pneg %p133
      %p230 = pneg %p130
      %s231 = smul.u32 4, %s19
      %p232 = scmp.lt.s32.totalorder %s18, 1
      %s233 = scalar_select %p232, %s18, 1
      %p234 = scmp.lt.s32.totalorder %s231, 3
      %s235 = scalar_select %p234, %s231, 3
      %s236 = smul.addr %s233, 4
      %s237 = sadd.s32 %s235, %s236
      %s238 = scalar_lea.vmem %s3, %s237
      %s239 = smul.u32 4, %s19
      %p240 = scmp.lt.s32.totalorder %s18, 1
      %s241 = scalar_select %p240, %s18, 1
      %p242 = scmp.lt.s32.totalorder %s239, 3
      %s243 = scalar_select %p242, %s239, 3
      %s244 = smul.addr %s241, 4
      %s245 = sadd.s32 %s243, %s244
      %s246 = scalar_lea.vmem %s0, %s245
      %s247 = smul.u32 4, %s19
      %s248 = smul.u32 4, %s19
      %p249 = scmp.lt.s32.totalorder %s18, 1
      %s250 = scalar_select %p249, %s18, 1
      %p251 = scmp.lt.s32.totalorder %s248, 3
      %s252 = scalar_select %p251, %s248, 3
      %s253 = smul.addr %s250, 4
      %s254 = sadd.s32 %s252, %s253
      %s255 = smul.addr %s254, 8
      %s256 = scalar_lea.vmem %s1, %s255
      %s257 = smul.u32 4, %s19
      %s258 = smul.u32 4, %s19
      %p259 = scmp.lt.s32.totalorder %s18, 1
      %s260 = scalar_select %p259, %s18, 1
      %p261 = scmp.lt.s32.totalorder %s258, 3
      %s262 = scalar_select %p261, %s258, 3
      %s263 = smul.addr %s260, 4
      %s264 = sadd.s32 %s262, %s263
      %s265 = smul.addr %s264, 8
      %s266 = scalar_lea.vmem %s2, %s265
      %s267 = smul.u32 4, %s19
      %s268 = smul.u32 4, %s19
      %p269 = scmp.lt.s32.totalorder %s18, 1
      %s270 = scalar_select %p269, %s18, 1
      %p271 = scmp.lt.s32.totalorder %s268, 3
      %s272 = scalar_select %p271, %s268, 3
      %s273 = smul.addr %s270, 4
      %s274 = sadd.s32 %s272, %s273
      %s275 = scalar_lea.vmem %s3, %s274
      %s276 = smul.u32 4, %s19
      %v277 = vld [vmem:[%s246] sm:$0x1]
      %v278 = vld [vmem:[%s246 + $0x1] sm:$0x1]
      %v279 = vld [vmem:[%s246 + $0x2] sm:$0x1]
      %v280 = vld [vmem:[%s246 + $0x3] sm:$0x1]
      %v281 = vld [vmem:[%s256] sm:$0x1f]
      %v282 = vld [vmem:[%s256 + $0x8] sm:$0x1f]
      %v283 = vld [vmem:[%s256 + $0x10] sm:$0x1f]
      %v284 = vld [vmem:[%s256 + $0x18] sm:$0x1f]
      %v285 = vld [vmem:[%s266] sm:$0x1f]
      %v286 = vld [vmem:[%s266 + $0x8] sm:$0x1f]
      %v287 = vld [vmem:[%s266 + $0x10] sm:$0x1f]
      %v288 = vld [vmem:[%s266 + $0x18] sm:$0x1f]
      %vm289 = vcmask 64512
      %v291 = vsel %vm289, %v277, 0
      %v294 = vsel %vm289, %v281, 0
      %296 = vmatprep.subr.mxu0 0.0
      %297 = vmatpush1.xpose.msra.mxu0 %v294
      %298 = vmatprep.subr.mxu0 0.0
      %299 = vmatpush1.xpose.msra.mxu0 0.0
      %300 = vmatprep.subr.mxu0 0.0
      %301 = vmatpush1.xpose.msra.mxu0 0.0
      %302 = vmatprep.subr.mxu0 0.0
      %303 = vmatpush1.xpose.msra.mxu0 0.0
      %304 = vmatprep.subr.mxu0 0.0
      %305 = vmatpush1.xpose.msra.mxu0 0.0
      %306 = vmatprep.subr.mxu0 0.0
      %307 = vmatpush1.xpose.msra.mxu0 0.0
      %308 = vmatprep.subr.mxu0 0.0
      %309 = vmatpush1.xpose.msra.mxu0 0.0
      %310 = vmatprep.subr.mxu0 0.0
      %311 = vmatpush1.xpose.msra.mxu0 0.0
      %312 = vmatprep.subr.mxu0 0.0
      %313 = vmatpush1.xpose.msra.mxu0 0.0
      %314 = vmatprep.subr.mxu0 0.0
      %315 = vmatpush1.xpose.msra.mxu0 0.0
      %316 = vmatprep.subr.mxu0 0.0
      %317 = vmatpush1.xpose.msra.mxu0 0.0
      %318 = vmatprep.subr.mxu0 0.0
      %319 = vmatpush1.xpose.msra.mxu0 0.0
      %320 = vmatprep.subr.mxu0 0.0
      %321 = vmatpush1.xpose.msra.mxu0 0.0
      %322 = vmatprep.subr.mxu0 0.0
      %323 = vmatpush1.xpose.msra.mxu0 0.0
      %324 = vmatprep.subr.mxu0 0.0
      %325 = vmatpush1.xpose.msra.mxu0 0.0
      %326 = vmatprep.subr.mxu0 0.0
      %327 = vmatpush1.xpose.msra.mxu0 0.0
      %328 = vmatprep.subr.mxu0 0.0
      %329 = vmatpush1.xpose.msra.mxu0 0.0
      %330 = vmatprep.subr.mxu0 0.0
      %331 = vmatpush1.xpose.msra.mxu0 0.0
      %332 = vmatprep.subr.mxu0 0.0
      %333 = vmatpush1.xpose.msra.mxu0 0.0
      %334 = vmatprep.subr.mxu0 0.0
      %335 = vmatpush1.xpose.msra.mxu0 0.0
      %336 = vmatprep.subr.mxu0 0.0
      %337 = vmatpush1.xpose.msra.mxu0 0.0
      %338 = vmatprep.subr.mxu0 0.0
      %339 = vmatpush1.xpose.msra.mxu0 0.0
      %340 = vmatprep.subr.mxu0 0.0
      %341 = vmatpush1.xpose.msra.mxu0 0.0
      %342 = vmatprep.subr.mxu0 0.0
      %343 = vmatpush1.xpose.msra.mxu0 0.0
      %344 = vmatprep.subr.mxu0 0.0
      %345 = vmatpush1.xpose.msra.mxu0 0.0
      %346 = vmatprep.subr.mxu0 0.0
      %347 = vmatpush1.xpose.msra.mxu0 0.0
      %348 = vmatprep.subr.mxu0 0.0
      %349 = vmatpush1.xpose.msra.mxu0 0.0
      %350 = vmatprep.subr.mxu0 0.0
      %351 = vmatpush1.xpose.msra.mxu0 0.0
      %352 = vmatprep.subr.mxu0 0.0
      %353 = vmatpush1.xpose.msra.mxu0 0.0
      %354 = vmatprep.subr.mxu0 0.0
      %355 = vmatpush1.xpose.msra.mxu0 0.0
      %356 = vmatprep.subr.mxu0 0.0
      %357 = vmatpush1.xpose.msra.mxu0 0.0
      %358 = vmatprep.subr.mxu0 0.0
      %359 = vmatpush1.xpose.msra.mxu0 0.0
      %360 = vmatprep.mubr.f32.mxu0 0.0
      %361 = vmatmul.mubr.f32.gmra.mrb[0].mxu0 %v291
      %v362 = vpop.f32.mrb[0].mxu0
      %v363 = vadd.f32 0.0, %v362
      %v364 = vpop.f32.mrb[0].mxu0
      %365 = vdwg.mxu0
      %v367 = vsel %vm289, %v278, 0
      %v370 = vsel %vm289, %v282, 0
      %372 = vmatprep.subr.mxu0 0.0
      %373 = vmatpush1.xpose.msra.mxu0 %v370
      %374 = vmatprep.subr.mxu0 0.0
      %375 = vmatpush1.xpose.msra.mxu0 0.0
      %376 = vmatprep.subr.mxu0 0.0
      %377 = vmatpush1.xpose.msra.mxu0 0.0
      %378 = vmatprep.subr.mxu0 0.0
      %379 = vmatpush1.xpose.msra.mxu0 0.0
      %380 = vmatprep.subr.mxu0 0.0
      %381 = vmatpush1.xpose.msra.mxu0 0.0
      %382 = vmatprep.subr.mxu0 0.0
      %383 = vmatpush1.xpose.msra.mxu0 0.0
      %384 = vmatprep.subr.mxu0 0.0
      %385 = vmatpush1.xpose.msra.mxu0 0.0
      %386 = vmatprep.subr.mxu0 0.0
      %387 = vmatpush1.xpose.msra.mxu0 0.0
      %388 = vmatprep.subr.mxu0 0.0
      %389 = vmatpush1.xpose.msra.mxu0 0.0
      %390 = vmatprep.subr.mxu0 0.0
      %391 = vmatpush1.xpose.msra.mxu0 0.0
      %392 = vmatprep.subr.mxu0 0.0
      %393 = vmatpush1.xpose.msra.mxu0 0.0
      %394 = vmatprep.subr.mxu0 0.0
      %395 = vmatpush1.xpose.msra.mxu0 0.0
      %396 = vmatprep.subr.mxu0 0.0
      %397 = vmatpush1.xpose.msra.mxu0 0.0
      %398 = vmatprep.subr.mxu0 0.0
      %399 = vmatpush1.xpose.msra.mxu0 0.0
      %400 = vmatprep.subr.mxu0 0.0
      %401 = vmatpush1.xpose.msra.mxu0 0.0
      %402 = vmatprep.subr.mxu0 0.0
      %403 = vmatpush1.xpose.msra.mxu0 0.0
      %404 = vmatprep.subr.mxu0 0.0
      %405 = vmatpush1.xpose.msra.mxu0 0.0
      %406 = vmatprep.subr.mxu0 0.0
      %407 = vmatpush1.xpose.msra.mxu0 0.0
      %408 = vmatprep.subr.mxu0 0.0
      %409 = vmatpush1.xpose.msra.mxu0 0.0
      %410 = vmatprep.subr.mxu0 0.0
      %411 = vmatpush1.xpose.msra.mxu0 0.0
      %412 = vmatprep.subr.mxu0 0.0
      %413 = vmatpush1.xpose.msra.mxu0 0.0
      %414 = vmatprep.subr.mxu0 0.0
      %415 = vmatpush1.xpose.msra.mxu0 0.0
      %416 = vmatprep.subr.mxu0 0.0
      %417 = vmatpush1.xpose.msra.mxu0 0.0
      %418 = vmatprep.subr.mxu0 0.0
      %419 = vmatpush1.xpose.msra.mxu0 0.0
      %420 = vmatprep.subr.mxu0 0.0
      %421 = vmatpush1.xpose.msra.mxu0 0.0
      %422 = vmatprep.subr.mxu0 0.0
      %423 = vmatpush1.xpose.msra.mxu0 0.0
      %424 = vmatprep.subr.mxu0 0.0
      %425 = vmatpush1.xpose.msra.mxu0 0.0
      %426 = vmatprep.subr.mxu0 0.0
      %427 = vmatpush1.xpose.msra.mxu0 0.0
      %428 = vmatprep.subr.mxu0 0.0
      %429 = vmatpush1.xpose.msra.mxu0 0.0
      %430 = vmatprep.subr.mxu0 0.0
      %431 = vmatpush1.xpose.msra.mxu0 0.0
      %432 = vmatprep.subr.mxu0 0.0
      %433 = vmatpush1.xpose.msra.mxu0 0.0
      %434 = vmatprep.subr.mxu0 0.0
      %435 = vmatpush1.xpose.msra.mxu0 0.0
      %436 = vmatprep.mubr.f32.mxu0 0.0
      %437 = vmatmul.mubr.f32.gmra.mrb[0].mxu0 %v367
      %v438 = vpop.f32.mrb[0].mxu0
      %v439 = vadd.f32 0.0, %v438
      %v440 = vpop.f32.mrb[0].mxu0
      %441 = vdwg.mxu0
      %v443 = vsel %vm289, %v279, 0
      %v446 = vsel %vm289, %v283, 0
      %448 = vmatprep.subr.mxu0 0.0
      %449 = vmatpush1.xpose.msra.mxu0 %v446
      %450 = vmatprep.subr.mxu0 0.0
      %451 = vmatpush1.xpose.msra.mxu0 0.0
      %452 = vmatprep.subr.mxu0 0.0
      %453 = vmatpush1.xpose.msra.mxu0 0.0
      %454 = vmatprep.subr.mxu0 0.0
      %455 = vmatpush1.xpose.msra.mxu0 0.0
      %456 = vmatprep.subr.mxu0 0.0
      %457 = vmatpush1.xpose.msra.mxu0 0.0
      %458 = vmatprep.subr.mxu0 0.0
      %459 = vmatpush1.xpose.msra.mxu0 0.0
      %460 = vmatprep.subr.mxu0 0.0
      %461 = vmatpush1.xpose.msra.mxu0 0.0
      %462 = vmatprep.subr.mxu0 0.0
      %463 = vmatpush1.xpose.msra.mxu0 0.0
      %464 = vmatprep.subr.mxu0 0.0
      %465 = vmatpush1.xpose.msra.mxu0 0.0
      %466 = vmatprep.subr.mxu0 0.0
      %467 = vmatpush1.xpose.msra.mxu0 0.0
      %468 = vmatprep.subr.mxu0 0.0
      %469 = vmatpush1.xpose.msra.mxu0 0.0
      %470 = vmatprep.subr.mxu0 0.0
      %471 = vmatpush1.xpose.msra.mxu0 0.0
      %472 = vmatprep.subr.mxu0 0.0
      %473 = vmatpush1.xpose.msra.mxu0 0.0
      %474 = vmatprep.subr.mxu0 0.0
      %475 = vmatpush1.xpose.msra.mxu0 0.0
      %476 = vmatprep.subr.mxu0 0.0
      %477 = vmatpush1.xpose.msra.mxu0 0.0
      %478 = vmatprep.subr.mxu0 0.0
      %479 = vmatpush1.xpose.msra.mxu0 0.0
      %480 = vmatprep.subr.mxu0 0.0
      %481 = vmatpush1.xpose.msra.mxu0 0.0
      %482 = vmatprep.subr.mxu0 0.0
      %483 = vmatpush1.xpose.msra.mxu0 0.0
      %484 = vmatprep.subr.mxu0 0.0
      %485 = vmatpush1.xpose.msra.mxu0 0.0
      %486 = vmatprep.subr.mxu0 0.0
      %487 = vmatpush1.xpose.msra.mxu0 0.0
      %488 = vmatprep.subr.mxu0 0.0
      %489 = vmatpush1.xpose.msra.mxu0 0.0
      %490 = vmatprep.subr.mxu0 0.0
      %491 = vmatpush1.xpose.msra.mxu0 0.0
      %492 = vmatprep.subr.mxu0 0.0
      %493 = vmatpush1.xpose.msra.mxu0 0.0
      %494 = vmatprep.subr.mxu0 0.0
      %495 = vmatpush1.xpose.msra.mxu0 0.0
      %496 = vmatprep.subr.mxu0 0.0
      %497 = vmatpush1.xpose.msra.mxu0 0.0
      %498 = vmatprep.subr.mxu0 0.0
      %499 = vmatpush1.xpose.msra.mxu0 0.0
      %500 = vmatprep.subr.mxu0 0.0
      %501 = vmatpush1.xpose.msra.mxu0 0.0
      %502 = vmatprep.subr.mxu0 0.0
      %503 = vmatpush1.xpose.msra.mxu0 0.0
      %504 = vmatprep.subr.mxu0 0.0
      %505 = vmatpush1.xpose.msra.mxu0 0.0
      %506 = vmatprep.subr.mxu0 0.0
      %507 = vmatpush1.xpose.msra.mxu0 0.0
      %508 = vmatprep.subr.mxu0 0.0
      %509 = vmatpush1.xpose.msra.mxu0 0.0
      %510 = vmatprep.subr.mxu0 0.0
      %511 = vmatpush1.xpose.msra.mxu0 0.0
      %512 = vmatprep.mubr.f32.mxu0 0.0
      %513 = vmatmul.mubr.f32.gmra.mrb[0].mxu0 %v443
      %v514 = vpop.f32.mrb[0].mxu0
      %v515 = vadd.f32 0.0, %v514
      %v516 = vpop.f32.mrb[0].mxu0
      %517 = vdwg.mxu0
      %v519 = vsel %vm289, %v280, 0
      %v522 = vsel %vm289, %v284, 0
      %524 = vmatprep.subr.mxu0 0.0
      %525 = vmatpush1.xpose.msra.mxu0 %v522
      %526 = vmatprep.subr.mxu0 0.0
      %527 = vmatpush1.xpose.msra.mxu0 0.0
      %528 = vmatprep.subr.mxu0 0.0
      %529 = vmatpush1.xpose.msra.mxu0 0.0
      %530 = vmatprep.subr.mxu0 0.0
      %531 = vmatpush1.xpose.msra.mxu0 0.0
      %532 = vmatprep.subr.mxu0 0.0
      %533 = vmatpush1.xpose.msra.mxu0 0.0
      %534 = vmatprep.subr.mxu0 0.0
      %535 = vmatpush1.xpose.msra.mxu0 0.0
      %536 = vmatprep.subr.mxu0 0.0
      %537 = vmatpush1.xpose.msra.mxu0 0.0
      %538 = vmatprep.subr.mxu0 0.0
      %539 = vmatpush1.xpose.msra.mxu0 0.0
      %540 = vmatprep.subr.mxu0 0.0
      %541 = vmatpush1.xpose.msra.mxu0 0.0
      %542 = vmatprep.subr.mxu0 0.0
      %543 = vmatpush1.xpose.msra.mxu0 0.0
      %544 = vmatprep.subr.mxu0 0.0
      %545 = vmatpush1.xpose.msra.mxu0 0.0
      %546 = vmatprep.subr.mxu0 0.0
      %547 = vmatpush1.xpose.msra.mxu0 0.0
      %548 = vmatprep.subr.mxu0 0.0
      %549 = vmatpush1.xpose.msra.mxu0 0.0
      %550 = vmatprep.subr.mxu0 0.0
      %551 = vmatpush1.xpose.msra.mxu0 0.0
      %552 = vmatprep.subr.mxu0 0.0
      %553 = vmatpush1.xpose.msra.mxu0 0.0
      %554 = vmatprep.subr.mxu0 0.0
      %555 = vmatpush1.xpose.msra.mxu0 0.0
      %556 = vmatprep.subr.mxu0 0.0
      %557 = vmatpush1.xpose.msra.mxu0 0.0
      %558 = vmatprep.subr.mxu0 0.0
      %559 = vmatpush1.xpose.msra.mxu0 0.0
      %560 = vmatprep.subr.mxu0 0.0
      %561 = vmatpush1.xpose.msra.mxu0 0.0
      %562 = vmatprep.subr.mxu0 0.0
      %563 = vmatpush1.xpose.msra.mxu0 0.0
      %564 = vmatprep.subr.mxu0 0.0
      %565 = vmatpush1.xpose.msra.mxu0 0.0
      %566 = vmatprep.subr.mxu0 0.0
      %567 = vmatpush1.xpose.msra.mxu0 0.0
      %568 = vmatprep.subr.mxu0 0.0
      %569 = vmatpush1.xpose.msra.mxu0 0.0
      %570 = vmatprep.subr.mxu0 0.0
      %571 = vmatpush1.xpose.msra.mxu0 0.0
      %572 = vmatprep.subr.mxu0 0.0
      %573 = vmatpush1.xpose.msra.mxu0 0.0
      %574 = vmatprep.subr.mxu0 0.0
      %575 = vmatpush1.xpose.msra.mxu0 0.0
      %576 = vmatprep.subr.mxu0 0.0
      %577 = vmatpush1.xpose.msra.mxu0 0.0
      %578 = vmatprep.subr.mxu0 0.0
      %579 = vmatpush1.xpose.msra.mxu0 0.0
      %580 = vmatprep.subr.mxu0 0.0
      %581 = vmatpush1.xpose.msra.mxu0 0.0
      %582 = vmatprep.subr.mxu0 0.0
      %583 = vmatpush1.xpose.msra.mxu0 0.0
      %584 = vmatprep.subr.mxu0 0.0
      %585 = vmatpush1.xpose.msra.mxu0 0.0
      %586 = vmatprep.subr.mxu0 0.0
      %587 = vmatpush1.xpose.msra.mxu0 0.0
      %588 = vmatprep.mubr.f32.mxu0 0.0
      %589 = vmatmul.mubr.f32.gmra.mrb[0].mxu0 %v519
      %v590 = vpop.f32.mrb[0].mxu0
      %v591 = vadd.f32 0.0, %v590
      %v592 = vpop.f32.mrb[0].mxu0
      %593 = vdwg.mxu0
      %vm594 = vcmask 32768
      %v595 = vsel %vm594, %v363, -inf
      %596 = vmax.xlane.f32.xlu0 %v595
      %v597 = vpop.xlane.xlu0 %596
      %v598 = vsel %vm594, %v439, -inf
      %599 = vmax.xlane.f32.xlu0 %v598
      %v600 = vpop.xlane.xlu0 %599
      %v601 = vsel %vm594, %v515, -inf
      %602 = vmax.xlane.f32.xlu0 %v601
      %v603 = vpop.xlane.xlu0 %602
      %v604 = vsel %vm594, %v591, -inf
      %605 = vmax.xlane.f32.xlu0 %v604
      %v606 = vpop.xlane.xlu0 %605
      %v607 = vsub.f32 %v363, %v597
      %v608 = vsub.f32 %v439, %v600
      %v609 = vsub.f32 %v515, %v603
      %v610 = vsub.f32 %v591, %v606
      %v611 = vmul.f32 %v607, 1.442695
      %v612 = vpow.pop %v611
      %v613 = vmul.f32 %v608, 1.442695
      %v614 = vpow.pop %v613
      %v615 = vmul.f32 %v609, 1.442695
      %v616 = vpow.pop %v615
      %v617 = vmul.f32 %v610, 1.442695
      %v618 = vpow.pop %v617
      %v619 = vsel %vm594, %v612, 0.0
      %620 = vadd.xlane.f32.xlu0 %v619
      %v621 = vpop.xlane.xlu0 %620
      %v622 = vsel %vm594, %v614, 0.0
      %623 = vadd.xlane.f32.xlu0 %v622
      %v624 = vpop.xlane.xlu0 %623
      %v625 = vsel %vm594, %v616, 0.0
      %626 = vadd.xlane.f32.xlu0 %v625
      %v627 = vpop.xlane.xlu0 %626
      %v628 = vsel %vm594, %v618, 0.0
      %629 = vadd.xlane.f32.xlu0 %v628
      %v630 = vpop.xlane.xlu0 %629
      %v631 = vrcp.pop %v621
      %v632 = vrcp.pop %v624
      %v633 = vrcp.pop %v627
      %v634 = vrcp.pop %v630
      %v635 = vmul.f32 %v612, %v631
      %v636 = vmul.f32 %v614, %v632
      %v637 = vmul.f32 %v616, %v633
      %v638 = vmul.f32 %v618, %v634
      %vm639 = vcmask 39936
      %v641 = vsel %vm639, %v635, 0
      %vm643 = vcmask 1044480
      %v645 = vsel %vm643, %v285, 0
      %647 = vmatprep.subr.mxu0 0.0
      %648 = vmatpush1.msra.mxu0 %v645
      %649 = vmatprep.subr.mxu0 0.0
      %650 = vmatpush1.msra.mxu0 0.0
      %651 = vmatprep.subr.mxu0 0.0
      %652 = vmatpush1.msra.mxu0 0.0
      %653 = vmatprep.subr.mxu0 0.0
      %654 = vmatpush1.msra.mxu0 0.0
      %655 = vmatprep.subr.mxu0 0.0
      %656 = vmatpush1.msra.mxu0 0.0
      %657 = vmatprep.subr.mxu0 0.0
      %658 = vmatpush1.msra.mxu0 0.0
      %659 = vmatprep.subr.mxu0 0.0
      %660 = vmatpush1.msra.mxu0 0.0
      %661 = vmatprep.subr.mxu0 0.0
      %662 = vmatpush1.msra.mxu0 0.0
      %663 = vmatprep.subr.mxu0 0.0
      %664 = vmatpush1.msra.mxu0 0.0
      %665 = vmatprep.subr.mxu0 0.0
      %666 = vmatpush1.msra.mxu0 0.0
      %667 = vmatprep.subr.mxu0 0.0
      %668 = vmatpush1.msra.mxu0 0.0
      %669 = vmatprep.subr.mxu0 0.0
      %670 = vmatpush1.msra.mxu0 0.0
      %671 = vmatprep.subr.mxu0 0.0
      %672 = vmatpush1.msra.mxu0 0.0
      %673 = vmatprep.subr.mxu0 0.0
      %674 = vmatpush1.msra.mxu0 0.0
      %675 = vmatprep.subr.mxu0 0.0
      %676 = vmatpush1.msra.mxu0 0.0
      %677 = vmatprep.subr.mxu0 0.0
      %678 = vmatpush1.msra.mxu0 0.0
      %679 = vmatprep.subr.mxu0 0.0
      %680 = vmatpush1.msra.mxu0 0.0
      %681 = vmatprep.subr.mxu0 0.0
      %682 = vmatpush1.msra.mxu0 0.0
      %683 = vmatprep.subr.mxu0 0.0
      %684 = vmatpush1.msra.mxu0 0.0
      %685 = vmatprep.subr.mxu0 0.0
      %686 = vmatpush1.msra.mxu0 0.0
      %687 = vmatprep.subr.mxu0 0.0
      %688 = vmatpush1.msra.mxu0 0.0
      %689 = vmatprep.subr.mxu0 0.0
      %690 = vmatpush1.msra.mxu0 0.0
      %691 = vmatprep.subr.mxu0 0.0
      %692 = vmatpush1.msra.mxu0 0.0
      %693 = vmatprep.subr.mxu0 0.0
      %694 = vmatpush1.msra.mxu0 0.0
      %695 = vmatprep.subr.mxu0 0.0
      %696 = vmatpush1.msra.mxu0 0.0
      %697 = vmatprep.subr.mxu0 0.0
      %698 = vmatpush1.msra.mxu0 0.0
      %699 = vmatprep.subr.mxu0 0.0
      %700 = vmatpush1.msra.mxu0 0.0
      %701 = vmatprep.subr.mxu0 0.0
      %702 = vmatpush1.msra.mxu0 0.0
      %703 = vmatprep.subr.mxu0 0.0
      %704 = vmatpush1.msra.mxu0 0.0
      %705 = vmatprep.subr.mxu0 0.0
      %706 = vmatpush1.msra.mxu0 0.0
      %707 = vmatprep.subr.mxu0 0.0
      %708 = vmatpush1.msra.mxu0 0.0
      %709 = vmatprep.subr.mxu0 0.0
      %710 = vmatpush1.msra.mxu0 0.0
      %711 = vmatprep.mubr.f32.mxu0 0.0
      %712 = vmatmul.mubr.f32.gmra.mrb[0].mxu0 %v641
      %v713 = vpop.f32.mrb[0].mxu0
      %v714 = vadd.f32 0.0, %v713
      %v715 = vpop.f32.mrb[0].mxu0
      %716 = vdwg.mxu0
      %v718 = vsel %vm639, %v636, 0
      %v721 = vsel %vm643, %v286, 0
      %723 = vmatprep.subr.mxu0 0.0
      %724 = vmatpush1.msra.mxu0 %v721
      %725 = vmatprep.subr.mxu0 0.0
      %726 = vmatpush1.msra.mxu0 0.0
      %727 = vmatprep.subr.mxu0 0.0
      %728 = vmatpush1.msra.mxu0 0.0
      %729 = vmatprep.subr.mxu0 0.0
      %730 = vmatpush1.msra.mxu0 0.0
      %731 = vmatprep.subr.mxu0 0.0
      %732 = vmatpush1.msra.mxu0 0.0
      %733 = vmatprep.subr.mxu0 0.0
      %734 = vmatpush1.msra.mxu0 0.0
      %735 = vmatprep.subr.mxu0 0.0
      %736 = vmatpush1.msra.mxu0 0.0
      %737 = vmatprep.subr.mxu0 0.0
      %738 = vmatpush1.msra.mxu0 0.0
      %739 = vmatprep.subr.mxu0 0.0
      %740 = vmatpush1.msra.mxu0 0.0
      %741 = vmatprep.subr.mxu0 0.0
      %742 = vmatpush1.msra.mxu0 0.0
      %743 = vmatprep.subr.mxu0 0.0
      %744 = vmatpush1.msra.mxu0 0.0
      %745 = vmatprep.subr.mxu0 0.0
      %746 = vmatpush1.msra.mxu0 0.0
      %747 = vmatprep.subr.mxu0 0.0
      %748 = vmatpush1.msra.mxu0 0.0
      %749 = vmatprep.subr.mxu0 0.0
      %750 = vmatpush1.msra.mxu0 0.0
      %751 = vmatprep.subr.mxu0 0.0
      %752 = vmatpush1.msra.mxu0 0.0
      %753 = vmatprep.subr.mxu0 0.0
      %754 = vmatpush1.msra.mxu0 0.0
      %755 = vmatprep.subr.mxu0 0.0
      %756 = vmatpush1.msra.mxu0 0.0
      %757 = vmatprep.subr.mxu0 0.0
      %758 = vmatpush1.msra.mxu0 0.0
      %759 = vmatprep.subr.mxu0 0.0
      %760 = vmatpush1.msra.mxu0 0.0
      %761 = vmatprep.subr.mxu0 0.0
      %762 = vmatpush1.msra.mxu0 0.0
      %763 = vmatprep.subr.mxu0 0.0
      %764 = vmatpush1.msra.mxu0 0.0
      %765 = vmatprep.subr.mxu0 0.0
      %766 = vmatpush1.msra.mxu0 0.0
      %767 = vmatprep.subr.mxu0 0.0
      %768 = vmatpush1.msra.mxu0 0.0
      %769 = vmatprep.subr.mxu0 0.0
      %770 = vmatpush1.msra.mxu0 0.0
      %771 = vmatprep.subr.mxu0 0.0
      %772 = vmatpush1.msra.mxu0 0.0
      %773 = vmatprep.subr.mxu0 0.0
      %774 = vmatpush1.msra.mxu0 0.0
      %775 = vmatprep.subr.mxu0 0.0
      %776 = vmatpush1.msra.mxu0 0.0
      %777 = vmatprep.subr.mxu0 0.0
      %778 = vmatpush1.msra.mxu0 0.0
      %779 = vmatprep.subr.mxu0 0.0
      %780 = vmatpush1.msra.mxu0 0.0
      %781 = vmatprep.subr.mxu0 0.0
      %782 = vmatpush1.msra.mxu0 0.0
      %783 = vmatprep.subr.mxu0 0.0
      %784 = vmatpush1.msra.mxu0 0.0
      %785 = vmatprep.subr.mxu0 0.0
      %786 = vmatpush1.msra.mxu0 0.0
      %787 = vmatprep.mubr.f32.mxu0 0.0
      %788 = vmatmul.mubr.f32.gmra.mrb[0].mxu0 %v718
      %v789 = vpop.f32.mrb[0].mxu0
      %v790 = vadd.f32 0.0, %v789
      %v791 = vpop.f32.mrb[0].mxu0
      %792 = vdwg.mxu0
      %v794 = vsel %vm639, %v637, 0
      %v797 = vsel %vm643, %v287, 0
      %799 = vmatprep.subr.mxu0 0.0
      %800 = vmatpush1.msra.mxu0 %v797
      %801 = vmatprep.subr.mxu0 0.0
      %802 = vmatpush1.msra.mxu0 0.0
      %803 = vmatprep.subr.mxu0 0.0
      %804 = vmatpush1.msra.mxu0 0.0
      %805 = vmatprep.subr.mxu0 0.0
      %806 = vmatpush1.msra.mxu0 0.0
      %807 = vmatprep.subr.mxu0 0.0
      %808 = vmatpush1.msra.mxu0 0.0
      %809 = vmatprep.subr.mxu0 0.0
      %810 = vmatpush1.msra.mxu0 0.0
      %811 = vmatprep.subr.mxu0 0.0
      %812 = vmatpush1.msra.mxu0 0.0
      %813 = vmatprep.subr.mxu0 0.0
      %814 = vmatpush1.msra.mxu0 0.0
      %815 = vmatprep.subr.mxu0 0.0
      %816 = vmatpush1.msra.mxu0 0.0
      %817 = vmatprep.subr.mxu0 0.0
      %818 = vmatpush1.msra.mxu0 0.0
      %819 = vmatprep.subr.mxu0 0.0
      %820 = vmatpush1.msra.mxu0 0.0
      %821 = vmatprep.subr.mxu0 0.0
      %822 = vmatpush1.msra.mxu0 0.0
      %823 = vmatprep.subr.mxu0 0.0
      %824 = vmatpush1.msra.mxu0 0.0
      %825 = vmatprep.subr.mxu0 0.0
      %826 = vmatpush1.msra.mxu0 0.0
      %827 = vmatprep.subr.mxu0 0.0
      %828 = vmatpush1.msra.mxu0 0.0
      %829 = vmatprep.subr.mxu0 0.0
      %830 = vmatpush1.msra.mxu0 0.0
      %831 = vmatprep.subr.mxu0 0.0
      %832 = vmatpush1.msra.mxu0 0.0
      %833 = vmatprep.subr.mxu0 0.0
      %834 = vmatpush1.msra.mxu0 0.0
      %835 = vmatprep.subr.mxu0 0.0
      %836 = vmatpush1.msra.mxu0 0.0
      %837 = vmatprep.subr.mxu0 0.0
      %838 = vmatpush1.msra.mxu0 0.0
      %839 = vmatprep.subr.mxu0 0.0
      %840 = vmatpush1.msra.mxu0 0.0
      %841 = vmatprep.subr.mxu0 0.0
      %842 = vmatpush1.msra.mxu0 0.0
      %843 = vmatprep.subr.mxu0 0.0
      %844 = vmatpush1.msra.mxu0 0.0
      %845 = vmatprep.subr.mxu0 0.0
      %846 = vmatpush1.msra.mxu0 0.0
      %847 = vmatprep.subr.mxu0 0.0
      %848 = vmatpush1.msra.mxu0 0.0
      %849 = vmatprep.subr.mxu0 0.0
      %850 = vmatpush1.msra.mxu0 0.0
      %851 = vmatprep.subr.mxu0 0.0
      %852 = vmatpush1.msra.mxu0 0.0
      %853 = vmatprep.subr.mxu0 0.0
      %854 = vmatpush1.msra.mxu0 0.0
      %855 = vmatprep.subr.mxu0 0.0
      %856 = vmatpush1.msra.mxu0 0.0
      %857 = vmatprep.subr.mxu0 0.0
      %858 = vmatpush1.msra.mxu0 0.0
      %859 = vmatprep.subr.mxu0 0.0
      %860 = vmatpush1.msra.mxu0 0.0
      %861 = vmatprep.subr.mxu0 0.0
      %862 = vmatpush1.msra.mxu0 0.0
      %863 = vmatprep.mubr.f32.mxu0 0.0
      %864 = vmatmul.mubr.f32.gmra.mrb[0].mxu0 %v794
      %v865 = vpop.f32.mrb[0].mxu0
      %v866 = vadd.f32 0.0, %v865
      %v867 = vpop.f32.mrb[0].mxu0
      %868 = vdwg.mxu0
      %v870 = vsel %vm639, %v638, 0
      %v873 = vsel %vm643, %v288, 0
      %875 = vmatprep.subr.mxu0 0.0
      %876 = vmatpush1.msra.mxu0 %v873
      %877 = vmatprep.subr.mxu0 0.0
      %878 = vmatpush1.msra.mxu0 0.0
      %879 = vmatprep.subr.mxu0 0.0
      %880 = vmatpush1.msra.mxu0 0.0
      %881 = vmatprep.subr.mxu0 0.0
      %882 = vmatpush1.msra.mxu0 0.0
      %883 = vmatprep.subr.mxu0 0.0
      %884 = vmatpush1.msra.mxu0 0.0
      %885 = vmatprep.subr.mxu0 0.0
      %886 = vmatpush1.msra.mxu0 0.0
      %887 = vmatprep.subr.mxu0 0.0
      %888 = vmatpush1.msra.mxu0 0.0
      %889 = vmatprep.subr.mxu0 0.0
      %890 = vmatpush1.msra.mxu0 0.0
      %891 = vmatprep.subr.mxu0 0.0
      %892 = vmatpush1.msra.mxu0 0.0
      %893 = vmatprep.subr.mxu0 0.0
      %894 = vmatpush1.msra.mxu0 0.0
      %895 = vmatprep.subr.mxu0 0.0
      %896 = vmatpush1.msra.mxu0 0.0
      %897 = vmatprep.subr.mxu0 0.0
      %898 = vmatpush1.msra.mxu0 0.0
      %899 = vmatprep.subr.mxu0 0.0
      %900 = vmatpush1.msra.mxu0 0.0
      %901 = vmatprep.subr.mxu0 0.0
      %902 = vmatpush1.msra.mxu0 0.0
      %903 = vmatprep.subr.mxu0 0.0
      %904 = vmatpush1.msra.mxu0 0.0
      %905 = vmatprep.subr.mxu0 0.0
      %906 = vmatpush1.msra.mxu0 0.0
      %907 = vmatprep.subr.mxu0 0.0
      %908 = vmatpush1.msra.mxu0 0.0
      %909 = vmatprep.subr.mxu0 0.0
      %910 = vmatpush1.msra.mxu0 0.0
      %911 = vmatprep.subr.mxu0 0.0
      %912 = vmatpush1.msra.mxu0 0.0
      %913 = vmatprep.subr.mxu0 0.0
      %914 = vmatpush1.msra.mxu0 0.0
      %915 = vmatprep.subr.mxu0 0.0
      %916 = vmatpush1.msra.mxu0 0.0
      %917 = vmatprep.subr.mxu0 0.0
      %918 = vmatpush1.msra.mxu0 0.0
      %919 = vmatprep.subr.mxu0 0.0
      %920 = vmatpush1.msra.mxu0 0.0
      %921 = vmatprep.subr.mxu0 0.0
      %922 = vmatpush1.msra.mxu0 0.0
      %923 = vmatprep.subr.mxu0 0.0
      %924 = vmatpush1.msra.mxu0 0.0
      %925 = vmatprep.subr.mxu0 0.0
      %926 = vmatpush1.msra.mxu0 0.0
      %927 = vmatprep.subr.mxu0 0.0
      %928 = vmatpush1.msra.mxu0 0.0
      %929 = vmatprep.subr.mxu0 0.0
      %930 = vmatpush1.msra.mxu0 0.0
      %931 = vmatprep.subr.mxu0 0.0
      %932 = vmatpush1.msra.mxu0 0.0
      %933 = vmatprep.subr.mxu0 0.0
      %934 = vmatpush1.msra.mxu0 0.0
      %935 = vmatprep.subr.mxu0 0.0
      %936 = vmatpush1.msra.mxu0 0.0
      %937 = vmatprep.subr.mxu0 0.0
      %938 = vmatpush1.msra.mxu0 0.0
      %939 = vmatprep.mubr.f32.mxu0 0.0
      %940 = vmatmul.mubr.f32.gmra.mrb[0].mxu0 %v870
      %v941 = vpop.f32.mrb[0].mxu0
      %v942 = vadd.f32 0.0, %v941
      %v943 = vpop.f32.mrb[0].mxu0
      %944 = vdwg.mxu0
      %vm945 = vcmask 57344
      %946 = vst.msk [vmem:[%s275] sm:$0x1] %vm945, %v714
      %947 = vst.msk [vmem:[%s275 + $0x1] sm:$0x1] %vm945, %v790
      %948 = vst.msk [vmem:[%s275 + $0x2] sm:$0x1] %vm945, %v866
      %949 = vst.msk [vmem:[%s275 + $0x3] sm:$0x1] %vm945, %v942
      %s950 = smul.u32 4, %s19
      %p951 = scmp.lt.s32.totalorder %s18, 1
      %s952 = scalar_select %p951, %s18, 1
      %p953 = scmp.lt.s32.totalorder %s950, 3
      %s954 = scalar_select %p953, %s950, 3
      %s955 = smul.addr %s952, 4
      %s956 = sadd.s32 %s954, %s955
      %s957 = scalar_lea.vmem %s3, %s956
      // Predicated region
      $region33: #{_lambda_.18} parent=31 // pred_check
        %p958 = pneg %p130
      $region34: #{_lambda_.18} parent=31 // pred_check_branch
        %960 = sbr.rel (%p958) target = $region36
      $region35: #{_lambda_.18} parent=31 // pred_region
        %s961 = smul.u32 4, %s19
      $region36: #{_lambda_.18} parent=31 // pred_fallthru
        _
    $region32: #{_lambda_.18} parent=5 // pred_fallthru
      _
    %p962 = scmp.le.s32.totalorder 2, %s9
    // Predicated region
    $region37: #{_lambda_.18} parent=5 // pred_check
      %p963 = pneg %p962
    $region38: #{_lambda_.18} parent=5 // pred_check_branch
      %965 = sbr.rel (%p963) target = $region40
    $region39: #{_lambda_.18} parent=5 // pred_region
      %s966 = ssub.s32 %s9, 2
      // Predicated region
      $region41: #{_lambda_.18} parent=39 // pred_check
        %p967 = pneg %p136
      $region42: #{_lambda_.18} parent=39 // pred_check_branch
        %969 = sbr.rel (%p967) target = $region44
      $region43: #{_lambda_.18} parent=39 // pred_region
        %s970 = smul.u32 4, %s21
        %p971 = scmp.lt.s32.totalorder %s20, 1
        %s972 = scalar_select %p971, %s20, 1
        %p973 = scmp.lt.s32.totalorder %s970, 3
        %s974 = scalar_select %p973, %s970, 3
        %s975 = smul.addr %s972, 4
        %s976 = sadd.s32 %s974, %s975
        %s977 = scalar_lea.vmem %s3, %s976
      $region44: #{_lambda_.18} parent=39 // pred_fallthru
        _
    $region40: #{_lambda_.18} parent=5 // pred_fallthru
      _
  $region6: #{_lambda_.18} parent=0 // loop_footer
    %s13 = sadd.s32 1, %s9
  $region7: #{_lambda_.18} parent=0 // loop_footer_branch
    %8 = sbr.rel target = $region3
  $region8: #{_lambda_.18} parent=0 // loop_exit
    _

// kernel: _lambda_.23
$region0: #{_lambda_.23}
  #allocation0 [shape = 'u32[]', space=smem, size = 0x4, offset = 0x4, fixed_abs, tag = 'smem constant byte address 0x4 - core index']
  #allocation1 [shape = 'u32[144,128]{1,0:T(1,128)}', space=vmem, size = 0x12000, scoped, tag = 'internal scratch']
  #allocation2 [shape = 'f32[2,32]{1,0:T(2,128)}', space=vmem, size = 0x400, scoped, tag = 'scratch operand']
  %s0 = inlined_call_operand.vmem [shape: f32[2,32], index: 0, kind: input, shape index: {}]
  %s1 = inlined_call_operand.vmem [shape: f32[1,32], index: 1, kind: input, shape index: {}]
  %s2 = inlined_call_operand.vmem [shape: f32[1,32], index: 2, kind: input, shape index: {}]
  %s3 = inlined_call_operand.vmem [shape: f32[32,64], index: 3, kind: input, shape index: {}]
  %s4 = inlined_call_operand.vmem [shape: f32[1,64], index: 4, kind: input, shape index: {}]
  %s5 = inlined_call_operand.vmem [shape: f32[2,64], index: 5, kind: output, shape index: {}]
  %s6 = sld [smem:[#allocation0]]
  $region34: #{_lambda_.23} parent=0
    _
  %s8 = ssub.s32 1, %s6
  %s9 = scalar_select 0, %s8, %s6
  // Predicated region
  $region2: #{_lambda_.23} parent=0 // pred_check
    _
  $region3: #{_lambda_.23} parent=0 // pred_check_branch
    %11 = sbr.rel (0) target = $region5
  $region4: #{_lambda_.23} parent=0 // pred_region
    _
  $region5: #{_lambda_.23} parent=0 // pred_fallthru
    _
  // Predicated region
  $region6: #{_lambda_.23} parent=0 // pred_check
    _
  $region7: #{_lambda_.23} parent=0 // pred_check_branch
    %13 = sbr.rel (0) target = $region9
  $region8: #{_lambda_.23} parent=0 // pred_region
    _
  $region9: #{_lambda_.23} parent=0 // pred_fallthru
    _
  // Predicated region
  $region10: #{_lambda_.23} parent=0 // pred_check
    _
  $region11: #{_lambda_.23} parent=0 // pred_check_branch
    %15 = sbr.rel (0) target = $region13
  $region12: #{_lambda_.23} parent=0 // pred_region
    _
  $region13: #{_lambda_.23} parent=0 // pred_fallthru
    _
  // Predicated region
  $region14: #{_lambda_.23} parent=0 // pred_check
    _
  $region15: #{_lambda_.23} parent=0 // pred_check_branch
    %17 = sbr.rel (0) target = $region17
  $region16: #{_lambda_.23} parent=0 // pred_region
    _
  $region17: #{_lambda_.23} parent=0 // pred_fallthru
    _
  // Predicated region
  $region18: #{_lambda_.23} parent=0 // pred_check
    _
  $region19: #{_lambda_.23} parent=0 // pred_check_branch
    %19 = sbr.rel (0) target = $region21
  $region20: #{_lambda_.23} parent=0 // pred_region
    _
  $region21: #{_lambda_.23} parent=0 // pred_fallthru
    _
  %p20 = scmp.eq.s32.totalorder 0, 0
  // Predicated region
  $region22: #{_lambda_.23} parent=0 // pred_check
    %p21 = pneg %p20
  $region23: #{_lambda_.23} parent=0 // pred_check_branch
    %23 = sbr.rel (%p21) target = $region25
  $region24: #{_lambda_.23} parent=0 // pred_region
    %v24 = vld [vmem:[%s0] sm:$0x3]
    %vm25 = vcmask 254976
    %v26 = vsel %vm25, %v24, 0.0
    %27 = vadd.xlane.f32.xlu0 %v26
    %v28 = vpop.xlane.xlu0 %27
    %v29 = vrcp.pop 32.0
    %v30 = vmul.f32 %v28, %v29
    %v31 = vsub.f32 %v24, %v30
    %v32 = vmul.f32 %v31, %v31
    %v33 = vsel %vm25, %v32, 0.0
    %34 = vadd.xlane.f32.xlu0 %v33
    %v35 = vpop.xlane.xlu0 %34
    %v36 = vmul.f32 %v35, %v29
    %v37 = vadd.f32 %v36, 1e-05
    %v38 = vrsqrt.pop %v37
    %v39 = vmul.f32 %v31, %v38
    %v40 = vld [vmem:[%s1] sm:$0x1]
    %v42 = vlaneseq
    %v43 = vshrl.u32 %v42, 7
    %v44 = vsub.s32 0, %v43
    %v45 = vrot.slane %v40, %v44
    %v47 = vmul.f32 %v39, %v45
    %v48 = vld [vmem:[%s2] sm:$0x1]
    %v50 = vlaneseq
    %v51 = vshrl.u32 %v50, 7
    %v52 = vsub.s32 0, %v51
    %v53 = vrot.slane %v48, %v52
    %v55 = vadd.f32 %v47, %v53
    %56 = vst.msk [vmem:[#allocation2] sm:$0x3] %vm25, %v55
  $region25: #{_lambda_.23} parent=0 // pred_fallthru
    _
  %v57 = vld [vmem:[#allocation2] sm:$0x3]
  %v58 = vld [vmem:[%s3] sm:$0xff]
  %v59 = vld [vmem:[%s3 + $0x8] sm:$0xff]
  %v60 = vld [vmem:[%s3 + $0x10] sm:$0xff]
  %v61 = vld [vmem:[%s3 + $0x18] sm:$0xff]
  %v62 = vld [vmem:[%s4] sm:$0x1]
  %v64 = vlaneseq
  %v65 = vshrl.u32 %v64, 7
  %v66 = vsub.s32 0, %v65
  %v67 = vrot.slane %v62, %v66
  %vm69 = vcmask 261120
  %v71 = vsel %vm69, %v57, 0
  %73 = vmatprep.subr.mxu0 0.0
  %74 = vmatpush1.msra.mxu0 %v58
  %75 = vmatprep.subr.mxu0 0.0
  %76 = vmatpush1.msra.mxu0 %v59
  %77 = vmatprep.subr.mxu0 0.0
  %78 = vmatpush1.msra.mxu0 %v60
  %79 = vmatprep.subr.mxu0 0.0
  %80 = vmatpush1.msra.mxu0 %v61
  %81 = vmatprep.subr.mxu0 0.0
  %82 = vmatpush1.msra.mxu0 0.0
  %83 = vmatprep.subr.mxu0 0.0
  %84 = vmatpush1.msra.mxu0 0.0
  %85 = vmatprep.subr.mxu0 0.0
  %86 = vmatpush1.msra.mxu0 0.0
  %87 = vmatprep.subr.mxu0 0.0
  %88 = vmatpush1.msra.mxu0 0.0
  %89 = vmatprep.subr.mxu0 0.0
  %90 = vmatpush1.msra.mxu0 0.0
  %91 = vmatprep.subr.mxu0 0.0
  %92 = vmatpush1.msra.mxu0 0.0
  %93 = vmatprep.subr.mxu0 0.0
  %94 = vmatpush1.msra.mxu0 0.0
  %95 = vmatprep.subr.mxu0 0.0
  %96 = vmatpush1.msra.mxu0 0.0
  %97 = vmatprep.subr.mxu0 0.0
  %98 = vmatpush1.msra.mxu0 0.0
  %99 = vmatprep.subr.mxu0 0.0
  %100 = vmatpush1.msra.mxu0 0.0
  %101 = vmatprep.subr.mxu0 0.0
  %102 = vmatpush1.msra.mxu0 0.0
  %103 = vmatprep.subr.mxu0 0.0
  %104 = vmatpush1.msra.mxu0 0.0
  %105 = vmatprep.subr.mxu0 0.0
  %106 = vmatpush1.msra.mxu0 0.0
  %107 = vmatprep.subr.mxu0 0.0
  %108 = vmatpush1.msra.mxu0 0.0
  %109 = vmatprep.subr.mxu0 0.0
  %110 = vmatpush1.msra.mxu0 0.0
  %111 = vmatprep.subr.mxu0 0.0
  %112 = vmatpush1.msra.mxu0 0.0
  %113 = vmatprep.subr.mxu0 0.0
  %114 = vmatpush1.msra.mxu0 0.0
  %115 = vmatprep.subr.mxu0 0.0
  %116 = vmatpush1.msra.mxu0 0.0
  %117 = vmatprep.subr.mxu0 0.0
  %118 = vmatpush1.msra.mxu0 0.0
  %119 = vmatprep.subr.mxu0 0.0
  %120 = vmatpush1.msra.mxu0 0.0
  %121 = vmatprep.subr.mxu0 0.0
  %122 = vmatpush1.msra.mxu0 0.0
  %123 = vmatprep.subr.mxu0 0.0
  %124 = vmatpush1.msra.mxu0 0.0
  %125 = vmatprep.subr.mxu0 0.0
  %126 = vmatpush1.msra.mxu0 0.0
  %127 = vmatprep.subr.mxu0 0.0
  %128 = vmatpush1.msra.mxu0 0.0
  %129 = vmatprep.subr.mxu0 0.0
  %130 = vmatpush1.msra.mxu0 0.0
  %131 = vmatprep.subr.mxu0 0.0
  %132 = vmatpush1.msra.mxu0 0.0
  %133 = vmatprep.subr.mxu0 0.0
  %134 = vmatpush1.msra.mxu0 0.0
  %135 = vmatprep.subr.mxu0 0.0
  %136 = vmatpush1.msra.mxu0 0.0
  %137 = vmatprep.mubr.f32.mxu0 0.0
  %138 = vmatmul.mubr.f32.gmra.mrb[0].mxu0 %v71
  %v139 = vpop.f32.mrb[0].mxu0
  %v140 = vadd.f32 %v67, %v139
  %v141 = vpop.f32.mrb[0].mxu0
  %142 = vdwg.mxu0
  %v143 = vmax.f32 %v140, 0.0
  %vm144 = vcmask 517120
  %145 = vst.msk [vmem:[%s5] sm:$0x3] %vm144, %v143
  // Predicated region
  $region26: #{_lambda_.23} parent=0 // pred_check
    _
  $region27: #{_lambda_.23} parent=0 // pred_check_branch
    %147 = sbr.rel (0) target = $region29
  $region28: #{_lambda_.23} parent=0 // pred_region
    _
  $region29: #{_lambda_.23} parent=0 // pred_fallthru
    _
  // Predicated region
  $region30: #{_lambda_.23} parent=0 // pred_check
    _
  $region31: #{_lambda_.23} parent=0 // pred_check_branch
    %149 = sbr.rel (0) target = $region33
  $region32: #{_lambda_.23} parent=0 // pred_region
    _
  $region33: #{_lambda_.23} parent=0 // pred_fallthru
    _

// kernel: _lambda_.24
$region0: #{_lambda_.24}
  #allocation0 [shape = 'u32[]', space=smem, size = 0x4, offset = 0x4, fixed_abs, tag = 'smem constant byte address 0x4 - core index']
  #allocation1 [shape = 'u32[144,128]{1,0:T(1,128)}', space=vmem, size = 0x12000, scoped, tag = 'internal scratch']
  #allocation2 [shape = 'f32[2,32]{1,0:T(2,128)}', space=vmem, size = 0x400, scoped, tag = 'scratch operand']
  %s0 = inlined_call_operand.vmem [shape: f32[2,64], index: 0, kind: input, shape index: {}]
  %s1 = inlined_call_operand.vmem [shape: f32[64,32], index: 1, kind: input, shape index: {}]
  %s2 = inlined_call_operand.vmem [shape: f32[1,32], index: 2, kind: input, shape index: {}]
  %s3 = inlined_call_operand.vmem [shape: f32[2,32], index: 3, kind: input, shape index: {}]
  %s4 = inlined_call_operand.vmem [shape: f32[2,32], index: 4, kind: output, shape index: {}]
  %s5 = sld [smem:[#allocation0]]
  $region34: #{_lambda_.24} parent=0
    _
  %s7 = ssub.s32 1, %s5
  %s8 = scalar_select 0, %s7, %s5
  // Predicated region
  $region2: #{_lambda_.24} parent=0 // pred_check
    _
  $region3: #{_lambda_.24} parent=0 // pred_check_branch
    %10 = sbr.rel (0) target = $region5
  $region4: #{_lambda_.24} parent=0 // pred_region
    _
  $region5: #{_lambda_.24} parent=0 // pred_fallthru
    _
  // Predicated region
  $region6: #{_lambda_.24} parent=0 // pred_check
    _
  $region7: #{_lambda_.24} parent=0 // pred_check_branch
    %12 = sbr.rel (0) target = $region9
  $region8: #{_lambda_.24} parent=0 // pred_region
    _
  $region9: #{_lambda_.24} parent=0 // pred_fallthru
    _
  // Predicated region
  $region10: #{_lambda_.24} parent=0 // pred_check
    _
  $region11: #{_lambda_.24} parent=0 // pred_check_branch
    %14 = sbr.rel (0) target = $region13
  $region12: #{_lambda_.24} parent=0 // pred_region
    _
  $region13: #{_lambda_.24} parent=0 // pred_fallthru
    _
  // Predicated region
  $region14: #{_lambda_.24} parent=0 // pred_check
    _
  $region15: #{_lambda_.24} parent=0 // pred_check_branch
    %16 = sbr.rel (0) target = $region17
  $region16: #{_lambda_.24} parent=0 // pred_region
    _
  $region17: #{_lambda_.24} parent=0 // pred_fallthru
    _
  %p17 = scmp.eq.s32.totalorder 0, 0
  // Predicated region
  $region18: #{_lambda_.24} parent=0 // pred_check
    %p18 = pneg %p17
  $region19: #{_lambda_.24} parent=0 // pred_check_branch
    %20 = sbr.rel (%p18) target = $region21
  $region20: #{_lambda_.24} parent=0 // pred_region
    %vm21 = vcmask 254976
    %22 = vst.msk [vmem:[#allocation2] sm:$0x3] %vm21, 0.0
  $region21: #{_lambda_.24} parent=0 // pred_fallthru
    _
  %v23 = vld [vmem:[#allocation2] sm:$0x3]
  %v24 = vld [vmem:[%s0] sm:$0x3]
  %v25 = vld [vmem:[%s1] sm:$0xff]
  %v26 = vld [vmem:[%s1 + $0x8] sm:$0xff]
  %v27 = vld [vmem:[%s1 + $0x10] sm:$0xff]
  %v28 = vld [vmem:[%s1 + $0x18] sm:$0xff]
  %v29 = vld [vmem:[%s1 + $0x20] sm:$0xff]
  %v30 = vld [vmem:[%s1 + $0x28] sm:$0xff]
  %v31 = vld [vmem:[%s1 + $0x30] sm:$0xff]
  %v32 = vld [vmem:[%s1 + $0x38] sm:$0xff]
  %vm33 = vcmask 523264
  %v35 = vsel %vm33, %v24, 0
  %37 = vmatprep.subr.mxu0 0.0
  %38 = vmatpush1.msra.mxu0 %v25
  %39 = vmatprep.subr.mxu0 0.0
  %40 = vmatpush1.msra.mxu0 %v26
  %41 = vmatprep.subr.mxu0 0.0
  %42 = vmatpush1.msra.mxu0 %v27
  %43 = vmatprep.subr.mxu0 0.0
  %44 = vmatpush1.msra.mxu0 %v28
  %45 = vmatprep.subr.mxu0 0.0
  %46 = vmatpush1.msra.mxu0 %v29
  %47 = vmatprep.subr.mxu0 0.0
  %48 = vmatpush1.msra.mxu0 %v30
  %49 = vmatprep.subr.mxu0 0.0
  %50 = vmatpush1.msra.mxu0 %v31
  %51 = vmatprep.subr.mxu0 0.0
  %52 = vmatpush1.msra.mxu0 %v32
  %53 = vmatprep.subr.mxu0 0.0
  %54 = vmatpush1.msra.mxu0 0.0
  %55 = vmatprep.subr.mxu0 0.0
  %56 = vmatpush1.msra.mxu0 0.0
  %57 = vmatprep.subr.mxu0 0.0
  %58 = vmatpush1.msra.mxu0 0.0
  %59 = vmatprep.subr.mxu0 0.0
  %60 = vmatpush1.msra.mxu0 0.0
  %61 = vmatprep.subr.mxu0 0.0
  %62 = vmatpush1.msra.mxu0 0.0
  %63 = vmatprep.subr.mxu0 0.0
  %64 = vmatpush1.msra.mxu0 0.0
  %65 = vmatprep.subr.mxu0 0.0
  %66 = vmatpush1.msra.mxu0 0.0
  %67 = vmatprep.subr.mxu0 0.0
  %68 = vmatpush1.msra.mxu0 0.0
  %69 = vmatprep.subr.mxu0 0.0
  %70 = vmatpush1.msra.mxu0 0.0
  %71 = vmatprep.subr.mxu0 0.0
  %72 = vmatpush1.msra.mxu0 0.0
  %73 = vmatprep.subr.mxu0 0.0
  %74 = vmatpush1.msra.mxu0 0.0
  %75 = vmatprep.subr.mxu0 0.0
  %76 = vmatpush1.msra.mxu0 0.0
  %77 = vmatprep.subr.mxu0 0.0
  %78 = vmatpush1.msra.mxu0 0.0
  %79 = vmatprep.subr.mxu0 0.0
  %80 = vmatpush1.msra.mxu0 0.0
  %81 = vmatprep.subr.mxu0 0.0
  %82 = vmatpush1.msra.mxu0 0.0
  %83 = vmatprep.subr.mxu0 0.0
  %84 = vmatpush1.msra.mxu0 0.0
  %85 = vmatprep.subr.mxu0 0.0
  %86 = vmatpush1.msra.mxu0 0.0
  %87 = vmatprep.subr.mxu0 0.0
  %88 = vmatpush1.msra.mxu0 0.0
  %89 = vmatprep.subr.mxu0 0.0
  %90 = vmatpush1.msra.mxu0 0.0
  %91 = vmatprep.subr.mxu0 0.0
  %92 = vmatpush1.msra.mxu0 0.0
  %93 = vmatprep.subr.mxu0 0.0
  %94 = vmatpush1.msra.mxu0 0.0
  %95 = vmatprep.subr.mxu0 0.0
  %96 = vmatpush1.msra.mxu0 0.0
  %97 = vmatprep.subr.mxu0 0.0
  %98 = vmatpush1.msra.mxu0 0.0
  %99 = vmatprep.subr.mxu0 0.0
  %100 = vmatpush1.msra.mxu0 0.0
  %101 = vmatprep.mubr.f32.mxu0 0.0
  %102 = vmatmul.mubr.f32.gmra.mrb[0].mxu0 %v35
  %v103 = vpop.f32.mrb[0].mxu0
  %v104 = vadd.f32 0.0, %v103
  %v105 = vpop.f32.mrb[0].mxu0
  %106 = vdwg.mxu0
  %v107 = vadd.f32 %v23, %v104
  %vm108 = vcmask 254976
  %109 = vst.msk [vmem:[#allocation2] sm:$0x3] %vm108, %v107
  // Predicated region
  $region22: #{_lambda_.24} parent=0 // pred_check
    %p110 = pneg %p17
  $region23: #{_lambda_.24} parent=0 // pred_check_branch
    %112 = sbr.rel (%p110) target = $region25
  $region24: #{_lambda_.24} parent=0 // pred_region
    %v113 = vld [vmem:[#allocation2] sm:$0x3]
    %v114 = vld [vmem:[%s2] sm:$0x1]
    %v116 = vlaneseq
    %v117 = vshrl.u32 %v116, 7
    %v118 = vsub.s32 0, %v117
    %v119 = vrot.slane %v114, %v118
    %v121 = vadd.f32 %v113, %v119
    %v122 = vld [vmem:[%s3] sm:$0x3]
    %v123 = vadd.f32 %v121, %v122
    %124 = vst.msk [vmem:[%s4] sm:$0x3] %vm108, %v123
  $region25: #{_lambda_.24} parent=0 // pred_fallthru
    _
  // Predicated region
  $region26: #{_lambda_.24} parent=0 // pred_check
    _
  $region27: #{_lambda_.24} parent=0 // pred_check_branch
    %126 = sbr.rel (0) target = $region29
  $region28: #{_lambda_.24} parent=0 // pred_region
    _
  $region29: #{_lambda_.24} parent=0 // pred_fallthru
    _
  // Predicated region
  $region30: #{_lambda_.24} parent=0 // pred_check
    _
  $region31: #{_lambda_.24} parent=0 // pred_check_branch
    %128 = sbr.rel (0) target = $region33
  $region32: #{_lambda_.24} parent=0 // pred_region
    _
  $region33: #{_lambda_.24} parent=0 // pred_fallthru
    _

// kernel: _lambda_.21
$region0: #{_lambda_.21}
  #allocation0 [shape = 'u32[]', space=smem, size = 0x4, offset = 0x4, fixed_abs, tag = 'smem constant byte address 0x4 - core index']
  #allocation1 [shape = 'u32[144,128]{1,0:T(1,128)}', space=vmem, size = 0x12000, scoped, tag = 'internal scratch']
  %s0 = inlined_call_operand.vmem [shape: f32[2,4,1,8], index: 0, kind: input, shape index: {}]
  %s1 = inlined_call_operand.vmem [shape: f32[2,4,8,8], index: 1, kind: input, shape index: {}]
  %s2 = inlined_call_operand.vmem [shape: f32[2,4,8,8], index: 2, kind: input, shape index: {}]
  %s3 = inlined_call_operand.vmem [shape: f32[2,1,8], index: 3, kind: input, shape index: {}]
  %s4 = inlined_call_operand.vmem [shape: f32[2,4,1,8], index: 4, kind: output, shape index: {}]
  %s5 = sld [smem:[#allocation0]]
  $region49: #{_lambda_.21} parent=0
    _
  %s7 = ssub.s32 1, %s5
  %s8 = scalar_select 0, %s7, %s5
  loop: start=0, step=1, limit=4
  $region2: #{_lambda_.21} parent=0 // loop_pre_header
    _
  $region3: #{_lambda_.21} parent=0 // loop_header
    %s10 = sphi 0, %s14
    %p11 = scmp.ge.s32.totalorder %s10, 4
    %s17 = sphi 0, %s29
    %s18 = sphi 0, %s25
    %s19 = sphi 0, %s17
    %s20 = sphi 0, %s18
    %s21 = sphi 0, %s19
    %s22 = sphi 0, %s20
    %s34 = sphi 0, %s36
    %s37 = sphi 0, %s34
    %s38 = sphi 0, %s37
    %s54 = sphi 0, %s38
    %s62 = sphi 0, %s64
    %s65 = sphi 0, %s62
    %s66 = sphi 0, %s65
    %s82 = sphi 0, %s66
    %s90 = sphi 0, %s92
    %s93 = sphi 0, %s90
    %s94 = sphi 0, %s93
    %s110 = sphi 0, %s94
    %s116 = sphi 0, %s118
    %s119 = sphi 0, %s116
    %s120 = sphi 0, %s119
    %s136 = sphi 0, %s120
    %s144 = sphi 0, %s146
    %s147 = sphi 0, %s144
    %s148 = sphi 0, %s147
    %s164 = sphi 0, %s148
  $region4: #{_lambda_.21} parent=0 // loop_header_branch
    %13 = sbr.rel (%p11) target = $region8
  $region5: #{_lambda_.21} parent=0 // loop_body
    %s15 = ssub.s32 %s10, 1
    %s16 = ssub.s32 %s10, 2
    %s23 = sadd.s32 1, %s18
    %p24 = scmp.ge.s32.totalorder %s23, 1
    %s25 = scalar_select %p24, 0, %s23
    %s26 = sadd.s32 1, %s17
    %s27 = scalar_select %p24, %s26, %s17
    %p28 = scmp.ge.s32.totalorder %s27, 2
    %s29 = scalar_select %p28, 0, %s27
    %s30 = ssub.s32 %s17, %s29
    %s31 = ssub.s32 %s18, %s25
    %s32 = sor.u32 %s30, %s31
    %p33 = scmp.eq.s32.totalorder %s32, 0
    %s35 = sadd.s32 %s34, 1
    %s36 = scalar_select %p33, %s34, %s35
    %p39 = pneg %p33
    %p40 = scmp.eq.s32.totalorder %s10, 1
    %p41 = por %p39, %p40
    %p42 = scmp.ne.s32.totalorder %s34, %s37
    %p43 = scmp.eq.s32.totalorder %s10, 0
    %p44 = por %p42, %p43
    %p45 = scmp.ne.s32.totalorder %s34, %s37
    %p46 = scmp.eq.s32.totalorder %s15, 1
    %p47 = por %p45, %p46
    %p48 = scmp.ne.s32.totalorder %s37, %s38
    %p49 = scmp.eq.s32.totalorder %s15, 0
    %p50 = por %p48, %p49
    %p51 = scmp.ne.s32.totalorder %s37, %s38
    %p52 = scmp.eq.s32.totalorder %s16, 1
    %p53 = por %p51, %p52
    %p55 = scmp.ne.s32.totalorder %s38, %s54
    %p56 = scmp.eq.s32.totalorder %s16, 0
    %p57 = por %p55, %p56
    %s58 = ssub.s32 %s17, %s29
    %s59 = ssub.s32 %s18, %s25
    %s60 = sor.u32 %s58, %s59
    %p61 = scmp.eq.s32.totalorder %s60, 0
    %s63 = sadd.s32 %s62, 1
    %s64 = scalar_select %p61, %s62, %s63
    %p67 = pneg %p61
    %p68 = scmp.eq.s32.totalorder %s10, 1
    %p69 = por %p67, %p68
    %p70 = scmp.ne.s32.totalorder %s62, %s65
    %p71 = scmp.eq.s32.totalorder %s10, 0
    %p72 = por %p70, %p71
    %p73 = scmp.ne.s32.totalorder %s62, %s65
    %p74 = scmp.eq.s32.totalorder %s15, 1
    %p75 = por %p73, %p74
    %p76 = scmp.ne.s32.totalorder %s65, %s66
    %p77 = scmp.eq.s32.totalorder %s15, 0
    %p78 = por %p76, %p77
    %p79 = scmp.ne.s32.totalorder %s65, %s66
    %p80 = scmp.eq.s32.totalorder %s16, 1
    %p81 = por %p79, %p80
    %p83 = scmp.ne.s32.totalorder %s66, %s82
    %p84 = scmp.eq.s32.totalorder %s16, 0
    %p85 = por %p83, %p84
    %s86 = ssub.s32 %s17, %s29
    %s87 = ssub.s32 %s18, %s25
    %s88 = sor.u32 %s86, %s87
    %p89 = scmp.eq.s32.totalorder %s88, 0
    %s91 = sadd.s32 %s90, 1
    %s92 = scalar_select %p89, %s90, %s91
    %p95 = pneg %p89
    %p96 = scmp.eq.s32.totalorder %s10, 1
    %p97 = por %p95, %p96
    %p98 = scmp.ne.s32.totalorder %s90, %s93
    %p99 = scmp.eq.s32.totalorder %s10, 0
    %p100 = por %p98, %p99
    %p101 = scmp.ne.s32.totalorder %s90, %s93
    %p102 = scmp.eq.s32.totalorder %s15, 1
    %p103 = por %p101, %p102
    %p104 = scmp.ne.s32.totalorder %s93, %s94
    %p105 = scmp.eq.s32.totalorder %s15, 0
    %p106 = por %p104, %p105
    %p107 = scmp.ne.s32.totalorder %s93, %s94
    %p108 = scmp.eq.s32.totalorder %s16, 1
    %p109 = por %p107, %p108
    %p111 = scmp.ne.s32.totalorder %s94, %s110
    %p112 = scmp.eq.s32.totalorder %s16, 0
    %p113 = por %p111, %p112
    %s114 = ssub.s32 %s17, %s29
    %p115 = scmp.eq.s32.totalorder %s114, 0
    %s117 = sadd.s32 %s116, 1
    %s118 = scalar_select %p115, %s116, %s117
    %p121 = pneg %p115
    %p122 = scmp.eq.s32.totalorder %s10, 1
    %p123 = por %p121, %p122
    %p124 = scmp.ne.s32.totalorder %s116, %s119
    %p125 = scmp.eq.s32.totalorder %s10, 0
    %p126 = por %p124, %p125
    %p127 = scmp.ne.s32.totalorder %s116, %s119
    %p128 = scmp.eq.s32.totalorder %s15, 1
    %p129 = por %p127, %p128
    %p130 = scmp.ne.s32.totalorder %s119, %s120
    %p131 = scmp.eq.s32.totalorder %s15, 0
    %p132 = por %p130, %p131
    %p133 = scmp.ne.s32.totalorder %s119, %s120
    %p134 = scmp.eq.s32.totalorder %s16, 1
    %p135 = por %p133, %p134
    %p137 = scmp.ne.s32.totalorder %s120, %s136
    %p138 = scmp.eq.s32.totalorder %s16, 0
    %p139 = por %p137, %p138
    %s140 = ssub.s32 %s17, %s29
    %s141 = ssub.s32 %s18, %s25
    %s142 = sor.u32 %s140, %s141
    %p143 = scmp.eq.s32.totalorder %s142, 0
    %s145 = sadd.s32 %s144, 1
    %s146 = scalar_select %p143, %s144, %s145
    %p149 = pneg %p143
    %p150 = scmp.eq.s32.totalorder %s10, 1
    %p151 = por %p149, %p150
    %p152 = scmp.ne.s32.totalorder %s144, %s147
    %p153 = scmp.eq.s32.totalorder %s10, 0
    %p154 = por %p152, %p153
    %p155 = scmp.ne.s32.totalorder %s144, %s147
    %p156 = scmp.eq.s32.totalorder %s15, 1
    %p157 = por %p155, %p156
    %p158 = scmp.ne.s32.totalorder %s147, %s148
    %p159 = scmp.eq.s32.totalorder %s15, 0
    %p160 = por %p158, %p159
    %p161 = scmp.ne.s32.totalorder %s147, %s148
    %p162 = scmp.eq.s32.totalorder %s16, 1
    %p163 = por %p161, %p162
    %p165 = scmp.ne.s32.totalorder %s148, %s164
    %p166 = scmp.eq.s32.totalorder %s16, 0
    %p167 = por %p165, %p166
    %p168 = scmp.le.s32.totalorder 1, %s10
    %p169 = scmp.lt.s32.totalorder %s10, 3
    %p170 = pnand %p168, %p169
    %p171 = pneg %p170
    // Predicated region
    $region9: #{_lambda_.21} parent=5 // pred_check
      _
    $region10: #{_lambda_.21} parent=5 // pred_check_branch
      %173 = sbr.rel (%p170) target = $region12
    $region11: #{_lambda_.21} parent=5 // pred_region
      %s174 = ssub.s32 %s10, 1
    $region12: #{_lambda_.21} parent=5 // pred_fallthru
      _
    %p175 = scmp.lt.s32.totalorder %s10, 2
    // Predicated region
    $region13: #{_lambda_.21} parent=5 // pred_check
      %p176 = pneg %p175
    $region14: #{_lambda_.21} parent=5 // pred_check_branch
      %178 = sbr.rel (%p176) target = $region16
    $region15: #{_lambda_.21} parent=5 // pred_region
      // Predicated region
      $region17: #{_lambda_.21} parent=15 // pred_check
        %p179 = pneg %p44
      $region18: #{_lambda_.21} parent=15 // pred_check_branch
        %181 = sbr.rel (%p179) target = $region20
      $region19: #{_lambda_.21} parent=15 // pred_region
        %s182 = smul.u32 4, %s18
        %p183 = scmp.lt.s32.totalorder %s17, 1
        %s184 = scalar_select %p183, %s17, 1
        %p185 = scmp.lt.s32.totalorder %s182, 3
        %s186 = scalar_select %p185, %s182, 3
        %s187 = smul.addr %s184, 4
        %s188 = sadd.s32 %s186, %s187
        %s189 = scalar_lea.vmem %s0, %s188
        %s190 = smul.u32 4, %s18
      $region20: #{_lambda_.21} parent=15 // pred_fallthru
        _
      // Predicated region
      $region21: #{_lambda_.21} parent=15 // pred_check
        %p191 = pneg %p72
      $region22: #{_lambda_.21} parent=15 // pred_check_branch
        %193 = sbr.rel (%p191) target = $region24
      $region23: #{_lambda_.21} parent=15 // pred_region
        %s194 = smul.u32 4, %s18
        %p195 = scmp.lt.s32.totalorder %s17, 1
        %s196 = scalar_select %p195, %s17, 1
        %p197 = scmp.lt.s32.totalorder %s194, 3
        %s198 = scalar_select %p197, %s194, 3
        %s199 = smul.addr %s196, 4
        %s200 = sadd.s32 %s198, %s199
        %s201 = smul.addr %s200, 8
        %s202 = scalar_lea.vmem %s1, %s201
        %s203 = smul.u32 4, %s18
      $region24: #{_lambda_.21} parent=15 // pred_fallthru
        _
      // Predicated region
      $region25: #{_lambda_.21} parent=15 // pred_check
        %p204 = pneg %p100
      $region26: #{_lambda_.21} parent=15 // pred_check_branch
        %206 = sbr.rel (%p204) target = $region28
      $region27: #{_lambda_.21} parent=15 // pred_region
        %s207 = smul.u32 4, %s18
        %p208 = scmp.lt.s32.totalorder %s17, 1
        %s209 = scalar_select %p208, %s17, 1
        %p210 = scmp.lt.s32.totalorder %s207, 3
        %s211 = scalar_select %p210, %s207, 3
        %s212 = smul.addr %s209, 4
        %s213 = sadd.s32 %s211, %s212
        %s214 = smul.addr %s213, 8
        %s215 = scalar_lea.vmem %s2, %s214
        %s216 = smul.u32 4, %s18
      $region28: #{_lambda_.21} parent=15 // pred_fallthru
        _
      // Predicated region
      $region29: #{_lambda_.21} parent=15 // pred_check
        %p217 = pneg %p126
      $region30: #{_lambda_.21} parent=15 // pred_check_branch
        %219 = sbr.rel (%p217) target = $region32
      $region31: #{_lambda_.21} parent=15 // pred_region
        %p220 = scmp.lt.s32.totalorder %s17, 1
        %s221 = scalar_select %p220, %s17, 1
        %s222 = scalar_lea.vmem %s3, %s221
      $region32: #{_lambda_.21} parent=15 // pred_fallthru
        _
    $region16: #{_lambda_.21} parent=5 // pred_fallthru
      _
    %p223 = scmp.le.s32.totalorder 1, %s10
    %p224 = scmp.lt.s32.totalorder %s10, 3
    %p225 = pnand %p223, %p224
    %p226 = pneg %p225
    // Predicated region
    $region33: #{_lambda_.21} parent=5 // pred_check
      _
    $region34: #{_lambda_.21} parent=5 // pred_check_branch
      %228 = sbr.rel (%p225) target = $region36
    $region35: #{_lambda_.21} parent=5 // pred_region
      %s229 = ssub.s32 %s10, 1
      %s230 = smul.u32 4, %s20
      %p231 = scmp.lt.s32.totalorder %s19, 1
      %s232 = scalar_select %p231, %s19, 1
      %p233 = scmp.lt.s32.totalorder %s230, 3
      %s234 = scalar_select %p233, %s230, 3
      %s235 = smul.addr %s232, 4
      %s236 = sadd.s32 %s234, %s235
      %s237 = scalar_lea.vmem %s0, %s236
      %p238 = pneg %p50
      %p239 = pneg %p47
      %s240 = smul.u32 4, %s20
      %p241 = scmp.lt.s32.totalorder %s19, 1
      %s242 = scalar_select %p241, %s19, 1
      %p243 = scmp.lt.s32.totalorder %s240, 3
      %s244 = scalar_select %p243, %s240, 3
      %s245 = smul.addr %s242, 4
      %s246 = sadd.s32 %s244, %s245
      %s247 = smul.addr %s246, 8
      %s248 = scalar_lea.vmem %s1, %s247
      %p249 = pneg %p78
      %p250 = pneg %p75
      %s251 = smul.u32 4, %s20
      %p252 = scmp.lt.s32.totalorder %s19, 1
      %s253 = scalar_select %p252, %s19, 1
      %p254 = scmp.lt.s32.totalorder %s251, 3
      %s255 = scalar_select %p254, %s251, 3
      %s256 = smul.addr %s253, 4
      %s257 = sadd.s32 %s255, %s256
      %s258 = smul.addr %s257, 8
      %s259 = scalar_lea.vmem %s2, %s258
      %p260 = pneg %p106
      %p261 = pneg %p103
      %p262 = scmp.lt.s32.totalorder %s19, 1
      %s263 = scalar_select %p262, %s19, 1
      %s264 = scalar_lea.vmem %s3, %s263
      %p265 = pneg %p132
      %p266 = pneg %p129
      %p267 = pneg %p160
      %p268 = pneg %p157
      %s269 = smul.u32 4, %s20
      %p270 = scmp.lt.s32.totalorder %s19, 1
      %s271 = scalar_select %p270, %s19, 1
      %p272 = scmp.lt.s32.totalorder %s269, 3
      %s273 = scalar_select %p272, %s269, 3
      %s274 = smul.addr %s271, 4
      %s275 = sadd.s32 %s273, %s274
      %s276 = scalar_lea.vmem %s4, %s275
      %s277 = smul.u32 4, %s20
      %p278 = scmp.lt.s32.totalorder %s19, 1
      %s279 = scalar_select %p278, %s19, 1
      %p280 = scmp.lt.s32.totalorder %s277, 3
      %s281 = scalar_select %p280, %s277, 3
      %s282 = smul.addr %s279, 4
      %s283 = sadd.s32 %s281, %s282
      %s284 = scalar_lea.vmem %s0, %s283
      %s285 = smul.u32 4, %s20
      %s286 = smul.u32 4, %s20
      %p287 = scmp.lt.s32.totalorder %s19, 1
      %s288 = scalar_select %p287, %s19, 1
      %p289 = scmp.lt.s32.totalorder %s286, 3
      %s290 = scalar_select %p289, %s286, 3
      %s291 = smul.addr %s288, 4
      %s292 = sadd.s32 %s290, %s291
      %s293 = smul.addr %s292, 8
      %s294 = scalar_lea.vmem %s1, %s293
      %s295 = smul.u32 4, %s20
      %s296 = smul.u32 4, %s20
      %p297 = scmp.lt.s32.totalorder %s19, 1
      %s298 = scalar_select %p297, %s19, 1
      %p299 = scmp.lt.s32.totalorder %s296, 3
      %s300 = scalar_select %p299, %s296, 3
      %s301 = smul.addr %s298, 4
      %s302 = sadd.s32 %s300, %s301
      %s303 = smul.addr %s302, 8
      %s304 = scalar_lea.vmem %s2, %s303
      %s305 = smul.u32 4, %s20
      %p306 = scmp.lt.s32.totalorder %s19, 1
      %s307 = scalar_select %p306, %s19, 1
      %s308 = scalar_lea.vmem %s3, %s307
      %s309 = smul.u32 4, %s20
      %p310 = scmp.lt.s32.totalorder %s19, 1
      %s311 = scalar_select %p310, %s19, 1
      %p312 = scmp.lt.s32.totalorder %s309, 3
      %s313 = scalar_select %p312, %s309, 3
      %s314 = smul.addr %s311, 4
      %s315 = sadd.s32 %s313, %s314
      %s316 = scalar_lea.vmem %s4, %s315
      %s317 = smul.u32 4, %s20
      %v318 = vld [vmem:[%s284] sm:$0x1]
      %v319 = vld [vmem:[%s284 + $0x1] sm:$0x1]
      %v320 = vld [vmem:[%s284 + $0x2] sm:$0x1]
      %v321 = vld [vmem:[%s284 + $0x3] sm:$0x1]
      %v322 = vld [vmem:[%s294] sm:$0xff]
      %v323 = vld [vmem:[%s294 + $0x8] sm:$0xff]
      %v324 = vld [vmem:[%s294 + $0x10] sm:$0xff]
      %v325 = vld [vmem:[%s294 + $0x18] sm:$0xff]
      %v326 = vld [vmem:[%s304] sm:$0xff]
      %v327 = vld [vmem:[%s304 + $0x8] sm:$0xff]
      %v328 = vld [vmem:[%s304 + $0x10] sm:$0xff]
      %v329 = vld [vmem:[%s304 + $0x18] sm:$0xff]
      %v330 = vld [vmem:[%s308] sm:$0x1]
      %vm331 = vcmask 64512
      %v333 = vsel %vm331, %v318, 0
      %v336 = vsel %vm331, %v322, 0
      %338 = vmatprep.subr.mxu0 0.0
      %339 = vmatpush1.xpose.msra.mxu0 %v336
      %340 = vmatprep.subr.mxu0 0.0
      %341 = vmatpush1.xpose.msra.mxu0 0.0
      %342 = vmatprep.subr.mxu0 0.0
      %343 = vmatpush1.xpose.msra.mxu0 0.0
      %344 = vmatprep.subr.mxu0 0.0
      %345 = vmatpush1.xpose.msra.mxu0 0.0
      %346 = vmatprep.subr.mxu0 0.0
      %347 = vmatpush1.xpose.msra.mxu0 0.0
      %348 = vmatprep.subr.mxu0 0.0
      %349 = vmatpush1.xpose.msra.mxu0 0.0
      %350 = vmatprep.subr.mxu0 0.0
      %351 = vmatpush1.xpose.msra.mxu0 0.0
      %352 = vmatprep.subr.mxu0 0.0
      %353 = vmatpush1.xpose.msra.mxu0 0.0
      %354 = vmatprep.subr.mxu0 0.0
      %355 = vmatpush1.xpose.msra.mxu0 0.0
      %356 = vmatprep.subr.mxu0 0.0
      %357 = vmatpush1.xpose.msra.mxu0 0.0
      %358 = vmatprep.subr.mxu0 0.0
      %359 = vmatpush1.xpose.msra.mxu0 0.0
      %360 = vmatprep.subr.mxu0 0.0
      %361 = vmatpush1.xpose.msra.mxu0 0.0
      %362 = vmatprep.subr.mxu0 0.0
      %363 = vmatpush1.xpose.msra.mxu0 0.0
      %364 = vmatprep.subr.mxu0 0.0
      %365 = vmatpush1.xpose.msra.mxu0 0.0
      %366 = vmatprep.subr.mxu0 0.0
      %367 = vmatpush1.xpose.msra.mxu0 0.0
      %368 = vmatprep.subr.mxu0 0.0
      %369 = vmatpush1.xpose.msra.mxu0 0.0
      %370 = vmatprep.subr.mxu0 0.0
      %371 = vmatpush1.xpose.msra.mxu0 0.0
      %372 = vmatprep.subr.mxu0 0.0
      %373 = vmatpush1.xpose.msra.mxu0 0.0
      %374 = vmatprep.subr.mxu0 0.0
      %375 = vmatpush1.xpose.msra.mxu0 0.0
      %376 = vmatprep.subr.mxu0 0.0
      %377 = vmatpush1.xpose.msra.mxu0 0.0
      %378 = vmatprep.subr.mxu0 0.0
      %379 = vmatpush1.xpose.msra.mxu0 0.0
      %380 = vmatprep.subr.mxu0 0.0
      %381 = vmatpush1.xpose.msra.mxu0 0.0
      %382 = vmatprep.subr.mxu0 0.0
      %383 = vmatpush1.xpose.msra.mxu0 0.0
      %384 = vmatprep.subr.mxu0 0.0
      %385 = vmatpush1.xpose.msra.mxu0 0.0
      %386 = vmatprep.subr.mxu0 0.0
      %387 = vmatpush1.xpose.msra.mxu0 0.0
      %388 = vmatprep.subr.mxu0 0.0
      %389 = vmatpush1.xpose.msra.mxu0 0.0
      %390 = vmatprep.subr.mxu0 0.0
      %391 = vmatpush1.xpose.msra.mxu0 0.0
      %392 = vmatprep.subr.mxu0 0.0
      %393 = vmatpush1.xpose.msra.mxu0 0.0
      %394 = vmatprep.subr.mxu0 0.0
      %395 = vmatpush1.xpose.msra.mxu0 0.0
      %396 = vmatprep.subr.mxu0 0.0
      %397 = vmatpush1.xpose.msra.mxu0 0.0
      %398 = vmatprep.subr.mxu0 0.0
      %399 = vmatpush1.xpose.msra.mxu0 0.0
      %400 = vmatprep.subr.mxu0 0.0
      %401 = vmatpush1.xpose.msra.mxu0 0.0
      %402 = vmatprep.mubr.f32.mxu0 0.0
      %403 = vmatmul.mubr.f32.gmra.mrb[0].mxu0 %v333
      %v404 = vpop.f32.mrb[0].mxu0
      %v405 = vadd.f32 %v330, %v404
      %v406 = vpop.f32.mrb[0].mxu0
      %407 = vdwg.mxu0
      %v409 = vsel %vm331, %v319, 0
      %v412 = vsel %vm331, %v323, 0
      %414 = vmatprep.subr.mxu0 0.0
      %415 = vmatpush1.xpose.msra.mxu0 %v412
      %416 = vmatprep.subr.mxu0 0.0
      %417 = vmatpush1.xpose.msra.mxu0 0.0
      %418 = vmatprep.subr.mxu0 0.0
      %419 = vmatpush1.xpose.msra.mxu0 0.0
      %420 = vmatprep.subr.mxu0 0.0
      %421 = vmatpush1.xpose.msra.mxu0 0.0
      %422 = vmatprep.subr.mxu0 0.0
      %423 = vmatpush1.xpose.msra.mxu0 0.0
      %424 = vmatprep.subr.mxu0 0.0
      %425 = vmatpush1.xpose.msra.mxu0 0.0
      %426 = vmatprep.subr.mxu0 0.0
      %427 = vmatpush1.xpose.msra.mxu0 0.0
      %428 = vmatprep.subr.mxu0 0.0
      %429 = vmatpush1.xpose.msra.mxu0 0.0
      %430 = vmatprep.subr.mxu0 0.0
      %431 = vmatpush1.xpose.msra.mxu0 0.0
      %432 = vmatprep.subr.mxu0 0.0
      %433 = vmatpush1.xpose.msra.mxu0 0.0
      %434 = vmatprep.subr.mxu0 0.0
      %435 = vmatpush1.xpose.msra.mxu0 0.0
      %436 = vmatprep.subr.mxu0 0.0
      %437 = vmatpush1.xpose.msra.mxu0 0.0
      %438 = vmatprep.subr.mxu0 0.0
      %439 = vmatpush1.xpose.msra.mxu0 0.0
      %440 = vmatprep.subr.mxu0 0.0
      %441 = vmatpush1.xpose.msra.mxu0 0.0
      %442 = vmatprep.subr.mxu0 0.0
      %443 = vmatpush1.xpose.msra.mxu0 0.0
      %444 = vmatprep.subr.mxu0 0.0
      %445 = vmatpush1.xpose.msra.mxu0 0.0
      %446 = vmatprep.subr.mxu0 0.0
      %447 = vmatpush1.xpose.msra.mxu0 0.0
      %448 = vmatprep.subr.mxu0 0.0
      %449 = vmatpush1.xpose.msra.mxu0 0.0
      %450 = vmatprep.subr.mxu0 0.0
      %451 = vmatpush1.xpose.msra.mxu0 0.0
      %452 = vmatprep.subr.mxu0 0.0
      %453 = vmatpush1.xpose.msra.mxu0 0.0
      %454 = vmatprep.subr.mxu0 0.0
      %455 = vmatpush1.xpose.msra.mxu0 0.0
      %456 = vmatprep.subr.mxu0 0.0
      %457 = vmatpush1.xpose.msra.mxu0 0.0
      %458 = vmatprep.subr.mxu0 0.0
      %459 = vmatpush1.xpose.msra.mxu0 0.0
      %460 = vmatprep.subr.mxu0 0.0
      %461 = vmatpush1.xpose.msra.mxu0 0.0
      %462 = vmatprep.subr.mxu0 0.0
      %463 = vmatpush1.xpose.msra.mxu0 0.0
      %464 = vmatprep.subr.mxu0 0.0
      %465 = vmatpush1.xpose.msra.mxu0 0.0
      %466 = vmatprep.subr.mxu0 0.0
      %467 = vmatpush1.xpose.msra.mxu0 0.0
      %468 = vmatprep.subr.mxu0 0.0
      %469 = vmatpush1.xpose.msra.mxu0 0.0
      %470 = vmatprep.subr.mxu0 0.0
      %471 = vmatpush1.xpose.msra.mxu0 0.0
      %472 = vmatprep.subr.mxu0 0.0
      %473 = vmatpush1.xpose.msra.mxu0 0.0
      %474 = vmatprep.subr.mxu0 0.0
      %475 = vmatpush1.xpose.msra.mxu0 0.0
      %476 = vmatprep.subr.mxu0 0.0
      %477 = vmatpush1.xpose.msra.mxu0 0.0
      %478 = vmatprep.mubr.f32.mxu0 0.0
      %479 = vmatmul.mubr.f32.gmra.mrb[0].mxu0 %v409
      %v480 = vpop.f32.mrb[0].mxu0
      %v481 = vadd.f32 %v330, %v480
      %v482 = vpop.f32.mrb[0].mxu0
      %483 = vdwg.mxu0
      %v485 = vsel %vm331, %v320, 0
      %v488 = vsel %vm331, %v324, 0
      %490 = vmatprep.subr.mxu0 0.0
      %491 = vmatpush1.xpose.msra.mxu0 %v488
      %492 = vmatprep.subr.mxu0 0.0
      %493 = vmatpush1.xpose.msra.mxu0 0.0
      %494 = vmatprep.subr.mxu0 0.0
      %495 = vmatpush1.xpose.msra.mxu0 0.0
      %496 = vmatprep.subr.mxu0 0.0
      %497 = vmatpush1.xpose.msra.mxu0 0.0
      %498 = vmatprep.subr.mxu0 0.0
      %499 = vmatpush1.xpose.msra.mxu0 0.0
      %500 = vmatprep.subr.mxu0 0.0
      %501 = vmatpush1.xpose.msra.mxu0 0.0
      %502 = vmatprep.subr.mxu0 0.0
      %503 = vmatpush1.xpose.msra.mxu0 0.0
      %504 = vmatprep.subr.mxu0 0.0
      %505 = vmatpush1.xpose.msra.mxu0 0.0
      %506 = vmatprep.subr.mxu0 0.0
      %507 = vmatpush1.xpose.msra.mxu0 0.0
      %508 = vmatprep.subr.mxu0 0.0
      %509 = vmatpush1.xpose.msra.mxu0 0.0
      %510 = vmatprep.subr.mxu0 0.0
      %511 = vmatpush1.xpose.msra.mxu0 0.0
      %512 = vmatprep.subr.mxu0 0.0
      %513 = vmatpush1.xpose.msra.mxu0 0.0
      %514 = vmatprep.subr.mxu0 0.0
      %515 = vmatpush1.xpose.msra.mxu0 0.0
      %516 = vmatprep.subr.mxu0 0.0
      %517 = vmatpush1.xpose.msra.mxu0 0.0
      %518 = vmatprep.subr.mxu0 0.0
      %519 = vmatpush1.xpose.msra.mxu0 0.0
      %520 = vmatprep.subr.mxu0 0.0
      %521 = vmatpush1.xpose.msra.mxu0 0.0
      %522 = vmatprep.subr.mxu0 0.0
      %523 = vmatpush1.xpose.msra.mxu0 0.0
      %524 = vmatprep.subr.mxu0 0.0
      %525 = vmatpush1.xpose.msra.mxu0 0.0
      %526 = vmatprep.subr.mxu0 0.0
      %527 = vmatpush1.xpose.msra.mxu0 0.0
      %528 = vmatprep.subr.mxu0 0.0
      %529 = vmatpush1.xpose.msra.mxu0 0.0
      %530 = vmatprep.subr.mxu0 0.0
      %531 = vmatpush1.xpose.msra.mxu0 0.0
      %532 = vmatprep.subr.mxu0 0.0
      %533 = vmatpush1.xpose.msra.mxu0 0.0
      %534 = vmatprep.subr.mxu0 0.0
      %535 = vmatpush1.xpose.msra.mxu0 0.0
      %536 = vmatprep.subr.mxu0 0.0
      %537 = vmatpush1.xpose.msra.mxu0 0.0
      %538 = vmatprep.subr.mxu0 0.0
      %539 = vmatpush1.xpose.msra.mxu0 0.0
      %540 = vmatprep.subr.mxu0 0.0
      %541 = vmatpush1.xpose.msra.mxu0 0.0
      %542 = vmatprep.subr.mxu0 0.0
      %543 = vmatpush1.xpose.msra.mxu0 0.0
      %544 = vmatprep.subr.mxu0 0.0
      %545 = vmatpush1.xpose.msra.mxu0 0.0
      %546 = vmatprep.subr.mxu0 0.0
      %547 = vmatpush1.xpose.msra.mxu0 0.0
      %548 = vmatprep.subr.mxu0 0.0
      %549 = vmatpush1.xpose.msra.mxu0 0.0
      %550 = vmatprep.subr.mxu0 0.0
      %551 = vmatpush1.xpose.msra.mxu0 0.0
      %552 = vmatprep.subr.mxu0 0.0
      %553 = vmatpush1.xpose.msra.mxu0 0.0
      %554 = vmatprep.mubr.f32.mxu0 0.0
      %555 = vmatmul.mubr.f32.gmra.mrb[0].mxu0 %v485
      %v556 = vpop.f32.mrb[0].mxu0
      %v557 = vadd.f32 %v330, %v556
      %v558 = vpop.f32.mrb[0].mxu0
      %559 = vdwg.mxu0
      %v561 = vsel %vm331, %v321, 0
      %v564 = vsel %vm331, %v325, 0
      %566 = vmatprep.subr.mxu0 0.0
      %567 = vmatpush1.xpose.msra.mxu0 %v564
      %568 = vmatprep.subr.mxu0 0.0
      %569 = vmatpush1.xpose.msra.mxu0 0.0
      %570 = vmatprep.subr.mxu0 0.0
      %571 = vmatpush1.xpose.msra.mxu0 0.0
      %572 = vmatprep.subr.mxu0 0.0
      %573 = vmatpush1.xpose.msra.mxu0 0.0
      %574 = vmatprep.subr.mxu0 0.0
      %575 = vmatpush1.xpose.msra.mxu0 0.0
      %576 = vmatprep.subr.mxu0 0.0
      %577 = vmatpush1.xpose.msra.mxu0 0.0
      %578 = vmatprep.subr.mxu0 0.0
      %579 = vmatpush1.xpose.msra.mxu0 0.0
      %580 = vmatprep.subr.mxu0 0.0
      %581 = vmatpush1.xpose.msra.mxu0 0.0
      %582 = vmatprep.subr.mxu0 0.0
      %583 = vmatpush1.xpose.msra.mxu0 0.0
      %584 = vmatprep.subr.mxu0 0.0
      %585 = vmatpush1.xpose.msra.mxu0 0.0
      %586 = vmatprep.subr.mxu0 0.0
      %587 = vmatpush1.xpose.msra.mxu0 0.0
      %588 = vmatprep.subr.mxu0 0.0
      %589 = vmatpush1.xpose.msra.mxu0 0.0
      %590 = vmatprep.subr.mxu0 0.0
      %591 = vmatpush1.xpose.msra.mxu0 0.0
      %592 = vmatprep.subr.mxu0 0.0
      %593 = vmatpush1.xpose.msra.mxu0 0.0
      %594 = vmatprep.subr.mxu0 0.0
      %595 = vmatpush1.xpose.msra.mxu0 0.0
      %596 = vmatprep.subr.mxu0 0.0
      %597 = vmatpush1.xpose.msra.mxu0 0.0
      %598 = vmatprep.subr.mxu0 0.0
      %599 = vmatpush1.xpose.msra.mxu0 0.0
      %600 = vmatprep.subr.mxu0 0.0
      %601 = vmatpush1.xpose.msra.mxu0 0.0
      %602 = vmatprep.subr.mxu0 0.0
      %603 = vmatpush1.xpose.msra.mxu0 0.0
      %604 = vmatprep.subr.mxu0 0.0
      %605 = vmatpush1.xpose.msra.mxu0 0.0
      %606 = vmatprep.subr.mxu0 0.0
      %607 = vmatpush1.xpose.msra.mxu0 0.0
      %608 = vmatprep.subr.mxu0 0.0
      %609 = vmatpush1.xpose.msra.mxu0 0.0
      %610 = vmatprep.subr.mxu0 0.0
      %611 = vmatpush1.xpose.msra.mxu0 0.0
      %612 = vmatprep.subr.mxu0 0.0
      %613 = vmatpush1.xpose.msra.mxu0 0.0
      %614 = vmatprep.subr.mxu0 0.0
      %615 = vmatpush1.xpose.msra.mxu0 0.0
      %616 = vmatprep.subr.mxu0 0.0
      %617 = vmatpush1.xpose.msra.mxu0 0.0
      %618 = vmatprep.subr.mxu0 0.0
      %619 = vmatpush1.xpose.msra.mxu0 0.0
      %620 = vmatprep.subr.mxu0 0.0
      %621 = vmatpush1.xpose.msra.mxu0 0.0
      %622 = vmatprep.subr.mxu0 0.0
      %623 = vmatpush1.xpose.msra.mxu0 0.0
      %624 = vmatprep.subr.mxu0 0.0
      %625 = vmatpush1.xpose.msra.mxu0 0.0
      %626 = vmatprep.subr.mxu0 0.0
      %627 = vmatpush1.xpose.msra.mxu0 0.0
      %628 = vmatprep.subr.mxu0 0.0
      %629 = vmatpush1.xpose.msra.mxu0 0.0
      %630 = vmatprep.mubr.f32.mxu0 0.0
      %631 = vmatmul.mubr.f32.gmra.mrb[0].mxu0 %v561
      %v632 = vpop.f32.mrb[0].mxu0
      %v633 = vadd.f32 %v330, %v632
      %v634 = vpop.f32.mrb[0].mxu0
      %635 = vdwg.mxu0
      %vm636 = vcmask 57344
      %v637 = vsel %vm636, %v405, -inf
      %638 = vmax.xlane.f32.xlu0 %v637
      %v639 = vpop.xlane.xlu0 %638
      %v640 = vsel %vm636, %v481, -inf
      %641 = vmax.xlane.f32.xlu0 %v640
      %v642 = vpop.xlane.xlu0 %641
      %v643 = vsel %vm636, %v557, -inf
      %644 = vmax.xlane.f32.xlu0 %v643
      %v645 = vpop.xlane.xlu0 %644
      %v646 = vsel %vm636, %v633, -inf
      %647 = vmax.xlane.f32.xlu0 %v646
      %v648 = vpop.xlane.xlu0 %647
      %v649 = vsub.f32 %v405, %v639
      %v650 = vsub.f32 %v481, %v642
      %v651 = vsub.f32 %v557, %v645
      %v652 = vsub.f32 %v633, %v648
      %v653 = vmul.f32 %v649, 1.442695
      %v654 = vpow.pop %v653
      %v655 = vmul.f32 %v650, 1.442695
      %v656 = vpow.pop %v655
      %v657 = vmul.f32 %v651, 1.442695
      %v658 = vpow.pop %v657
      %v659 = vmul.f32 %v652, 1.442695
      %v660 = vpow.pop %v659
      %v661 = vsel %vm636, %v654, 0.0
      %662 = vadd.xlane.f32.xlu0 %v661
      %v663 = vpop.xlane.xlu0 %662
      %v664 = vsel %vm636, %v656, 0.0
      %665 = vadd.xlane.f32.xlu0 %v664
      %v666 = vpop.xlane.xlu0 %665
      %v667 = vsel %vm636, %v658, 0.0
      %668 = vadd.xlane.f32.xlu0 %v667
      %v669 = vpop.xlane.xlu0 %668
      %v670 = vsel %vm636, %v660, 0.0
      %671 = vadd.xlane.f32.xlu0 %v670
      %v672 = vpop.xlane.xlu0 %671
      %v673 = vrcp.pop %v663
      %v674 = vrcp.pop %v666
      %v675 = vrcp.pop %v669
      %v676 = vrcp.pop %v672
      %v677 = vmul.f32 %v654, %v673
      %v678 = vmul.f32 %v656, %v674
      %v679 = vmul.f32 %v658, %v675
      %v680 = vmul.f32 %v660, %v676
      %v682 = vsel %vm331, %v677, 0
      %684 = vmatprep.subr.mxu0 0.0
      %685 = vmatpush1.msra.mxu0 %v326
      %686 = vmatprep.subr.mxu0 0.0
      %687 = vmatpush1.msra.mxu0 0.0
      %688 = vmatprep.subr.mxu0 0.0
      %689 = vmatpush1.msra.mxu0 0.0
      %690 = vmatprep.subr.mxu0 0.0
      %691 = vmatpush1.msra.mxu0 0.0
      %692 = vmatprep.subr.mxu0 0.0
      %693 = vmatpush1.msra.mxu0 0.0
      %694 = vmatprep.subr.mxu0 0.0
      %695 = vmatpush1.msra.mxu0 0.0
      %696 = vmatprep.subr.mxu0 0.0
      %697 = vmatpush1.msra.mxu0 0.0
      %698 = vmatprep.subr.mxu0 0.0
      %699 = vmatpush1.msra.mxu0 0.0
      %700 = vmatprep.subr.mxu0 0.0
      %701 = vmatpush1.msra.mxu0 0.0
      %702 = vmatprep.subr.mxu0 0.0
      %703 = vmatpush1.msra.mxu0 0.0
      %704 = vmatprep.subr.mxu0 0.0
      %705 = vmatpush1.msra.mxu0 0.0
      %706 = vmatprep.subr.mxu0 0.0
      %707 = vmatpush1.msra.mxu0 0.0
      %708 = vmatprep.subr.mxu0 0.0
      %709 = vmatpush1.msra.mxu0 0.0
      %710 = vmatprep.subr.mxu0 0.0
      %711 = vmatpush1.msra.mxu0 0.0
      %712 = vmatprep.subr.mxu0 0.0
      %713 = vmatpush1.msra.mxu0 0.0
      %714 = vmatprep.subr.mxu0 0.0
      %715 = vmatpush1.msra.mxu0 0.0
      %716 = vmatprep.subr.mxu0 0.0
      %717 = vmatpush1.msra.mxu0 0.0
      %718 = vmatprep.subr.mxu0 0.0
      %719 = vmatpush1.msra.mxu0 0.0
      %720 = vmatprep.subr.mxu0 0.0
      %721 = vmatpush1.msra.mxu0 0.0
      %722 = vmatprep.subr.mxu0 0.0
      %723 = vmatpush1.msra.mxu0 0.0
      %724 = vmatprep.subr.mxu0 0.0
      %725 = vmatpush1.msra.mxu0 0.0
      %726 = vmatprep.subr.mxu0 0.0
      %727 = vmatpush1.msra.mxu0 0.0
      %728 = vmatprep.subr.mxu0 0.0
      %729 = vmatpush1.msra.mxu0 0.0
      %730 = vmatprep.subr.mxu0 0.0
      %731 = vmatpush1.msra.mxu0 0.0
      %732 = vmatprep.subr.mxu0 0.0
      %733 = vmatpush1.msra.mxu0 0.0
      %734 = vmatprep.subr.mxu0 0.0
      %735 = vmatpush1.msra.mxu0 0.0
      %736 = vmatprep.subr.mxu0 0.0
      %737 = vmatpush1.msra.mxu0 0.0
      %738 = vmatprep.subr.mxu0 0.0
      %739 = vmatpush1.msra.mxu0 0.0
      %740 = vmatprep.subr.mxu0 0.0
      %741 = vmatpush1.msra.mxu0 0.0
      %742 = vmatprep.subr.mxu0 0.0
      %743 = vmatpush1.msra.mxu0 0.0
      %744 = vmatprep.subr.mxu0 0.0
      %745 = vmatpush1.msra.mxu0 0.0
      %746 = vmatprep.subr.mxu0 0.0
      %747 = vmatpush1.msra.mxu0 0.0
      %748 = vmatprep.mubr.f32.mxu0 0.0
      %749 = vmatmul.mubr.f32.gmra.mrb[0].mxu0 %v682
      %v750 = vpop.f32.mrb[0].mxu0
      %v751 = vadd.f32 0.0, %v750
      %v752 = vpop.f32.mrb[0].mxu0
      %753 = vdwg.mxu0
      %v755 = vsel %vm331, %v678, 0
      %757 = vmatprep.subr.mxu0 0.0
      %758 = vmatpush1.msra.mxu0 %v327
      %759 = vmatprep.subr.mxu0 0.0
      %760 = vmatpush1.msra.mxu0 0.0
      %761 = vmatprep.subr.mxu0 0.0
      %762 = vmatpush1.msra.mxu0 0.0
      %763 = vmatprep.subr.mxu0 0.0
      %764 = vmatpush1.msra.mxu0 0.0
      %765 = vmatprep.subr.mxu0 0.0
      %766 = vmatpush1.msra.mxu0 0.0
      %767 = vmatprep.subr.mxu0 0.0
      %768 = vmatpush1.msra.mxu0 0.0
      %769 = vmatprep.subr.mxu0 0.0
      %770 = vmatpush1.msra.mxu0 0.0
      %771 = vmatprep.subr.mxu0 0.0
      %772 = vmatpush1.msra.mxu0 0.0
      %773 = vmatprep.subr.mxu0 0.0
      %774 = vmatpush1.msra.mxu0 0.0
      %775 = vmatprep.subr.mxu0 0.0
      %776 = vmatpush1.msra.mxu0 0.0
      %777 = vmatprep.subr.mxu0 0.0
      %778 = vmatpush1.msra.mxu0 0.0
      %779 = vmatprep.subr.mxu0 0.0
      %780 = vmatpush1.msra.mxu0 0.0
      %781 = vmatprep.subr.mxu0 0.0
      %782 = vmatpush1.msra.mxu0 0.0
      %783 = vmatprep.subr.mxu0 0.0
      %784 = vmatpush1.msra.mxu0 0.0
      %785 = vmatprep.subr.mxu0 0.0
      %786 = vmatpush1.msra.mxu0 0.0
      %787 = vmatprep.subr.mxu0 0.0
      %788 = vmatpush1.msra.mxu0 0.0
      %789 = vmatprep.subr.mxu0 0.0
      %790 = vmatpush1.msra.mxu0 0.0
      %791 = vmatprep.subr.mxu0 0.0
      %792 = vmatpush1.msra.mxu0 0.0
      %793 = vmatprep.subr.mxu0 0.0
      %794 = vmatpush1.msra.mxu0 0.0
      %795 = vmatprep.subr.mxu0 0.0
      %796 = vmatpush1.msra.mxu0 0.0
      %797 = vmatprep.subr.mxu0 0.0
      %798 = vmatpush1.msra.mxu0 0.0
      %799 = vmatprep.subr.mxu0 0.0
      %800 = vmatpush1.msra.mxu0 0.0
      %801 = vmatprep.subr.mxu0 0.0
      %802 = vmatpush1.msra.mxu0 0.0
      %803 = vmatprep.subr.mxu0 0.0
      %804 = vmatpush1.msra.mxu0 0.0
      %805 = vmatprep.subr.mxu0 0.0
      %806 = vmatpush1.msra.mxu0 0.0
      %807 = vmatprep.subr.mxu0 0.0
      %808 = vmatpush1.msra.mxu0 0.0
      %809 = vmatprep.subr.mxu0 0.0
      %810 = vmatpush1.msra.mxu0 0.0
      %811 = vmatprep.subr.mxu0 0.0
      %812 = vmatpush1.msra.mxu0 0.0
      %813 = vmatprep.subr.mxu0 0.0
      %814 = vmatpush1.msra.mxu0 0.0
      %815 = vmatprep.subr.mxu0 0.0
      %816 = vmatpush1.msra.mxu0 0.0
      %817 = vmatprep.subr.mxu0 0.0
      %818 = vmatpush1.msra.mxu0 0.0
      %819 = vmatprep.subr.mxu0 0.0
      %820 = vmatpush1.msra.mxu0 0.0
      %821 = vmatprep.mubr.f32.mxu0 0.0
      %822 = vmatmul.mubr.f32.gmra.mrb[0].mxu0 %v755
      %v823 = vpop.f32.mrb[0].mxu0
      %v824 = vadd.f32 0.0, %v823
      %v825 = vpop.f32.mrb[0].mxu0
      %826 = vdwg.mxu0
      %v828 = vsel %vm331, %v679, 0
      %830 = vmatprep.subr.mxu0 0.0
      %831 = vmatpush1.msra.mxu0 %v328
      %832 = vmatprep.subr.mxu0 0.0
      %833 = vmatpush1.msra.mxu0 0.0
      %834 = vmatprep.subr.mxu0 0.0
      %835 = vmatpush1.msra.mxu0 0.0
      %836 = vmatprep.subr.mxu0 0.0
      %837 = vmatpush1.msra.mxu0 0.0
      %838 = vmatprep.subr.mxu0 0.0
      %839 = vmatpush1.msra.mxu0 0.0
      %840 = vmatprep.subr.mxu0 0.0
      %841 = vmatpush1.msra.mxu0 0.0
      %842 = vmatprep.subr.mxu0 0.0
      %843 = vmatpush1.msra.mxu0 0.0
      %844 = vmatprep.subr.mxu0 0.0
      %845 = vmatpush1.msra.mxu0 0.0
      %846 = vmatprep.subr.mxu0 0.0
      %847 = vmatpush1.msra.mxu0 0.0
      %848 = vmatprep.subr.mxu0 0.0
      %849 = vmatpush1.msra.mxu0 0.0
      %850 = vmatprep.subr.mxu0 0.0
      %851 = vmatpush1.msra.mxu0 0.0
      %852 = vmatprep.subr.mxu0 0.0
      %853 = vmatpush1.msra.mxu0 0.0
      %854 = vmatprep.subr.mxu0 0.0
      %855 = vmatpush1.msra.mxu0 0.0
      %856 = vmatprep.subr.mxu0 0.0
      %857 = vmatpush1.msra.mxu0 0.0
      %858 = vmatprep.subr.mxu0 0.0
      %859 = vmatpush1.msra.mxu0 0.0
      %860 = vmatprep.subr.mxu0 0.0
      %861 = vmatpush1.msra.mxu0 0.0
      %862 = vmatprep.subr.mxu0 0.0
      %863 = vmatpush1.msra.mxu0 0.0
      %864 = vmatprep.subr.mxu0 0.0
      %865 = vmatpush1.msra.mxu0 0.0
      %866 = vmatprep.subr.mxu0 0.0
      %867 = vmatpush1.msra.mxu0 0.0
      %868 = vmatprep.subr.mxu0 0.0
      %869 = vmatpush1.msra.mxu0 0.0
      %870 = vmatprep.subr.mxu0 0.0
      %871 = vmatpush1.msra.mxu0 0.0
      %872 = vmatprep.subr.mxu0 0.0
      %873 = vmatpush1.msra.mxu0 0.0
      %874 = vmatprep.subr.mxu0 0.0
      %875 = vmatpush1.msra.mxu0 0.0
      %876 = vmatprep.subr.mxu0 0.0
      %877 = vmatpush1.msra.mxu0 0.0
      %878 = vmatprep.subr.mxu0 0.0
      %879 = vmatpush1.msra.mxu0 0.0
      %880 = vmatprep.subr.mxu0 0.0
      %881 = vmatpush1.msra.mxu0 0.0
      %882 = vmatprep.subr.mxu0 0.0
      %883 = vmatpush1.msra.mxu0 0.0
      %884 = vmatprep.subr.mxu0 0.0
      %885 = vmatpush1.msra.mxu0 0.0
      %886 = vmatprep.subr.mxu0 0.0
      %887 = vmatpush1.msra.mxu0 0.0
      %888 = vmatprep.subr.mxu0 0.0
      %889 = vmatpush1.msra.mxu0 0.0
      %890 = vmatprep.subr.mxu0 0.0
      %891 = vmatpush1.msra.mxu0 0.0
      %892 = vmatprep.subr.mxu0 0.0
      %893 = vmatpush1.msra.mxu0 0.0
      %894 = vmatprep.mubr.f32.mxu0 0.0
      %895 = vmatmul.mubr.f32.gmra.mrb[0].mxu0 %v828
      %v896 = vpop.f32.mrb[0].mxu0
      %v897 = vadd.f32 0.0, %v896
      %v898 = vpop.f32.mrb[0].mxu0
      %899 = vdwg.mxu0
      %v901 = vsel %vm331, %v680, 0
      %903 = vmatprep.subr.mxu0 0.0
      %904 = vmatpush1.msra.mxu0 %v329
      %905 = vmatprep.subr.mxu0 0.0
      %906 = vmatpush1.msra.mxu0 0.0
      %907 = vmatprep.subr.mxu0 0.0
      %908 = vmatpush1.msra.mxu0 0.0
      %909 = vmatprep.subr.mxu0 0.0
      %910 = vmatpush1.msra.mxu0 0.0
      %911 = vmatprep.subr.mxu0 0.0
      %912 = vmatpush1.msra.mxu0 0.0
      %913 = vmatprep.subr.mxu0 0.0
      %914 = vmatpush1.msra.mxu0 0.0
      %915 = vmatprep.subr.mxu0 0.0
      %916 = vmatpush1.msra.mxu0 0.0
      %917 = vmatprep.subr.mxu0 0.0
      %918 = vmatpush1.msra.mxu0 0.0
      %919 = vmatprep.subr.mxu0 0.0
      %920 = vmatpush1.msra.mxu0 0.0
      %921 = vmatprep.subr.mxu0 0.0
      %922 = vmatpush1.msra.mxu0 0.0
      %923 = vmatprep.subr.mxu0 0.0
      %924 = vmatpush1.msra.mxu0 0.0
      %925 = vmatprep.subr.mxu0 0.0
      %926 = vmatpush1.msra.mxu0 0.0
      %927 = vmatprep.subr.mxu0 0.0
      %928 = vmatpush1.msra.mxu0 0.0
      %929 = vmatprep.subr.mxu0 0.0
      %930 = vmatpush1.msra.mxu0 0.0
      %931 = vmatprep.subr.mxu0 0.0
      %932 = vmatpush1.msra.mxu0 0.0
      %933 = vmatprep.subr.mxu0 0.0
      %934 = vmatpush1.msra.mxu0 0.0
      %935 = vmatprep.subr.mxu0 0.0
      %936 = vmatpush1.msra.mxu0 0.0
      %937 = vmatprep.subr.mxu0 0.0
      %938 = vmatpush1.msra.mxu0 0.0
      %939 = vmatprep.subr.mxu0 0.0
      %940 = vmatpush1.msra.mxu0 0.0
      %941 = vmatprep.subr.mxu0 0.0
      %942 = vmatpush1.msra.mxu0 0.0
      %943 = vmatprep.subr.mxu0 0.0
      %944 = vmatpush1.msra.mxu0 0.0
      %945 = vmatprep.subr.mxu0 0.0
      %946 = vmatpush1.msra.mxu0 0.0
      %947 = vmatprep.subr.mxu0 0.0
      %948 = vmatpush1.msra.mxu0 0.0
      %949 = vmatprep.subr.mxu0 0.0
      %950 = vmatpush1.msra.mxu0 0.0
      %951 = vmatprep.subr.mxu0 0.0
      %952 = vmatpush1.msra.mxu0 0.0
      %953 = vmatprep.subr.mxu0 0.0
      %954 = vmatpush1.msra.mxu0 0.0
      %955 = vmatprep.subr.mxu0 0.0
      %956 = vmatpush1.msra.mxu0 0.0
      %957 = vmatprep.subr.mxu0 0.0
      %958 = vmatpush1.msra.mxu0 0.0
      %959 = vmatprep.subr.mxu0 0.0
      %960 = vmatpush1.msra.mxu0 0.0
      %961 = vmatprep.subr.mxu0 0.0
      %962 = vmatpush1.msra.mxu0 0.0
      %963 = vmatprep.subr.mxu0 0.0
      %964 = vmatpush1.msra.mxu0 0.0
      %965 = vmatprep.subr.mxu0 0.0
      %966 = vmatpush1.msra.mxu0 0.0
      %967 = vmatprep.mubr.f32.mxu0 0.0
      %968 = vmatmul.mubr.f32.gmra.mrb[0].mxu0 %v901
      %v969 = vpop.f32.mrb[0].mxu0
      %v970 = vadd.f32 0.0, %v969
      %v971 = vpop.f32.mrb[0].mxu0
      %972 = vdwg.mxu0
      %973 = vst.msk [vmem:[%s316] sm:$0x1] %vm636, %v751
      %974 = vst.msk [vmem:[%s316 + $0x1] sm:$0x1] %vm636, %v824
      %975 = vst.msk [vmem:[%s316 + $0x2] sm:$0x1] %vm636, %v897
      %976 = vst.msk [vmem:[%s316 + $0x3] sm:$0x1] %vm636, %v970
      %s977 = smul.u32 4, %s20
      %p978 = scmp.lt.s32.totalorder %s19, 1
      %s979 = scalar_select %p978, %s19, 1
      %p980 = scmp.lt.s32.totalorder %s977, 3
      %s981 = scalar_select %p980, %s977, 3
      %s982 = smul.addr %s979, 4
      %s983 = sadd.s32 %s981, %s982
      %s984 = scalar_lea.vmem %s4, %s983
      // Predicated region
      $region37: #{_lambda_.21} parent=35 // pred_check
        %p985 = pneg %p157
      $region38: #{_lambda_.21} parent=35 // pred_check_branch
        %987 = sbr.rel (%p985) target = $region40
      $region39: #{_lambda_.21} parent=35 // pred_region
        %s988 = smul.u32 4, %s20
      $region40: #{_lambda_.21} parent=35 // pred_fallthru
        _
    $region36: #{_lambda_.21} parent=5 // pred_fallthru
      _
    %p989 = scmp.le.s32.totalorder 2, %s10
    // Predicated region
    $region41: #{_lambda_.21} parent=5 // pred_check
      %p990 = pneg %p989
    $region42: #{_lambda_.21} parent=5 // pred_check_branch
      %992 = sbr.rel (%p990) target = $region44
    $region43: #{_lambda_.21} parent=5 // pred_region
      %s993 = ssub.s32 %s10, 2
      // Predicated region
      $region45: #{_lambda_.21} parent=43 // pred_check
        %p994 = pneg %p163
      $region46: #{_lambda_.21} parent=43 // pred_check_branch
        %996 = sbr.rel (%p994) target = $region48
      $region47: #{_lambda_.21} parent=43 // pred_region
        %s997 = smul.u32 4, %s22
        %p998 = scmp.lt.s32.totalorder %s21, 1
        %s999 = scalar_select %p998, %s21, 1
        %p1000 = scmp.lt.s32.totalorder %s997, 3
        %s1001 = scalar_select %p1000, %s997, 3
        %s1002 = smul.addr %s999, 4
        %s1003 = sadd.s32 %s1001, %s1002
        %s1004 = scalar_lea.vmem %s4, %s1003
      $region48: #{_lambda_.21} parent=43 // pred_fallthru
        _
    $region44: #{_lambda_.21} parent=5 // pred_fallthru
      _
  $region6: #{_lambda_.21} parent=0 // loop_footer
    %s14 = sadd.s32 1, %s10
  $region7: #{_lambda_.21} parent=0 // loop_footer_branch
    %9 = sbr.rel target = $region3
  $region8: #{_lambda_.21} parent=0 // loop_exit
    _

// kernel: _lambda_.33
$region0: #{_lambda_.33}
  #allocation0 [shape = 'u32[]', space=smem, size = 0x4, offset = 0x4, fixed_abs, tag = 'smem constant byte address 0x4 - core index']
  #allocation1 [shape = 'u32[144,128]{1,0:T(1,128)}', space=vmem, size = 0x12000, scoped, tag = 'internal scratch']
  #allocation2 [shape = 'f32[2,32]{1,0:T(2,128)}', space=vmem, size = 0x400, scoped, tag = 'scratch operand']
  %s0 = inlined_call_operand.vmem [shape: f32[2,32], index: 0, kind: input, shape index: {}]
  %s1 = inlined_call_operand.vmem [shape: f32[1,32], index: 1, kind: input, shape index: {}]
  %s2 = inlined_call_operand.vmem [shape: f32[1,32], index: 2, kind: input, shape index: {}]
  %s3 = inlined_call_operand.vmem [shape: f32[32,96], index: 3, kind: input, shape index: {}]
  %s4 = inlined_call_operand.vmem [shape: f32[1,96], index: 4, kind: input, shape index: {}]
  %s5 = inlined_call_operand.hbm [shape: f32[2,96], index: 5, kind: output, shape index: {}]
  %s6 = sld [smem:[#allocation0]]
  $region34: #{_lambda_.33} parent=0
    _
  %s8 = ssub.s32 1, %s6
  %s9 = scalar_select 0, %s8, %s6
  $region1: #{_lambda_.33} parent=0
    #allocation3 [shape = 'u8[1024]{0}', space=vmem, size = 0x400, scoped, tag = 'output window, operand 0, single buffered']
    #allocation4 [shape = 's32[1]{0}', space=sflag, size = 0x4, scoped, tag = 'scoped memory for _lambda_.33']
    %10 = vsyncpa [#allocation4], 0
    // Predicated region
    $region2: #{_lambda_.33} parent=1 // pred_check
      _
    $region3: #{_lambda_.33} parent=1 // pred_check_branch
      %12 = sbr.rel (0) target = $region5
    $region4: #{_lambda_.33} parent=1 // pred_region
      _
    $region5: #{_lambda_.33} parent=1 // pred_fallthru
      _
    // Predicated region
    $region6: #{_lambda_.33} parent=1 // pred_check
      _
    $region7: #{_lambda_.33} parent=1 // pred_check_branch
      %14 = sbr.rel (0) target = $region9
    $region8: #{_lambda_.33} parent=1 // pred_region
      _
    $region9: #{_lambda_.33} parent=1 // pred_fallthru
      _
    // Predicated region
    $region10: #{_lambda_.33} parent=1 // pred_check
      _
    $region11: #{_lambda_.33} parent=1 // pred_check_branch
      %16 = sbr.rel (0) target = $region13
    $region12: #{_lambda_.33} parent=1 // pred_region
      _
    $region13: #{_lambda_.33} parent=1 // pred_fallthru
      _
    // Predicated region
    $region14: #{_lambda_.33} parent=1 // pred_check
      _
    $region15: #{_lambda_.33} parent=1 // pred_check_branch
      %18 = sbr.rel (0) target = $region17
    $region16: #{_lambda_.33} parent=1 // pred_region
      _
    $region17: #{_lambda_.33} parent=1 // pred_fallthru
      _
    // Predicated region
    $region18: #{_lambda_.33} parent=1 // pred_check
      _
    $region19: #{_lambda_.33} parent=1 // pred_check_branch
      %20 = sbr.rel (0) target = $region21
    $region20: #{_lambda_.33} parent=1 // pred_region
      _
    $region21: #{_lambda_.33} parent=1 // pred_fallthru
      _
    %p21 = scmp.eq.s32.totalorder 0, 0
    // Predicated region
    $region22: #{_lambda_.33} parent=1 // pred_check
      %p22 = pneg %p21
    $region23: #{_lambda_.33} parent=1 // pred_check_branch
      %24 = sbr.rel (%p22) target = $region25
    $region24: #{_lambda_.33} parent=1 // pred_region
      %v25 = vld [vmem:[%s0] sm:$0x3]
      %vm26 = vcmask 254976
      %v27 = vsel %vm26, %v25, 0.0
      %28 = vadd.xlane.f32.xlu0 %v27
      %v29 = vpop.xlane.xlu0 %28
      %v30 = vrcp.pop 32.0
      %v31 = vmul.f32 %v29, %v30
      %v32 = vsub.f32 %v25, %v31
      %v33 = vmul.f32 %v32, %v32
      %v34 = vsel %vm26, %v33, 0.0
      %35 = vadd.xlane.f32.xlu0 %v34
      %v36 = vpop.xlane.xlu0 %35
      %v37 = vmul.f32 %v36, %v30
      %v38 = vadd.f32 %v37, 1e-05
      %v39 = vrsqrt.pop %v38
      %v40 = vmul.f32 %v32, %v39
      %v41 = vld [vmem:[%s1] sm:$0x1]
      %v43 = vlaneseq
      %v44 = vshrl.u32 %v43, 7
      %v45 = vsub.s32 0, %v44
      %v46 = vrot.slane %v41, %v45
      %v48 = vmul.f32 %v40, %v46
      %v49 = vld [vmem:[%s2] sm:$0x1]
      %v51 = vlaneseq
      %v52 = vshrl.u32 %v51, 7
      %v53 = vsub.s32 0, %v52
      %v54 = vrot.slane %v49, %v53
      %v56 = vadd.f32 %v48, %v54
      %57 = vst.msk [vmem:[#allocation2] sm:$0x3] %vm26, %v56
    $region25: #{_lambda_.33} parent=1 // pred_fallthru
      _
    %v58 = vld [vmem:[#allocation2] sm:$0x3]
    %v59 = vld [vmem:[%s3] sm:$0xff]
    %v60 = vld [vmem:[%s3 + $0x8] sm:$0xff]
    %v61 = vld [vmem:[%s3 + $0x10] sm:$0xff]
    %v62 = vld [vmem:[%s3 + $0x18] sm:$0xff]
    %v63 = vld [vmem:[%s4] sm:$0x1]
    %v65 = vlaneseq
    %v66 = vshrl.u32 %v65, 7
    %v67 = vsub.s32 0, %v66
    %v68 = vrot.slane %v63, %v67
    %vm70 = vcmask 261120
    %v72 = vsel %vm70, %v58, 0
    %74 = vmatprep.subr.mxu0 0.0
    %75 = vmatpush1.msra.mxu0 %v59
    %76 = vmatprep.subr.mxu0 0.0
    %77 = vmatpush1.msra.mxu0 %v60
    %78 = vmatprep.subr.mxu0 0.0
    %79 = vmatpush1.msra.mxu0 %v61
    %80 = vmatprep.subr.mxu0 0.0
    %81 = vmatpush1.msra.mxu0 %v62
    %82 = vmatprep.subr.mxu0 0.0
    %83 = vmatpush1.msra.mxu0 0.0
    %84 = vmatprep.subr.mxu0 0.0
    %85 = vmatpush1.msra.mxu0 0.0
    %86 = vmatprep.subr.mxu0 0.0
    %87 = vmatpush1.msra.mxu0 0.0
    %88 = vmatprep.subr.mxu0 0.0
    %89 = vmatpush1.msra.mxu0 0.0
    %90 = vmatprep.subr.mxu0 0.0
    %91 = vmatpush1.msra.mxu0 0.0
    %92 = vmatprep.subr.mxu0 0.0
    %93 = vmatpush1.msra.mxu0 0.0
    %94 = vmatprep.subr.mxu0 0.0
    %95 = vmatpush1.msra.mxu0 0.0
    %96 = vmatprep.subr.mxu0 0.0
    %97 = vmatpush1.msra.mxu0 0.0
    %98 = vmatprep.subr.mxu0 0.0
    %99 = vmatpush1.msra.mxu0 0.0
    %100 = vmatprep.subr.mxu0 0.0
    %101 = vmatpush1.msra.mxu0 0.0
    %102 = vmatprep.subr.mxu0 0.0
    %103 = vmatpush1.msra.mxu0 0.0
    %104 = vmatprep.subr.mxu0 0.0
    %105 = vmatpush1.msra.mxu0 0.0
    %106 = vmatprep.subr.mxu0 0.0
    %107 = vmatpush1.msra.mxu0 0.0
    %108 = vmatprep.subr.mxu0 0.0
    %109 = vmatpush1.msra.mxu0 0.0
    %110 = vmatprep.subr.mxu0 0.0
    %111 = vmatpush1.msra.mxu0 0.0
    %112 = vmatprep.subr.mxu0 0.0
    %113 = vmatpush1.msra.mxu0 0.0
    %114 = vmatprep.subr.mxu0 0.0
    %115 = vmatpush1.msra.mxu0 0.0
    %116 = vmatprep.subr.mxu0 0.0
    %117 = vmatpush1.msra.mxu0 0.0
    %118 = vmatprep.subr.mxu0 0.0
    %119 = vmatpush1.msra.mxu0 0.0
    %120 = vmatprep.subr.mxu0 0.0
    %121 = vmatpush1.msra.mxu0 0.0
    %122 = vmatprep.subr.mxu0 0.0
    %123 = vmatpush1.msra.mxu0 0.0
    %124 = vmatprep.subr.mxu0 0.0
    %125 = vmatpush1.msra.mxu0 0.0
    %126 = vmatprep.subr.mxu0 0.0
    %127 = vmatpush1.msra.mxu0 0.0
    %128 = vmatprep.subr.mxu0 0.0
    %129 = vmatpush1.msra.mxu0 0.0
    %130 = vmatprep.subr.mxu0 0.0
    %131 = vmatpush1.msra.mxu0 0.0
    %132 = vmatprep.subr.mxu0 0.0
    %133 = vmatpush1.msra.mxu0 0.0
    %134 = vmatprep.subr.mxu0 0.0
    %135 = vmatpush1.msra.mxu0 0.0
    %136 = vmatprep.subr.mxu0 0.0
    %137 = vmatpush1.msra.mxu0 0.0
    %138 = vmatprep.mubr.f32.mxu0 0.0
    %139 = vmatmul.mubr.f32.gmra.mrb[0].mxu0 %v72
    %v140 = vpop.f32.mrb[0].mxu0
    %v141 = vadd.f32 %v68, %v140
    %v142 = vpop.f32.mrb[0].mxu0
    %143 = vdwg.mxu0
    %vm144 = vcmask 779264
    %145 = vst.msk [vmem:[#allocation3] sm:$0x3] %vm144, %v141
    // Predicated region
    $region26: #{_lambda_.33} parent=1 // pred_check
      _
    $region27: #{_lambda_.33} parent=1 // pred_check_branch
      %147 = sbr.rel (0) target = $region29
    $region28: #{_lambda_.33} parent=1 // pred_region
      %s149 = ssub.s32 32, 32
      %150 = vsyncadd [#allocation4], %s149
      %s152 = sshll.u32 [#allocation3], 4
      %s153 = int_to_ptr.vmem [resolvable:$true] %s152
      %155 = dma.vmem_to_hbm [thread:$0]  %s153, 32, %s5, [#allocation4]
    $region29: #{_lambda_.33} parent=1 // pred_fallthru
      _
    // Predicated region
    $region30: #{_lambda_.33} parent=1 // pred_check
      _
    $region31: #{_lambda_.33} parent=1 // pred_check_branch
      %157 = sbr.rel (0) target = $region33
    $region32: #{_lambda_.33} parent=1 // pred_region
      %158 = dma.done [#allocation4], 32
    $region33: #{_lambda_.33} parent=1 // pred_fallthru
      _
    %159 = vsyncpa [#allocation4], 1

</llo_original>
